<compile_context>
chip_gen: v7x
topology: tpu7x:2x2x1
jax: 0.10.0
libtpu: 0.0.40
codegen_flags: <defaults>
</compile_context>

<pallas_src>
import functools

import numpy as np
import jax
import jax.numpy as jnp
from jax.experimental import pallas as pl
from jax.experimental.pallas import tpu as pltpu

_SQRT_HALF = 0.7071067811865476


def _recip(x):
    # EUP approximate reciprocal + one Newton-Raphson step (~f32 accuracy): the
    # divide's work moves off the (likely saturated) VALU slot.
    r = pl.reciprocal(x, approx=True)
    return r * (2.0 - x * r)


def _erf_f32(x):
    # Eigen/XLA-style float32 rational erf approximation (matches exact f32 erf
    # to ~ulp level); the final divide uses the EUP reciprocal above.
    clamp = 3.832506856900711
    x = jnp.clip(x, -clamp, clamp)
    x2 = x * x
    p = x2 * (-2.72614225801306e-10) + 2.77068142495902e-08
    p = p * x2 + (-2.10102402082508e-06)
    p = p * x2 + (-5.69250639462346e-05)
    p = p * x2 + (-7.34990630326855e-04)
    p = p * x2 + (-2.95459980854025e-03)
    p = p * x2 + (-1.60960333262415e-02)
    p = p * x
    q = x2 * (-1.45660718464996e-05) + (-2.13374055278905e-04)
    q = q * x2 + (-1.68282697438203e-03)
    q = q * x2 + (-7.37332916720468e-03)
    q = q * x2 + (-1.42647390514189e-02)
    return p * _recip(q)


def _gelu_exact(x):
    # TODO(synk): a tanh-approx GELU would move ~10 VALU ops/elem to the EUP, but
    # differs from PyTorch's exact-erf GELU by ~1e-3 -- kept exact for accuracy.
    return 0.5 * x * (1.0 + _erf_f32(x * _SQRT_HALF))


def _depthwise_sep(inp, w_ref, b_ref, cmask_ref, rmask_ref, *,
                   K, dil, W, lanes, dw_dtype):
    """Separable-roll depthwise KxK conv on a flattened (C, L) slab.

    inp: (C, L); w_ref: (C, K*K); b_ref: (C, 1);
    cmask_ref / rmask_ref: (K, L) column / row validity masks (0/1).
    Column pass: K-1 lane rolls + masks; row pass: one roll + mask per row.
    """
    pad = dil * (K - 1) // 2
    x = inp.astype(dw_dtype)
    w = w_ref[...]

    # Column pass (center column is roll- and mask-free).
    cols = []
    for kw in range(K):
        dwo = kw * dil - pad
        s = x if dwo == 0 else pltpu.roll(x, shift=(-dwo) % lanes, axis=1)
        if dwo != 0:
            s = s * cmask_ref[kw:kw + 1, :]
        cols.append(s)

    # Row pass: combine the K column slabs per row (dw_dtype MACs), then a single
    # row roll + row mask; accumulate across rows in f32 to bound bf16 drift.
    acc = None
    for kh in range(K):
        dh = kh * dil - pad
        row = None
        for kw in range(K):
            idx = kh * K + kw
            t = w[:, idx:idx + 1] * cols[kw]
            row = t if row is None else row + t
        if dh != 0:
            row = pltpu.roll(row, shift=(-dh * W) % lanes, axis=1)
            row = row * rmask_ref[kh:kh + 1, :]
        row = row.astype(jnp.float32)
        acc = row if acc is None else acc + row
    return acc + b_ref[...]


def dual_attention_kernel(x_ref,
                          cm0_ref, rm0_ref, cm1_ref, rm1_ref,
                          pool_ref, bcast_ref,
                          w1_ref, b1_ref,
                          w0_ref, b0_ref,
                          ws_ref, bs_ref,
                          wc1_ref, bc1_ref,
                          fc1_ref, fc2_ref,
                          w2_ref, b2_ref,
                          o_ref, *,
                          K0, K1, dil1, W, lanes, inv_hw, mm_dtype, dw_dtype):
    # proj_1 (1x1 conv) + exact-erf GELU
    v = jnp.dot(w1_ref[...], x_ref[...].astype(mm_dtype),
                preferred_element_type=jnp.float32) + b1_ref[...]
    v = _gelu_exact(v)
    u = v

    # DualAttentionModule: conv0 (dw KxK, dil 1) -> conv_spatial (dw KxK, dilated)
    attn = _depthwise_sep(v, w0_ref, b0_ref, cm0_ref, rm0_ref,
                          K=K0, dil=1, W=W, lanes=lanes, dw_dtype=dw_dtype)
    attn = _depthwise_sep(attn, ws_ref, bs_ref, cm1_ref, rm1_ref,
                          K=K1, dil=dil1, W=W, lanes=lanes, dw_dtype=dw_dtype)

    # conv1 (1x1)
    f_x = jnp.dot(wc1_ref[...], attn.astype(mm_dtype),
                  preferred_element_type=jnp.float32) + bc1_ref[...]

    # squeeze-excite on v, per folded image: pooling / broadcast are MXU matmuls
    # against 0/1 block-diagonal indicators in mm_dtype; 1/HW applied in f32.
    pooled = jnp.dot(v.astype(mm_dtype), pool_ref[...],
                     preferred_element_type=jnp.float32) * inv_hw        # (C, NB)
    hidden = jnp.maximum(
        jnp.dot(fc1_ref[...], pooled, preferred_element_type=jnp.float32), 0.0)
    se = jnp.dot(fc2_ref[...], hidden, preferred_element_type=jnp.float32)
    se = _recip(1.0 + jnp.exp(-se))                                      # sigmoid
    se_full = jnp.dot(se.astype(mm_dtype), bcast_ref[...],
                      preferred_element_type=jnp.float32)                # (C, L)

    dau = se_full * f_x * u

    # proj_2 (1x1) + residual shortcut (x re-read here -> shorter live range)
    o_ref[...] = (jnp.dot(w2_ref[...], dau.astype(mm_dtype),
                          preferred_element_type=jnp.float32)
                  + b2_ref[...] + x_ref[...])


def _sep_masks(H, W, K, dil, HWp, NB):
    """Column / row validity masks (K, NB*HWp) for a separable-roll dw conv."""
    pad = dil * (K - 1) // 2
    hh = np.arange(H).reshape(H, 1)
    ww = np.arange(W).reshape(1, W)
    col = np.zeros((K, HWp), np.float32)
    row = np.zeros((K, HWp), np.float32)
    for k in range(K):
        d = k * dil - pad
        cm = ((ww + d >= 0) & (ww + d < W)).astype(np.float32)
        rm = ((hh + d >= 0) & (hh + d < H)).astype(np.float32)
        col[k, :H * W] = np.broadcast_to(cm, (H, W)).reshape(-1)
        row[k, :H * W] = np.broadcast_to(rm, (H, W)).reshape(-1)
    return np.tile(col, (1, NB)), np.tile(row, (1, NB))


def _device_kind():
    try:
        return jax.devices()[0].device_kind.lower()
    except Exception:
        return ""


def _physical_vmem_bytes(kind):
    # Generation-aware physical per-TensorCore VMEM (v7x: 64 MiB; v5e/v6e: 128 MiB;
    # unknown: conservative 64 MiB).  Cross-check with get_tpu_info when available.
    phys = 64 << 20
    if ("v5" in kind) or ("v6" in kind):
        phys = 128 << 20
    elif "v7" in kind:
        phys = 64 << 20
    try:
        v = getattr(pltpu.get_tpu_info(), "vmem_capacity_bytes", None)
        if v:
            phys = min(phys, int(v))
    except Exception:
        pass
    return phys


def init_params(key, dim, kernel_size=16, dilation=3, reduction=16, scale=0.1):
    d_k = 2 * dilation - 1                                              # 5
    dd_k = kernel_size // dilation + (kernel_size // dilation % 2 - 1)  # 5
    red = max(dim // reduction, 3)
    r = dim // red
    ks = jax.random.split(key, 12)
    n = lambda k, s: jax.random.normal(k, s, jnp.float32) * scale
    params = dict(
        w1=n(ks[0], (dim, dim)),   b1=n(ks[1], (dim,)),          # proj_1 (1x1 conv)
        w0=n(ks[2], (dim, d_k * d_k)),  b0=n(ks[3], (dim,)),     # conv0 depthwise
        ws=n(ks[4], (dim, dd_k * dd_k)), bs=n(ks[5], (dim,)),    # conv_spatial dw
        wc1=n(ks[6], (dim, dim)),  bc1=n(ks[7], (dim,)),         # conv1 (1x1)
        fc1=n(ks[8], (r, dim)),    fc2=n(ks[9], (dim, r)),       # SE linears (no bias)
        w2=n(ks[10], (dim, dim)),  b2=n(ks[11], (dim,)),         # proj_2 (1x1 conv)
    )
    return params, d_k, dd_k


def dual_attention_forward(x_nchw, params, kernel_size=16, dilation=3,
                           batch_block=None, matmul_dtype=None, dw_dtype=None):
    B, C, H, W = x_nchw.shape
    HW = H * W
    HWp = ((HW + 127) // 128) * 128            # lane-dense spatial axis
    d_k = 2 * dilation - 1
    dd_k = kernel_size // dilation + (kernel_size // dilation % 2 - 1)
    r_dim = params["fc1"].shape[0]

    kind = _device_kind()
    two_tc = "v7" in kind                      # v7x: 2 TensorCores per chip

    # bf16 MXU operands are a ~3x win at production dims; f32 at tiny dims.
    if matmul_dtype is None:
        matmul_dtype = jnp.bfloat16 if C >= 128 else jnp.float32
    # bf16 depthwise MACs only where the VPU has packed bf16 (v6e/v7x), never v5e.
    if dw_dtype is None:
        dw_dtype = jnp.bfloat16 if (C >= 128 and "v5" not in kind) else jnp.float32
    mm_item = jnp.dtype(matmul_dtype).itemsize
    dw_item = jnp.dtype(dw_dtype).itemsize

    phys_vmem = _physical_vmem_bytes(kind)
    budget = int(phys_vmem * 0.8)              # leave headroom (esp. v7x 64 MiB)

    def est_bytes(nb):
        lanes = nb * HWp
        blk = C * lanes * 4                                     # one f32 (C, L) slab
        masks = 2 * (d_k + dd_k) * lanes * dw_item
        se_mats = 2 * lanes * nb * mm_item
        weights = (3 * C * C) * mm_item \
            + C * (d_k * d_k + dd_k * dd_k) * dw_item \
            + 2 * C * r_dim * 4 + 4 * C * 4
        const = masks + se_mats + weights
        # 2 I/O blocks x 2 buffers + (worst-case double-buffered) constants
        # + ~12 live whole-slab temporaries in the body.
        return 4 * blk + 2 * const + 12 * blk

    # VMEM-aware, generation-aware NB selection (target >= ~1024 lanes per slab,
    # keep G >= 2 on 2-TC parts, shrink NB -- never just clamp the limit).
    if batch_block is None:
        nb = max(1, min(B, -(-1024 // HWp)))
        if two_tc and B >= 2:
            nb = min(nb, -(-B // 2))
        while nb > 1 and est_bytes(nb) > budget:
            nb -= 1
    else:
        nb = batch_block
    NB = nb
    Bp = -(-B // NB) * NB                      # pad B with zero images if needed
    G = Bp // NB
    L = NB * HWp
    # TODO(synk): for very large C*H*W (est_bytes(1) > budget) tile the spatial
    # axis with a dilation*(K-1)/2 halo instead of folding whole images.

    cm0, rm0 = _sep_masks(H, W, d_k, 1, HWp, NB)
    cm1, rm1 = _sep_masks(H, W, dd_k, dilation, HWp, NB)

    # Block-diagonal 0/1 per-image pooling / broadcast indicators (mm_dtype-exact).
    pool = np.zeros((L, NB), np.float32)
    bcast = np.zeros((NB, L), np.float32)
    for i in range(NB):
        pool[i * HWp: i * HWp + HW, i] = 1.0
        bcast[i, i * HWp:(i + 1) * HWp] = 1.0

    # (B,C,H,W) -> (G, C, NB*HWp) slabs, batch-major on lanes, zero-padded.
    x_f32 = x_nchw.astype(jnp.float32).reshape(B, C, HW)
    x_f32 = jnp.pad(x_f32, ((0, Bp - B), (0, 0), (0, HWp - HW)))
    x_slab = x_f32.reshape(G, NB, C, HWp).transpose(0, 2, 1, 3).reshape(G, C, L)

    col = lambda b: b.reshape(-1, 1).astype(jnp.float32)
    wdt = lambda w: w.astype(matmul_dtype)
    mdt = lambda m: jnp.asarray(m, dw_dtype)
    args = (
        x_slab,
        mdt(cm0), mdt(rm0), mdt(cm1), mdt(rm1),
        jnp.asarray(pool, matmul_dtype), jnp.asarray(bcast, matmul_dtype),
        wdt(params["w1"]), col(params["b1"]),
        params["w0"].astype(dw_dtype), col(params["b0"]),
        params["ws"].astype(dw_dtype), col(params["bs"]),
        wdt(params["wc1"]), col(params["bc1"]),
        params["fc1"].astype(jnp.float32), params["fc2"].astype(jnp.float32),
        wdt(params["w2"]), col(params["b2"]),
    )

    x_spec = pl.BlockSpec((None, C, L), lambda g: (g, 0, 0))
    out_spec = pl.BlockSpec((None, C, L), lambda g: (g, 0, 0))

    def const_spec(a, single_buffer):
        nd = a.ndim
        if single_buffer:
            return pl.BlockSpec(a.shape, lambda g, _nd=nd: (0,) * _nd,
                                pipeline_mode=pl.Buffered(1))
        return pl.BlockSpec(a.shape, lambda g, _nd=nd: (0,) * _nd)

    kernel = functools.partial(
        dual_attention_kernel, K0=d_k, K1=dd_k, dil1=dilation, W=W, lanes=L,
        inv_hw=1.0 / HW, mm_dtype=matmul_dtype, dw_dtype=dw_dtype)

    def run(single_buffer_consts):
        call = pl.pallas_call(
            kernel,
            out_shape=jax.ShapeDtypeStruct((G, C, L), jnp.float32),
            grid=(G,),
            in_specs=[x_spec] + [const_spec(a, single_buffer_consts)
                                 for a in args[1:]],
            out_specs=out_spec,
            compiler_params=pltpu.CompilerParams(
                dimension_semantics=("parallel",),   # v7x: shard batch blocks on TCs
                vmem_limit_bytes=budget),
        )
        return jax.block_until_ready(call(*args))

    try:
        out = run(True)    # single-buffer grid-invariant constants (halves their VMEM)
    except Exception:
        out = run(False)   # fall back to default double-buffering if unsupported

    out = out.reshape(G, C, NB, HWp).transpose(0, 2, 1, 3).reshape(Bp, C, HWp)
    return out[:B, :, :HW].reshape(B, C, H, W)


def reference_forward(x, params, kernel_size=16, dilation=3):
    """Plain-JAX reference mirroring the PyTorch module (for a sanity check)."""
    C = x.shape[1]
    d_k = 2 * dilation - 1
    dd_k = kernel_size // dilation + (kernel_size // dilation % 2 - 1)

    def pw(inp, w, b):
        return (jnp.einsum("oc,bchw->bohw", w, inp,
                           precision=jax.lax.Precision.HIGHEST)
                + b[None, :, None, None])

    def dw(inp, w, b, k, dil):
        pad = dil * (k - 1) // 2
        out = jax.lax.conv_general_dilated(
            inp, w.reshape(C, 1, k, k), window_strides=(1, 1),
            padding=((pad, pad), (pad, pad)), rhs_dilation=(dil, dil),
            dimension_numbers=("NCHW", "OIHW", "NCHW"),
            feature_group_count=C, precision=jax.lax.Precision.HIGHEST)
        return out + b[None, :, None, None]

    v = pw(x, params["w1"], params["b1"])
    v = 0.5 * v * (1.0 + jax.scipy.special.erf(v * _SQRT_HALF))   # exact GELU
    u = v
    a = dw(v, params["w0"], params["b0"], d_k, 1)
    a = dw(a, params["ws"], params["bs"], dd_k, dilation)
    f = pw(a, params["wc1"], params["bc1"])
    pooled = v.mean(axis=(2, 3))                                   # (B, C)
    h = jnp.maximum(pooled @ params["fc1"].T, 0.0)
    se = jax.nn.sigmoid(h @ params["fc2"].T)
    dau = se[:, :, None, None] * f * u
    return pw(dau, params["w2"], params["b2"]) + x


if __name__ == "__main__":
    B, C, H, W = 2, 8, 16, 16
    key = jax.random.PRNGKey(0)
    kx, kp = jax.random.split(key)
    x = jax.random.normal(kx, (B, C, H, W), jnp.float32)
    params, _, _ = init_params(kp, C)

    out = dual_attention_forward(x, params)
    out = jax.block_until_ready(out)

    with jax.default_matmul_precision("highest"):
        ref = jax.block_until_ready(reference_forward(x, params))
    np.testing.assert_allclose(np.asarray(out), np.asarray(ref), rtol=2e-3, atol=2e-3)

    print("KERNEL_OK")
</pallas_src>

<mosaic_0001>
module attributes {stable_mosaic.version = 11 : i64} {
  func.func @dual_attention_kernel(%arg0: i32, %arg1: memref<1x8x512xf32, #tpu.memory_space<vmem>>, %arg2: memref<5x512xf32, #tpu.memory_space<vmem>>, %arg3: memref<5x512xf32, #tpu.memory_space<vmem>>, %arg4: memref<5x512xf32, #tpu.memory_space<vmem>>, %arg5: memref<5x512xf32, #tpu.memory_space<vmem>>, %arg6: memref<512x2xf32, #tpu.memory_space<vmem>>, %arg7: memref<2x512xf32, #tpu.memory_space<vmem>>, %arg8: memref<8x8xf32, #tpu.memory_space<vmem>>, %arg9: memref<8x1xf32, #tpu.memory_space<vmem>>, %arg10: memref<8x25xf32, #tpu.memory_space<vmem>>, %arg11: memref<8x1xf32, #tpu.memory_space<vmem>>, %arg12: memref<8x25xf32, #tpu.memory_space<vmem>>, %arg13: memref<8x1xf32, #tpu.memory_space<vmem>>, %arg14: memref<8x8xf32, #tpu.memory_space<vmem>>, %arg15: memref<8x1xf32, #tpu.memory_space<vmem>>, %arg16: memref<2x8xf32, #tpu.memory_space<vmem>>, %arg17: memref<8x2xf32, #tpu.memory_space<vmem>>, %arg18: memref<8x8xf32, #tpu.memory_space<vmem>>, %arg19: memref<8x1xf32, #tpu.memory_space<vmem>>, %arg20: memref<1x8x512xf32, #tpu.memory_space<vmem>>) attributes {dimension_semantics = [#tpu.dimension_semantics<parallel>], iteration_bounds = array<i64: 1>, scalar_prefetch = 0 : i64, scratch_operands = 0 : i64, tpu.core_type = #tpu.core_type<tc>, window_params = [{transform_indices = @transform_0, window_bounds = array<i64: 1, 8, 512>}, {pipeline_mode = #tpu.pipeline_mode<synchronous>, transform_indices = @transform_1, window_bounds = array<i64: 5, 512>}, {pipeline_mode = #tpu.pipeline_mode<synchronous>, transform_indices = @transform_2, window_bounds = array<i64: 5, 512>}, {pipeline_mode = #tpu.pipeline_mode<synchronous>, transform_indices = @transform_3, window_bounds = array<i64: 5, 512>}, {pipeline_mode = #tpu.pipeline_mode<synchronous>, transform_indices = @transform_4, window_bounds = array<i64: 5, 512>}, {pipeline_mode = #tpu.pipeline_mode<synchronous>, transform_indices = @transform_5, window_bounds = array<i64: 512, 2>}, {pipeline_mode = #tpu.pipeline_mode<synchronous>, transform_indices = @transform_6, window_bounds = array<i64: 2, 512>}, {pipeline_mode = #tpu.pipeline_mode<synchronous>, transform_indices = @transform_7, window_bounds = array<i64: 8, 8>}, {pipeline_mode = #tpu.pipeline_mode<synchronous>, transform_indices = @transform_8, window_bounds = array<i64: 8, 1>}, {pipeline_mode = #tpu.pipeline_mode<synchronous>, transform_indices = @transform_9, window_bounds = array<i64: 8, 25>}, {pipeline_mode = #tpu.pipeline_mode<synchronous>, transform_indices = @transform_10, window_bounds = array<i64: 8, 1>}, {pipeline_mode = #tpu.pipeline_mode<synchronous>, transform_indices = @transform_11, window_bounds = array<i64: 8, 25>}, {pipeline_mode = #tpu.pipeline_mode<synchronous>, transform_indices = @transform_12, window_bounds = array<i64: 8, 1>}, {pipeline_mode = #tpu.pipeline_mode<synchronous>, transform_indices = @transform_13, window_bounds = array<i64: 8, 8>}, {pipeline_mode = #tpu.pipeline_mode<synchronous>, transform_indices = @transform_14, window_bounds = array<i64: 8, 1>}, {pipeline_mode = #tpu.pipeline_mode<synchronous>, transform_indices = @transform_15, window_bounds = array<i64: 2, 8>}, {pipeline_mode = #tpu.pipeline_mode<synchronous>, transform_indices = @transform_16, window_bounds = array<i64: 8, 2>}, {pipeline_mode = #tpu.pipeline_mode<synchronous>, transform_indices = @transform_17, window_bounds = array<i64: 8, 8>}, {pipeline_mode = #tpu.pipeline_mode<synchronous>, transform_indices = @transform_18, window_bounds = array<i64: 8, 1>}, {transform_indices = @transform_19, window_bounds = array<i64: 1, 8, 512>}]} {
    %c0 = arith.constant 0 : index
    %c0_0 = arith.constant 0 : index
    %0 = vector.load %arg8[%c0, %c0_0] : memref<8x8xf32, #tpu.memory_space<vmem>>, vector<8x8xf32>
    %c0_1 = arith.constant 0 : index
    %c0_2 = arith.constant 0 : index
    %c0_3 = arith.constant 0 : index
    %1 = vector.load %arg1[%c0_1, %c0_2, %c0_3] : memref<1x8x512xf32, #tpu.memory_space<vmem>>, vector<1x8x512xf32>
    %2 = vector.shape_cast %1 : vector<1x8x512xf32> to vector<8x512xf32>
    %cst = arith.constant dense<0.000000e+00> : vector<8x512xf32>
    %3 = tpu.matmul %0, %2, %cst {dimension_numbers = #tpu.dot_dimension_numbers<[1], [0], [0], [1], [0, 0, 1, 1], [], []>} : vector<8x8xf32>, vector<8x512xf32>, vector<8x512xf32> -> vector<8x512xf32>
    %c0_4 = arith.constant 0 : index
    %c0_5 = arith.constant 0 : index
    %4 = vector.load %arg9[%c0_4, %c0_5] : memref<8x1xf32, #tpu.memory_space<vmem>>, vector<8x1xf32>
    %5 = vector.broadcast %4 : vector<8x1xf32> to vector<8x512xf32>
    %6 = arith.addf %3, %5 : vector<8x512xf32>
    %cst_6 = arith.constant 5.000000e-01 : f32
    %7 = vector.broadcast %cst_6 : f32 to vector<8x512xf32>
    %8 = arith.mulf %7, %6 : vector<8x512xf32>
    %cst_7 = arith.constant 0.707106769 : f32
    %9 = vector.broadcast %cst_7 : f32 to vector<8x512xf32>
    %10 = arith.mulf %6, %9 : vector<8x512xf32>
    %cst_8 = arith.constant -3.8325069 : f32
    %cst_9 = arith.constant 3.8325069 : f32
    %11 = vector.broadcast %cst_8 : f32 to vector<8x512xf32>
    %12 = arith.maximumf %11, %10 : vector<8x512xf32>
    %13 = vector.broadcast %cst_9 : f32 to vector<8x512xf32>
    %14 = arith.minimumf %13, %12 : vector<8x512xf32>
    %15 = arith.mulf %14, %14 : vector<8x512xf32>
    %cst_10 = arith.constant -2.72614237E-10 : f32
    %16 = vector.broadcast %cst_10 : f32 to vector<8x512xf32>
    %17 = arith.mulf %15, %16 : vector<8x512xf32>
    %cst_11 = arith.constant 2.77068146E-8 : f32
    %18 = vector.broadcast %cst_11 : f32 to vector<8x512xf32>
    %19 = arith.addf %17, %18 : vector<8x512xf32>
    %20 = arith.mulf %19, %15 : vector<8x512xf32>
    %cst_12 = arith.constant -2.10102394E-6 : f32
    %21 = vector.broadcast %cst_12 : f32 to vector<8x512xf32>
    %22 = arith.addf %20, %21 : vector<8x512xf32>
    %23 = arith.mulf %22, %15 : vector<8x512xf32>
    %cst_13 = arith.constant -5.69250624E-5 : f32
    %24 = vector.broadcast %cst_13 : f32 to vector<8x512xf32>
    %25 = arith.addf %23, %24 : vector<8x512xf32>
    %26 = arith.mulf %25, %15 : vector<8x512xf32>
    %cst_14 = arith.constant -7.34990637E-4 : f32
    %27 = vector.broadcast %cst_14 : f32 to vector<8x512xf32>
    %28 = arith.addf %26, %27 : vector<8x512xf32>
    %29 = arith.mulf %28, %15 : vector<8x512xf32>
    %cst_15 = arith.constant -2.954600e-03 : f32
    %30 = vector.broadcast %cst_15 : f32 to vector<8x512xf32>
    %31 = arith.addf %29, %30 : vector<8x512xf32>
    %32 = arith.mulf %31, %15 : vector<8x512xf32>
    %cst_16 = arith.constant -0.0160960332 : f32
    %33 = vector.broadcast %cst_16 : f32 to vector<8x512xf32>
    %34 = arith.addf %32, %33 : vector<8x512xf32>
    %35 = arith.mulf %34, %14 : vector<8x512xf32>
    %cst_17 = arith.constant -1.45660715E-5 : f32
    %36 = vector.broadcast %cst_17 : f32 to vector<8x512xf32>
    %37 = arith.mulf %15, %36 : vector<8x512xf32>
    %cst_18 = arith.constant -2.13374049E-4 : f32
    %38 = vector.broadcast %cst_18 : f32 to vector<8x512xf32>
    %39 = arith.addf %37, %38 : vector<8x512xf32>
    %40 = arith.mulf %39, %15 : vector<8x512xf32>
    %cst_19 = arith.constant -0.00168282702 : f32
    %41 = vector.broadcast %cst_19 : f32 to vector<8x512xf32>
    %42 = arith.addf %40, %41 : vector<8x512xf32>
    %43 = arith.mulf %42, %15 : vector<8x512xf32>
    %cst_20 = arith.constant -0.00737332925 : f32
    %44 = vector.broadcast %cst_20 : f32 to vector<8x512xf32>
    %45 = arith.addf %43, %44 : vector<8x512xf32>
    %46 = arith.mulf %45, %15 : vector<8x512xf32>
    %cst_21 = arith.constant -0.0142647391 : f32
    %47 = vector.broadcast %cst_21 : f32 to vector<8x512xf32>
    %48 = arith.addf %46, %47 : vector<8x512xf32>
    %49 = tpu.reciprocal %48 {approx = true} : vector<8x512xf32> -> vector<8x512xf32>
    %50 = arith.mulf %48, %49 : vector<8x512xf32>
    %cst_22 = arith.constant 2.000000e+00 : f32
    %51 = vector.broadcast %cst_22 : f32 to vector<8x512xf32>
    %52 = arith.subf %51, %50 : vector<8x512xf32>
    %53 = arith.mulf %49, %52 : vector<8x512xf32>
    %54 = arith.mulf %35, %53 : vector<8x512xf32>
    %cst_23 = arith.constant 1.000000e+00 : f32
    %55 = vector.broadcast %cst_23 : f32 to vector<8x512xf32>
    %56 = arith.addf %55, %54 : vector<8x512xf32>
    %57 = arith.mulf %8, %56 : vector<8x512xf32>
    %c0_24 = arith.constant 0 : index
    %c0_25 = arith.constant 0 : index
    %58 = vector.load %arg10[%c0_24, %c0_25] : memref<8x25xf32, #tpu.memory_space<vmem>>, vector<8x25xf32>
    %c2_i32 = arith.constant 2 : i32
    %59 = tpu.dynamic_rotate %57 by %c2_i32 dim 1 : vector<8x512xf32>, i32 -> vector<8x512xf32>
    %c0_26 = arith.constant 0 : index
    %c0_27 = arith.constant 0 : index
    %60 = vector.load %arg2[%c0_26, %c0_27] : memref<5x512xf32, #tpu.memory_space<vmem>>, vector<1x512xf32>
    %61 = vector.broadcast %60 : vector<1x512xf32> to vector<8x512xf32>
    %62 = arith.mulf %59, %61 : vector<8x512xf32>
    %c1_i32 = arith.constant 1 : i32
    %63 = tpu.dynamic_rotate %57 by %c1_i32 dim 1 : vector<8x512xf32>, i32 -> vector<8x512xf32>
    %c1 = arith.constant 1 : index
    %c0_28 = arith.constant 0 : index
    %64 = vector.load %arg2[%c1, %c0_28] : memref<5x512xf32, #tpu.memory_space<vmem>>, vector<1x512xf32>
    %65 = vector.broadcast %64 : vector<1x512xf32> to vector<8x512xf32>
    %66 = arith.mulf %63, %65 : vector<8x512xf32>
    %c511_i32 = arith.constant 511 : i32
    %67 = tpu.dynamic_rotate %57 by %c511_i32 dim 1 : vector<8x512xf32>, i32 -> vector<8x512xf32>
    %c3 = arith.constant 3 : index
    %c0_29 = arith.constant 0 : index
    %68 = vector.load %arg2[%c3, %c0_29] : memref<5x512xf32, #tpu.memory_space<vmem>>, vector<1x512xf32>
    %69 = vector.broadcast %68 : vector<1x512xf32> to vector<8x512xf32>
    %70 = arith.mulf %67, %69 : vector<8x512xf32>
    %c510_i32 = arith.constant 510 : i32
    %71 = tpu.dynamic_rotate %57 by %c510_i32 dim 1 : vector<8x512xf32>, i32 -> vector<8x512xf32>
    %c4 = arith.constant 4 : index
    %c0_30 = arith.constant 0 : index
    %72 = vector.load %arg2[%c4, %c0_30] : memref<5x512xf32, #tpu.memory_space<vmem>>, vector<1x512xf32>
    %73 = vector.broadcast %72 : vector<1x512xf32> to vector<8x512xf32>
    %74 = arith.mulf %71, %73 : vector<8x512xf32>
    %75 = vector.extract_strided_slice %58 {offsets = [0, 0], sizes = [8, 1], strides = [1, 1]} : vector<8x25xf32> to vector<8x1xf32>
    %76 = vector.broadcast %75 : vector<8x1xf32> to vector<8x512xf32>
    %77 = arith.mulf %76, %62 : vector<8x512xf32>
    %78 = vector.extract_strided_slice %58 {offsets = [0, 1], sizes = [8, 1], strides = [1, 1]} : vector<8x25xf32> to vector<8x1xf32>
    %79 = vector.broadcast %78 : vector<8x1xf32> to vector<8x512xf32>
    %80 = arith.mulf %79, %66 : vector<8x512xf32>
    %81 = arith.addf %77, %80 : vector<8x512xf32>
    %82 = vector.extract_strided_slice %58 {offsets = [0, 2], sizes = [8, 1], strides = [1, 1]} : vector<8x25xf32> to vector<8x1xf32>
    %83 = vector.broadcast %82 : vector<8x1xf32> to vector<8x512xf32>
    %84 = arith.mulf %83, %57 : vector<8x512xf32>
    %85 = arith.addf %81, %84 : vector<8x512xf32>
    %86 = vector.extract_strided_slice %58 {offsets = [0, 3], sizes = [8, 1], strides = [1, 1]} : vector<8x25xf32> to vector<8x1xf32>
    %87 = vector.broadcast %86 : vector<8x1xf32> to vector<8x512xf32>
    %88 = arith.mulf %87, %70 : vector<8x512xf32>
    %89 = arith.addf %85, %88 : vector<8x512xf32>
    %90 = vector.extract_strided_slice %58 {offsets = [0, 4], sizes = [8, 1], strides = [1, 1]} : vector<8x25xf32> to vector<8x1xf32>
    %91 = vector.broadcast %90 : vector<8x1xf32> to vector<8x512xf32>
    %92 = arith.mulf %91, %74 : vector<8x512xf32>
    %93 = arith.addf %89, %92 : vector<8x512xf32>
    %c32_i32 = arith.constant 32 : i32
    %94 = tpu.dynamic_rotate %93 by %c32_i32 dim 1 : vector<8x512xf32>, i32 -> vector<8x512xf32>
    %c0_31 = arith.constant 0 : index
    %c0_32 = arith.constant 0 : index
    %95 = vector.load %arg3[%c0_31, %c0_32] : memref<5x512xf32, #tpu.memory_space<vmem>>, vector<1x512xf32>
    %96 = vector.broadcast %95 : vector<1x512xf32> to vector<8x512xf32>
    %97 = arith.mulf %94, %96 : vector<8x512xf32>
    %98 = vector.extract_strided_slice %58 {offsets = [0, 5], sizes = [8, 1], strides = [1, 1]} : vector<8x25xf32> to vector<8x1xf32>
    %99 = vector.broadcast %98 : vector<8x1xf32> to vector<8x512xf32>
    %100 = arith.mulf %99, %62 : vector<8x512xf32>
    %101 = vector.extract_strided_slice %58 {offsets = [0, 6], sizes = [8, 1], strides = [1, 1]} : vector<8x25xf32> to vector<8x1xf32>
    %102 = vector.broadcast %101 : vector<8x1xf32> to vector<8x512xf32>
    %103 = arith.mulf %102, %66 : vector<8x512xf32>
    %104 = arith.addf %100, %103 : vector<8x512xf32>
    %105 = vector.extract_strided_slice %58 {offsets = [0, 7], sizes = [8, 1], strides = [1, 1]} : vector<8x25xf32> to vector<8x1xf32>
    %106 = vector.broadcast %105 : vector<8x1xf32> to vector<8x512xf32>
    %107 = arith.mulf %106, %57 : vector<8x512xf32>
    %108 = arith.addf %104, %107 : vector<8x512xf32>
    %109 = vector.extract_strided_slice %58 {offsets = [0, 8], sizes = [8, 1], strides = [1, 1]} : vector<8x25xf32> to vector<8x1xf32>
    %110 = vector.broadcast %109 : vector<8x1xf32> to vector<8x512xf32>
    %111 = arith.mulf %110, %70 : vector<8x512xf32>
    %112 = arith.addf %108, %111 : vector<8x512xf32>
    %113 = vector.extract_strided_slice %58 {offsets = [0, 9], sizes = [8, 1], strides = [1, 1]} : vector<8x25xf32> to vector<8x1xf32>
    %114 = vector.broadcast %113 : vector<8x1xf32> to vector<8x512xf32>
    %115 = arith.mulf %114, %74 : vector<8x512xf32>
    %116 = arith.addf %112, %115 : vector<8x512xf32>
    %c16_i32 = arith.constant 16 : i32
    %117 = tpu.dynamic_rotate %116 by %c16_i32 dim 1 : vector<8x512xf32>, i32 -> vector<8x512xf32>
    %c1_33 = arith.constant 1 : index
    %c0_34 = arith.constant 0 : index
    %118 = vector.load %arg3[%c1_33, %c0_34] : memref<5x512xf32, #tpu.memory_space<vmem>>, vector<1x512xf32>
    %119 = vector.broadcast %118 : vector<1x512xf32> to vector<8x512xf32>
    %120 = arith.mulf %117, %119 : vector<8x512xf32>
    %121 = arith.addf %97, %120 : vector<8x512xf32>
    %122 = vector.extract_strided_slice %58 {offsets = [0, 10], sizes = [8, 1], strides = [1, 1]} : vector<8x25xf32> to vector<8x1xf32>
    %123 = vector.broadcast %122 : vector<8x1xf32> to vector<8x512xf32>
    %124 = arith.mulf %123, %62 : vector<8x512xf32>
    %125 = vector.extract_strided_slice %58 {offsets = [0, 11], sizes = [8, 1], strides = [1, 1]} : vector<8x25xf32> to vector<8x1xf32>
    %126 = vector.broadcast %125 : vector<8x1xf32> to vector<8x512xf32>
    %127 = arith.mulf %126, %66 : vector<8x512xf32>
    %128 = arith.addf %124, %127 : vector<8x512xf32>
    %129 = vector.extract_strided_slice %58 {offsets = [0, 12], sizes = [8, 1], strides = [1, 1]} : vector<8x25xf32> to vector<8x1xf32>
    %130 = vector.broadcast %129 : vector<8x1xf32> to vector<8x512xf32>
    %131 = arith.mulf %130, %57 : vector<8x512xf32>
    %132 = arith.addf %128, %131 : vector<8x512xf32>
    %133 = vector.extract_strided_slice %58 {offsets = [0, 13], sizes = [8, 1], strides = [1, 1]} : vector<8x25xf32> to vector<8x1xf32>
    %134 = vector.broadcast %133 : vector<8x1xf32> to vector<8x512xf32>
    %135 = arith.mulf %134, %70 : vector<8x512xf32>
    %136 = arith.addf %132, %135 : vector<8x512xf32>
    %137 = vector.extract_strided_slice %58 {offsets = [0, 14], sizes = [8, 1], strides = [1, 1]} : vector<8x25xf32> to vector<8x1xf32>
    %138 = vector.broadcast %137 : vector<8x1xf32> to vector<8x512xf32>
    %139 = arith.mulf %138, %74 : vector<8x512xf32>
    %140 = arith.addf %136, %139 : vector<8x512xf32>
    %141 = arith.addf %121, %140 : vector<8x512xf32>
    %142 = vector.extract_strided_slice %58 {offsets = [0, 15], sizes = [8, 1], strides = [1, 1]} : vector<8x25xf32> to vector<8x1xf32>
    %143 = vector.broadcast %142 : vector<8x1xf32> to vector<8x512xf32>
    %144 = arith.mulf %143, %62 : vector<8x512xf32>
    %145 = vector.extract_strided_slice %58 {offsets = [0, 16], sizes = [8, 1], strides = [1, 1]} : vector<8x25xf32> to vector<8x1xf32>
    %146 = vector.broadcast %145 : vector<8x1xf32> to vector<8x512xf32>
    %147 = arith.mulf %146, %66 : vector<8x512xf32>
    %148 = arith.addf %144, %147 : vector<8x512xf32>
    %149 = vector.extract_strided_slice %58 {offsets = [0, 17], sizes = [8, 1], strides = [1, 1]} : vector<8x25xf32> to vector<8x1xf32>
    %150 = vector.broadcast %149 : vector<8x1xf32> to vector<8x512xf32>
    %151 = arith.mulf %150, %57 : vector<8x512xf32>
    %152 = arith.addf %148, %151 : vector<8x512xf32>
    %153 = vector.extract_strided_slice %58 {offsets = [0, 18], sizes = [8, 1], strides = [1, 1]} : vector<8x25xf32> to vector<8x1xf32>
    %154 = vector.broadcast %153 : vector<8x1xf32> to vector<8x512xf32>
    %155 = arith.mulf %154, %70 : vector<8x512xf32>
    %156 = arith.addf %152, %155 : vector<8x512xf32>
    %157 = vector.extract_strided_slice %58 {offsets = [0, 19], sizes = [8, 1], strides = [1, 1]} : vector<8x25xf32> to vector<8x1xf32>
    %158 = vector.broadcast %157 : vector<8x1xf32> to vector<8x512xf32>
    %159 = arith.mulf %158, %74 : vector<8x512xf32>
    %160 = arith.addf %156, %159 : vector<8x512xf32>
    %c496_i32 = arith.constant 496 : i32
    %161 = tpu.dynamic_rotate %160 by %c496_i32 dim 1 : vector<8x512xf32>, i32 -> vector<8x512xf32>
    %c3_35 = arith.constant 3 : index
    %c0_36 = arith.constant 0 : index
    %162 = vector.load %arg3[%c3_35, %c0_36] : memref<5x512xf32, #tpu.memory_space<vmem>>, vector<1x512xf32>
    %163 = vector.broadcast %162 : vector<1x512xf32> to vector<8x512xf32>
    %164 = arith.mulf %161, %163 : vector<8x512xf32>
    %165 = arith.addf %141, %164 : vector<8x512xf32>
    %166 = vector.extract_strided_slice %58 {offsets = [0, 20], sizes = [8, 1], strides = [1, 1]} : vector<8x25xf32> to vector<8x1xf32>
    %167 = vector.broadcast %166 : vector<8x1xf32> to vector<8x512xf32>
    %168 = arith.mulf %167, %62 : vector<8x512xf32>
    %169 = vector.extract_strided_slice %58 {offsets = [0, 21], sizes = [8, 1], strides = [1, 1]} : vector<8x25xf32> to vector<8x1xf32>
    %170 = vector.broadcast %169 : vector<8x1xf32> to vector<8x512xf32>
    %171 = arith.mulf %170, %66 : vector<8x512xf32>
    %172 = arith.addf %168, %171 : vector<8x512xf32>
    %173 = vector.extract_strided_slice %58 {offsets = [0, 22], sizes = [8, 1], strides = [1, 1]} : vector<8x25xf32> to vector<8x1xf32>
    %174 = vector.broadcast %173 : vector<8x1xf32> to vector<8x512xf32>
    %175 = arith.mulf %174, %57 : vector<8x512xf32>
    %176 = arith.addf %172, %175 : vector<8x512xf32>
    %177 = vector.extract_strided_slice %58 {offsets = [0, 23], sizes = [8, 1], strides = [1, 1]} : vector<8x25xf32> to vector<8x1xf32>
    %178 = vector.broadcast %177 : vector<8x1xf32> to vector<8x512xf32>
    %179 = arith.mulf %178, %70 : vector<8x512xf32>
    %180 = arith.addf %176, %179 : vector<8x512xf32>
    %181 = vector.extract_strided_slice %58 {offsets = [0, 24], sizes = [8, 1], strides = [1, 1]} : vector<8x25xf32> to vector<8x1xf32>
    %182 = vector.broadcast %181 : vector<8x1xf32> to vector<8x512xf32>
    %183 = arith.mulf %182, %74 : vector<8x512xf32>
    %184 = arith.addf %180, %183 : vector<8x512xf32>
    %c480_i32 = arith.constant 480 : i32
    %185 = tpu.dynamic_rotate %184 by %c480_i32 dim 1 : vector<8x512xf32>, i32 -> vector<8x512xf32>
    %c4_37 = arith.constant 4 : index
    %c0_38 = arith.constant 0 : index
    %186 = vector.load %arg3[%c4_37, %c0_38] : memref<5x512xf32, #tpu.memory_space<vmem>>, vector<1x512xf32>
    %187 = vector.broadcast %186 : vector<1x512xf32> to vector<8x512xf32>
    %188 = arith.mulf %185, %187 : vector<8x512xf32>
    %189 = arith.addf %165, %188 : vector<8x512xf32>
    %c0_39 = arith.constant 0 : index
    %c0_40 = arith.constant 0 : index
    %190 = vector.load %arg11[%c0_39, %c0_40] : memref<8x1xf32, #tpu.memory_space<vmem>>, vector<8x1xf32>
    %191 = vector.broadcast %190 : vector<8x1xf32> to vector<8x512xf32>
    %192 = arith.addf %189, %191 : vector<8x512xf32>
    %c0_41 = arith.constant 0 : index
    %c0_42 = arith.constant 0 : index
    %193 = vector.load %arg12[%c0_41, %c0_42] : memref<8x25xf32, #tpu.memory_space<vmem>>, vector<8x25xf32>
    %c6_i32 = arith.constant 6 : i32
    %194 = tpu.dynamic_rotate %192 by %c6_i32 dim 1 : vector<8x512xf32>, i32 -> vector<8x512xf32>
    %c0_43 = arith.constant 0 : index
    %c0_44 = arith.constant 0 : index
    %195 = vector.load %arg4[%c0_43, %c0_44] : memref<5x512xf32, #tpu.memory_space<vmem>>, vector<1x512xf32>
    %196 = vector.broadcast %195 : vector<1x512xf32> to vector<8x512xf32>
    %197 = arith.mulf %194, %196 : vector<8x512xf32>
    %c3_i32 = arith.constant 3 : i32
    %198 = tpu.dynamic_rotate %192 by %c3_i32 dim 1 : vector<8x512xf32>, i32 -> vector<8x512xf32>
    %c1_45 = arith.constant 1 : index
    %c0_46 = arith.constant 0 : index
    %199 = vector.load %arg4[%c1_45, %c0_46] : memref<5x512xf32, #tpu.memory_space<vmem>>, vector<1x512xf32>
    %200 = vector.broadcast %199 : vector<1x512xf32> to vector<8x512xf32>
    %201 = arith.mulf %198, %200 : vector<8x512xf32>
    %c509_i32 = arith.constant 509 : i32
    %202 = tpu.dynamic_rotate %192 by %c509_i32 dim 1 : vector<8x512xf32>, i32 -> vector<8x512xf32>
    %c3_47 = arith.constant 3 : index
    %c0_48 = arith.constant 0 : index
    %203 = vector.load %arg4[%c3_47, %c0_48] : memref<5x512xf32, #tpu.memory_space<vmem>>, vector<1x512xf32>
    %204 = vector.broadcast %203 : vector<1x512xf32> to vector<8x512xf32>
    %205 = arith.mulf %202, %204 : vector<8x512xf32>
    %c506_i32 = arith.constant 506 : i32
    %206 = tpu.dynamic_rotate %192 by %c506_i32 dim 1 : vector<8x512xf32>, i32 -> vector<8x512xf32>
    %c4_49 = arith.constant 4 : index
    %c0_50 = arith.constant 0 : index
    %207 = vector.load %arg4[%c4_49, %c0_50] : memref<5x512xf32, #tpu.memory_space<vmem>>, vector<1x512xf32>
    %208 = vector.broadcast %207 : vector<1x512xf32> to vector<8x512xf32>
    %209 = arith.mulf %206, %208 : vector<8x512xf32>
    %210 = vector.extract_strided_slice %193 {offsets = [0, 0], sizes = [8, 1], strides = [1, 1]} : vector<8x25xf32> to vector<8x1xf32>
    %211 = vector.broadcast %210 : vector<8x1xf32> to vector<8x512xf32>
    %212 = arith.mulf %211, %197 : vector<8x512xf32>
    %213 = vector.extract_strided_slice %193 {offsets = [0, 1], sizes = [8, 1], strides = [1, 1]} : vector<8x25xf32> to vector<8x1xf32>
    %214 = vector.broadcast %213 : vector<8x1xf32> to vector<8x512xf32>
    %215 = arith.mulf %214, %201 : vector<8x512xf32>
    %216 = arith.addf %212, %215 : vector<8x512xf32>
    %217 = vector.extract_strided_slice %193 {offsets = [0, 2], sizes = [8, 1], strides = [1, 1]} : vector<8x25xf32> to vector<8x1xf32>
    %218 = vector.broadcast %217 : vector<8x1xf32> to vector<8x512xf32>
    %219 = arith.mulf %218, %192 : vector<8x512xf32>
    %220 = arith.addf %216, %219 : vector<8x512xf32>
    %221 = vector.extract_strided_slice %193 {offsets = [0, 3], sizes = [8, 1], strides = [1, 1]} : vector<8x25xf32> to vector<8x1xf32>
    %222 = vector.broadcast %221 : vector<8x1xf32> to vector<8x512xf32>
    %223 = arith.mulf %222, %205 : vector<8x512xf32>
    %224 = arith.addf %220, %223 : vector<8x512xf32>
    %225 = vector.extract_strided_slice %193 {offsets = [0, 4], sizes = [8, 1], strides = [1, 1]} : vector<8x25xf32> to vector<8x1xf32>
    %226 = vector.broadcast %225 : vector<8x1xf32> to vector<8x512xf32>
    %227 = arith.mulf %226, %209 : vector<8x512xf32>
    %228 = arith.addf %224, %227 : vector<8x512xf32>
    %c96_i32 = arith.constant 96 : i32
    %229 = tpu.dynamic_rotate %228 by %c96_i32 dim 1 : vector<8x512xf32>, i32 -> vector<8x512xf32>
    %c0_51 = arith.constant 0 : index
    %c0_52 = arith.constant 0 : index
    %230 = vector.load %arg5[%c0_51, %c0_52] : memref<5x512xf32, #tpu.memory_space<vmem>>, vector<1x512xf32>
    %231 = vector.broadcast %230 : vector<1x512xf32> to vector<8x512xf32>
    %232 = arith.mulf %229, %231 : vector<8x512xf32>
    %233 = vector.extract_strided_slice %193 {offsets = [0, 5], sizes = [8, 1], strides = [1, 1]} : vector<8x25xf32> to vector<8x1xf32>
    %234 = vector.broadcast %233 : vector<8x1xf32> to vector<8x512xf32>
    %235 = arith.mulf %234, %197 : vector<8x512xf32>
    %236 = vector.extract_strided_slice %193 {offsets = [0, 6], sizes = [8, 1], strides = [1, 1]} : vector<8x25xf32> to vector<8x1xf32>
    %237 = vector.broadcast %236 : vector<8x1xf32> to vector<8x512xf32>
    %238 = arith.mulf %237, %201 : vector<8x512xf32>
    %239 = arith.addf %235, %238 : vector<8x512xf32>
    %240 = vector.extract_strided_slice %193 {offsets = [0, 7], sizes = [8, 1], strides = [1, 1]} : vector<8x25xf32> to vector<8x1xf32>
    %241 = vector.broadcast %240 : vector<8x1xf32> to vector<8x512xf32>
    %242 = arith.mulf %241, %192 : vector<8x512xf32>
    %243 = arith.addf %239, %242 : vector<8x512xf32>
    %244 = vector.extract_strided_slice %193 {offsets = [0, 8], sizes = [8, 1], strides = [1, 1]} : vector<8x25xf32> to vector<8x1xf32>
    %245 = vector.broadcast %244 : vector<8x1xf32> to vector<8x512xf32>
    %246 = arith.mulf %245, %205 : vector<8x512xf32>
    %247 = arith.addf %243, %246 : vector<8x512xf32>
    %248 = vector.extract_strided_slice %193 {offsets = [0, 9], sizes = [8, 1], strides = [1, 1]} : vector<8x25xf32> to vector<8x1xf32>
    %249 = vector.broadcast %248 : vector<8x1xf32> to vector<8x512xf32>
    %250 = arith.mulf %249, %209 : vector<8x512xf32>
    %251 = arith.addf %247, %250 : vector<8x512xf32>
    %c48_i32 = arith.constant 48 : i32
    %252 = tpu.dynamic_rotate %251 by %c48_i32 dim 1 : vector<8x512xf32>, i32 -> vector<8x512xf32>
    %c1_53 = arith.constant 1 : index
    %c0_54 = arith.constant 0 : index
    %253 = vector.load %arg5[%c1_53, %c0_54] : memref<5x512xf32, #tpu.memory_space<vmem>>, vector<1x512xf32>
    %254 = vector.broadcast %253 : vector<1x512xf32> to vector<8x512xf32>
    %255 = arith.mulf %252, %254 : vector<8x512xf32>
    %256 = arith.addf %232, %255 : vector<8x512xf32>
    %257 = vector.extract_strided_slice %193 {offsets = [0, 10], sizes = [8, 1], strides = [1, 1]} : vector<8x25xf32> to vector<8x1xf32>
    %258 = vector.broadcast %257 : vector<8x1xf32> to vector<8x512xf32>
    %259 = arith.mulf %258, %197 : vector<8x512xf32>
    %260 = vector.extract_strided_slice %193 {offsets = [0, 11], sizes = [8, 1], strides = [1, 1]} : vector<8x25xf32> to vector<8x1xf32>
    %261 = vector.broadcast %260 : vector<8x1xf32> to vector<8x512xf32>
    %262 = arith.mulf %261, %201 : vector<8x512xf32>
    %263 = arith.addf %259, %262 : vector<8x512xf32>
    %264 = vector.extract_strided_slice %193 {offsets = [0, 12], sizes = [8, 1], strides = [1, 1]} : vector<8x25xf32> to vector<8x1xf32>
    %265 = vector.broadcast %264 : vector<8x1xf32> to vector<8x512xf32>
    %266 = arith.mulf %265, %192 : vector<8x512xf32>
    %267 = arith.addf %263, %266 : vector<8x512xf32>
    %268 = vector.extract_strided_slice %193 {offsets = [0, 13], sizes = [8, 1], strides = [1, 1]} : vector<8x25xf32> to vector<8x1xf32>
    %269 = vector.broadcast %268 : vector<8x1xf32> to vector<8x512xf32>
    %270 = arith.mulf %269, %205 : vector<8x512xf32>
    %271 = arith.addf %267, %270 : vector<8x512xf32>
    %272 = vector.extract_strided_slice %193 {offsets = [0, 14], sizes = [8, 1], strides = [1, 1]} : vector<8x25xf32> to vector<8x1xf32>
    %273 = vector.broadcast %272 : vector<8x1xf32> to vector<8x512xf32>
    %274 = arith.mulf %273, %209 : vector<8x512xf32>
    %275 = arith.addf %271, %274 : vector<8x512xf32>
    %276 = arith.addf %256, %275 : vector<8x512xf32>
    %277 = vector.extract_strided_slice %193 {offsets = [0, 15], sizes = [8, 1], strides = [1, 1]} : vector<8x25xf32> to vector<8x1xf32>
    %278 = vector.broadcast %277 : vector<8x1xf32> to vector<8x512xf32>
    %279 = arith.mulf %278, %197 : vector<8x512xf32>
    %280 = vector.extract_strided_slice %193 {offsets = [0, 16], sizes = [8, 1], strides = [1, 1]} : vector<8x25xf32> to vector<8x1xf32>
    %281 = vector.broadcast %280 : vector<8x1xf32> to vector<8x512xf32>
    %282 = arith.mulf %281, %201 : vector<8x512xf32>
    %283 = arith.addf %279, %282 : vector<8x512xf32>
    %284 = vector.extract_strided_slice %193 {offsets = [0, 17], sizes = [8, 1], strides = [1, 1]} : vector<8x25xf32> to vector<8x1xf32>
    %285 = vector.broadcast %284 : vector<8x1xf32> to vector<8x512xf32>
    %286 = arith.mulf %285, %192 : vector<8x512xf32>
    %287 = arith.addf %283, %286 : vector<8x512xf32>
    %288 = vector.extract_strided_slice %193 {offsets = [0, 18], sizes = [8, 1], strides = [1, 1]} : vector<8x25xf32> to vector<8x1xf32>
    %289 = vector.broadcast %288 : vector<8x1xf32> to vector<8x512xf32>
    %290 = arith.mulf %289, %205 : vector<8x512xf32>
    %291 = arith.addf %287, %290 : vector<8x512xf32>
    %292 = vector.extract_strided_slice %193 {offsets = [0, 19], sizes = [8, 1], strides = [1, 1]} : vector<8x25xf32> to vector<8x1xf32>
    %293 = vector.broadcast %292 : vector<8x1xf32> to vector<8x512xf32>
    %294 = arith.mulf %293, %209 : vector<8x512xf32>
    %295 = arith.addf %291, %294 : vector<8x512xf32>
    %c464_i32 = arith.constant 464 : i32
    %296 = tpu.dynamic_rotate %295 by %c464_i32 dim 1 : vector<8x512xf32>, i32 -> vector<8x512xf32>
    %c3_55 = arith.constant 3 : index
    %c0_56 = arith.constant 0 : index
    %297 = vector.load %arg5[%c3_55, %c0_56] : memref<5x512xf32, #tpu.memory_space<vmem>>, vector<1x512xf32>
    %298 = vector.broadcast %297 : vector<1x512xf32> to vector<8x512xf32>
    %299 = arith.mulf %296, %298 : vector<8x512xf32>
    %300 = arith.addf %276, %299 : vector<8x512xf32>
    %301 = vector.extract_strided_slice %193 {offsets = [0, 20], sizes = [8, 1], strides = [1, 1]} : vector<8x25xf32> to vector<8x1xf32>
    %302 = vector.broadcast %301 : vector<8x1xf32> to vector<8x512xf32>
    %303 = arith.mulf %302, %197 : vector<8x512xf32>
    %304 = vector.extract_strided_slice %193 {offsets = [0, 21], sizes = [8, 1], strides = [1, 1]} : vector<8x25xf32> to vector<8x1xf32>
    %305 = vector.broadcast %304 : vector<8x1xf32> to vector<8x512xf32>
    %306 = arith.mulf %305, %201 : vector<8x512xf32>
    %307 = arith.addf %303, %306 : vector<8x512xf32>
    %308 = vector.extract_strided_slice %193 {offsets = [0, 22], sizes = [8, 1], strides = [1, 1]} : vector<8x25xf32> to vector<8x1xf32>
    %309 = vector.broadcast %308 : vector<8x1xf32> to vector<8x512xf32>
    %310 = arith.mulf %309, %192 : vector<8x512xf32>
    %311 = arith.addf %307, %310 : vector<8x512xf32>
    %312 = vector.extract_strided_slice %193 {offsets = [0, 23], sizes = [8, 1], strides = [1, 1]} : vector<8x25xf32> to vector<8x1xf32>
    %313 = vector.broadcast %312 : vector<8x1xf32> to vector<8x512xf32>
    %314 = arith.mulf %313, %205 : vector<8x512xf32>
    %315 = arith.addf %311, %314 : vector<8x512xf32>
    %316 = vector.extract_strided_slice %193 {offsets = [0, 24], sizes = [8, 1], strides = [1, 1]} : vector<8x25xf32> to vector<8x1xf32>
    %317 = vector.broadcast %316 : vector<8x1xf32> to vector<8x512xf32>
    %318 = arith.mulf %317, %209 : vector<8x512xf32>
    %319 = arith.addf %315, %318 : vector<8x512xf32>
    %c416_i32 = arith.constant 416 : i32
    %320 = tpu.dynamic_rotate %319 by %c416_i32 dim 1 : vector<8x512xf32>, i32 -> vector<8x512xf32>
    %c4_57 = arith.constant 4 : index
    %c0_58 = arith.constant 0 : index
    %321 = vector.load %arg5[%c4_57, %c0_58] : memref<5x512xf32, #tpu.memory_space<vmem>>, vector<1x512xf32>
    %322 = vector.broadcast %321 : vector<1x512xf32> to vector<8x512xf32>
    %323 = arith.mulf %320, %322 : vector<8x512xf32>
    %324 = arith.addf %300, %323 : vector<8x512xf32>
    %c0_59 = arith.constant 0 : index
    %c0_60 = arith.constant 0 : index
    %325 = vector.load %arg13[%c0_59, %c0_60] : memref<8x1xf32, #tpu.memory_space<vmem>>, vector<8x1xf32>
    %326 = vector.broadcast %325 : vector<8x1xf32> to vector<8x512xf32>
    %327 = arith.addf %324, %326 : vector<8x512xf32>
    %c0_61 = arith.constant 0 : index
    %c0_62 = arith.constant 0 : index
    %328 = vector.load %arg14[%c0_61, %c0_62] : memref<8x8xf32, #tpu.memory_space<vmem>>, vector<8x8xf32>
    %cst_63 = arith.constant dense<0.000000e+00> : vector<8x512xf32>
    %329 = tpu.matmul %328, %327, %cst_63 {dimension_numbers = #tpu.dot_dimension_numbers<[1], [0], [0], [1], [0, 0, 1, 1], [], []>} : vector<8x8xf32>, vector<8x512xf32>, vector<8x512xf32> -> vector<8x512xf32>
    %c0_64 = arith.constant 0 : index
    %c0_65 = arith.constant 0 : index
    %330 = vector.load %arg15[%c0_64, %c0_65] : memref<8x1xf32, #tpu.memory_space<vmem>>, vector<8x1xf32>
    %331 = vector.broadcast %330 : vector<8x1xf32> to vector<8x512xf32>
    %332 = arith.addf %329, %331 : vector<8x512xf32>
    %c0_66 = arith.constant 0 : index
    %c0_67 = arith.constant 0 : index
    %333 = vector.load %arg6[%c0_66, %c0_67] : memref<512x2xf32, #tpu.memory_space<vmem>>, vector<512x2xf32>
    %cst_68 = arith.constant dense<0.000000e+00> : vector<8x2xf32>
    %334 = tpu.matmul %57, %333, %cst_68 {dimension_numbers = #tpu.dot_dimension_numbers<[1], [0], [0], [1], [0, 0, 1, 1], [], []>} : vector<8x512xf32>, vector<512x2xf32>, vector<8x2xf32> -> vector<8x2xf32>
    %cst_69 = arith.constant 3.906250e-03 : f32
    %335 = vector.broadcast %cst_69 : f32 to vector<8x2xf32>
    %336 = arith.mulf %334, %335 : vector<8x2xf32>
    %c0_70 = arith.constant 0 : index
    %c0_71 = arith.constant 0 : index
    %337 = vector.load %arg16[%c0_70, %c0_71] : memref<2x8xf32, #tpu.memory_space<vmem>>, vector<2x8xf32>
    %cst_72 = arith.constant dense<0.000000e+00> : vector<2x2xf32>
    %338 = tpu.matmul %337, %336, %cst_72 {dimension_numbers = #tpu.dot_dimension_numbers<[1], [0], [0], [1], [0, 0, 1, 1], [], []>} : vector<2x8xf32>, vector<8x2xf32>, vector<2x2xf32> -> vector<2x2xf32>
    %cst_73 = arith.constant 0.000000e+00 : f32
    %339 = vector.broadcast %cst_73 : f32 to vector<2x2xf32>
    %340 = arith.maximumf %338, %339 : vector<2x2xf32>
    %c0_74 = arith.constant 0 : index
    %c0_75 = arith.constant 0 : index
    %341 = vector.load %arg17[%c0_74, %c0_75] : memref<8x2xf32, #tpu.memory_space<vmem>>, vector<8x2xf32>
    %cst_76 = arith.constant dense<0.000000e+00> : vector<8x2xf32>
    %342 = tpu.matmul %341, %340, %cst_76 {dimension_numbers = #tpu.dot_dimension_numbers<[1], [0], [0], [1], [0, 0, 1, 1], [], []>} : vector<8x2xf32>, vector<2x2xf32>, vector<8x2xf32> -> vector<8x2xf32>
    %cst_77 = arith.constant 0.000000e+00 : f32
    %343 = vector.broadcast %cst_77 : f32 to vector<8x2xf32>
    %344 = arith.subf %343, %342 : vector<8x2xf32>
    %345 = math.exp %344 : vector<8x2xf32>
    %cst_78 = arith.constant 1.000000e+00 : f32
    %346 = vector.broadcast %cst_78 : f32 to vector<8x2xf32>
    %347 = arith.addf %346, %345 : vector<8x2xf32>
    %348 = tpu.reciprocal %347 {approx = true} : vector<8x2xf32> -> vector<8x2xf32>
    %349 = arith.mulf %347, %348 : vector<8x2xf32>
    %cst_79 = arith.constant 2.000000e+00 : f32
    %350 = vector.broadcast %cst_79 : f32 to vector<8x2xf32>
    %351 = arith.subf %350, %349 : vector<8x2xf32>
    %352 = arith.mulf %348, %351 : vector<8x2xf32>
    %c0_80 = arith.constant 0 : index
    %c0_81 = arith.constant 0 : index
    %353 = vector.load %arg7[%c0_80, %c0_81] : memref<2x512xf32, #tpu.memory_space<vmem>>, vector<2x512xf32>
    %cst_82 = arith.constant dense<0.000000e+00> : vector<8x512xf32>
    %354 = tpu.matmul %352, %353, %cst_82 {dimension_numbers = #tpu.dot_dimension_numbers<[1], [0], [0], [1], [0, 0, 1, 1], [], []>} : vector<8x2xf32>, vector<2x512xf32>, vector<8x512xf32> -> vector<8x512xf32>
    %355 = arith.mulf %354, %332 : vector<8x512xf32>
    %356 = arith.mulf %355, %57 : vector<8x512xf32>
    %c0_83 = arith.constant 0 : index
    %c0_84 = arith.constant 0 : index
    %357 = vector.load %arg18[%c0_83, %c0_84] : memref<8x8xf32, #tpu.memory_space<vmem>>, vector<8x8xf32>
    %cst_85 = arith.constant dense<0.000000e+00> : vector<8x512xf32>
    %358 = tpu.matmul %357, %356, %cst_85 {dimension_numbers = #tpu.dot_dimension_numbers<[1], [0], [0], [1], [0, 0, 1, 1], [], []>} : vector<8x8xf32>, vector<8x512xf32>, vector<8x512xf32> -> vector<8x512xf32>
    %c0_86 = arith.constant 0 : index
    %c0_87 = arith.constant 0 : index
    %359 = vector.load %arg19[%c0_86, %c0_87] : memref<8x1xf32, #tpu.memory_space<vmem>>, vector<8x1xf32>
    %360 = vector.broadcast %359 : vector<8x1xf32> to vector<8x512xf32>
    %361 = arith.addf %358, %360 : vector<8x512xf32>
    %c0_88 = arith.constant 0 : index
    %c0_89 = arith.constant 0 : index
    %c0_90 = arith.constant 0 : index
    %362 = vector.load %arg1[%c0_88, %c0_89, %c0_90] : memref<1x8x512xf32, #tpu.memory_space<vmem>>, vector<1x8x512xf32>
    %363 = vector.shape_cast %362 : vector<1x8x512xf32> to vector<8x512xf32>
    %364 = arith.addf %361, %363 : vector<8x512xf32>
    %c0_91 = arith.constant 0 : index
    %c0_92 = arith.constant 0 : index
    %c0_93 = arith.constant 0 : index
    %365 = vector.load %arg20[%c0_91, %c0_92, %c0_93] : memref<1x8x512xf32, #tpu.memory_space<vmem>>, vector<1x8x512xf32>
    %366 = vector.shape_cast %365 : vector<1x8x512xf32> to vector<8x512xf32>
    %367 = vector.shape_cast %364 : vector<8x512xf32> to vector<1x8x512xf32>
    tpu.vector_store %arg20[%c0_91, %c0_92, %c0_93], %367 {strides = array<i32>} : memref<1x8x512xf32, #tpu.memory_space<vmem>>, vector<1x8x512xf32>,
    return
  }
  func.func @transform_0(%arg0: i32) -> (i32, i32, i32) {
    %c0_i32 = arith.constant 0 : i32
    %c0_i32_0 = arith.constant 0 : i32
    %c0_i32_1 = arith.constant 0 : i32
    return %arg0, %c0_i32, %c0_i32_0 : i32, i32, i32
  }
  func.func @transform_1(%arg0: i32) -> (i32, i32) {
    %c0_i32 = arith.constant 0 : i32
    %c0_i32_0 = arith.constant 0 : i32
    %c0_i32_1 = arith.constant 0 : i32
    return %c0_i32, %c0_i32_0 : i32, i32
  }
  func.func @transform_2(%arg0: i32) -> (i32, i32) {
    %c0_i32 = arith.constant 0 : i32
    %c0_i32_0 = arith.constant 0 : i32
    %c0_i32_1 = arith.constant 0 : i32
    return %c0_i32, %c0_i32_0 : i32, i32
  }
  func.func @transform_3(%arg0: i32) -> (i32, i32) {
    %c0_i32 = arith.constant 0 : i32
    %c0_i32_0 = arith.constant 0 : i32
    %c0_i32_1 = arith.constant 0 : i32
    return %c0_i32, %c0_i32_0 : i32, i32
  }
  func.func @transform_4(%arg0: i32) -> (i32, i32) {
    %c0_i32 = arith.constant 0 : i32
    %c0_i32_0 = arith.constant 0 : i32
    %c0_i32_1 = arith.constant 0 : i32
    return %c0_i32, %c0_i32_0 : i32, i32
  }
  func.func @transform_5(%arg0: i32) -> (i32, i32) {
    %c0_i32 = arith.constant 0 : i32
    %c0_i32_0 = arith.constant 0 : i32
    %c0_i32_1 = arith.constant 0 : i32
    return %c0_i32, %c0_i32_0 : i32, i32
  }
  func.func @transform_6(%arg0: i32) -> (i32, i32) {
    %c0_i32 = arith.constant 0 : i32
    %c0_i32_0 = arith.constant 0 : i32
    %c0_i32_1 = arith.constant 0 : i32
    return %c0_i32, %c0_i32_0 : i32, i32
  }
  func.func @transform_7(%arg0: i32) -> (i32, i32) {
    %c0_i32 = arith.constant 0 : i32
    %c0_i32_0 = arith.constant 0 : i32
    %c0_i32_1 = arith.constant 0 : i32
    return %c0_i32, %c0_i32_0 : i32, i32
  }
  func.func @transform_8(%arg0: i32) -> (i32, i32) {
    %c0_i32 = arith.constant 0 : i32
    %c0_i32_0 = arith.constant 0 : i32
    %c0_i32_1 = arith.constant 0 : i32
    return %c0_i32, %c0_i32_0 : i32, i32
  }
  func.func @transform_9(%arg0: i32) -> (i32, i32) {
    %c0_i32 = arith.constant 0 : i32
    %c0_i32_0 = arith.constant 0 : i32
    %c0_i32_1 = arith.constant 0 : i32
    return %c0_i32, %c0_i32_0 : i32, i32
  }
  func.func @transform_10(%arg0: i32) -> (i32, i32) {
    %c0_i32 = arith.constant 0 : i32
    %c0_i32_0 = arith.constant 0 : i32
    %c0_i32_1 = arith.constant 0 : i32
    return %c0_i32, %c0_i32_0 : i32, i32
  }
  func.func @transform_11(%arg0: i32) -> (i32, i32) {
    %c0_i32 = arith.constant 0 : i32
    %c0_i32_0 = arith.constant 0 : i32
    %c0_i32_1 = arith.constant 0 : i32
    return %c0_i32, %c0_i32_0 : i32, i32
  }
  func.func @transform_12(%arg0: i32) -> (i32, i32) {
    %c0_i32 = arith.constant 0 : i32
    %c0_i32_0 = arith.constant 0 : i32
    %c0_i32_1 = arith.constant 0 : i32
    return %c0_i32, %c0_i32_0 : i32, i32
  }
  func.func @transform_13(%arg0: i32) -> (i32, i32) {
    %c0_i32 = arith.constant 0 : i32
    %c0_i32_0 = arith.constant 0 : i32
    %c0_i32_1 = arith.constant 0 : i32
    return %c0_i32, %c0_i32_0 : i32, i32
  }
  func.func @transform_14(%arg0: i32) -> (i32, i32) {
    %c0_i32 = arith.constant 0 : i32
    %c0_i32_0 = arith.constant 0 : i32
    %c0_i32_1 = arith.constant 0 : i32
    return %c0_i32, %c0_i32_0 : i32, i32
  }
  func.func @transform_15(%arg0: i32) -> (i32, i32) {
    %c0_i32 = arith.constant 0 : i32
    %c0_i32_0 = arith.constant 0 : i32
    %c0_i32_1 = arith.constant 0 : i32
    return %c0_i32, %c0_i32_0 : i32, i32
  }
  func.func @transform_16(%arg0: i32) -> (i32, i32) {
    %c0_i32 = arith.constant 0 : i32
    %c0_i32_0 = arith.constant 0 : i32
    %c0_i32_1 = arith.constant 0 : i32
    return %c0_i32, %c0_i32_0 : i32, i32
  }
  func.func @transform_17(%arg0: i32) -> (i32, i32) {
    %c0_i32 = arith.constant 0 : i32
    %c0_i32_0 = arith.constant 0 : i32
    %c0_i32_1 = arith.constant 0 : i32
    return %c0_i32, %c0_i32_0 : i32, i32
  }
  func.func @transform_18(%arg0: i32) -> (i32, i32) {
    %c0_i32 = arith.constant 0 : i32
    %c0_i32_0 = arith.constant 0 : i32
    %c0_i32_1 = arith.constant 0 : i32
    return %c0_i32, %c0_i32_0 : i32, i32
  }
  func.func @transform_19(%arg0: i32) -> (i32, i32, i32) {
    %c0_i32 = arith.constant 0 : i32
    %c0_i32_0 = arith.constant 0 : i32
    %c0_i32_1 = arith.constant 0 : i32
    return %arg0, %c0_i32, %c0_i32_0 : i32, i32, i32
  }
}

module attributes {stable_mosaic.version = 11 : i64} {
  func.func @dual_attention_kernel(%arg0: i32, %arg1: memref<1x8x512xf32, #tpu.memory_space<vmem>>, %arg2: memref<5x512xf32, #tpu.memory_space<vmem>>, %arg3: memref<5x512xf32, #tpu.memory_space<vmem>>, %arg4: memref<5x512xf32, #tpu.memory_space<vmem>>, %arg5: memref<5x512xf32, #tpu.memory_space<vmem>>, %arg6: memref<512x2xf32, #tpu.memory_space<vmem>>, %arg7: memref<2x512xf32, #tpu.memory_space<vmem>>, %arg8: memref<8x8xf32, #tpu.memory_space<vmem>>, %arg9: memref<8x1xf32, #tpu.memory_space<vmem>>, %arg10: memref<8x25xf32, #tpu.memory_space<vmem>>, %arg11: memref<8x1xf32, #tpu.memory_space<vmem>>, %arg12: memref<8x25xf32, #tpu.memory_space<vmem>>, %arg13: memref<8x1xf32, #tpu.memory_space<vmem>>, %arg14: memref<8x8xf32, #tpu.memory_space<vmem>>, %arg15: memref<8x1xf32, #tpu.memory_space<vmem>>, %arg16: memref<2x8xf32, #tpu.memory_space<vmem>>, %arg17: memref<8x2xf32, #tpu.memory_space<vmem>>, %arg18: memref<8x8xf32, #tpu.memory_space<vmem>>, %arg19: memref<8x1xf32, #tpu.memory_space<vmem>>, %arg20: memref<1x8x512xf32, #tpu.memory_space<vmem>>) attributes {dimension_semantics = [#tpu.dimension_semantics<parallel>], iteration_bounds = array<i64: 1>, scalar_prefetch = 0 : i64, scratch_operands = 0 : i64, tpu.core_type = #tpu.core_type<tc>, window_params = [{transform_indices = @transform_0, window_bounds = array<i64: 1, 8, 512>}, {pipeline_mode = #tpu.pipeline_mode<synchronous>, transform_indices = @transform_1, window_bounds = array<i64: 5, 512>}, {pipeline_mode = #tpu.pipeline_mode<synchronous>, transform_indices = @transform_2, window_bounds = array<i64: 5, 512>}, {pipeline_mode = #tpu.pipeline_mode<synchronous>, transform_indices = @transform_3, window_bounds = array<i64: 5, 512>}, {pipeline_mode = #tpu.pipeline_mode<synchronous>, transform_indices = @transform_4, window_bounds = array<i64: 5, 512>}, {pipeline_mode = #tpu.pipeline_mode<synchronous>, transform_indices = @transform_5, window_bounds = array<i64: 512, 2>}, {pipeline_mode = #tpu.pipeline_mode<synchronous>, transform_indices = @transform_6, window_bounds = array<i64: 2, 512>}, {pipeline_mode = #tpu.pipeline_mode<synchronous>, transform_indices = @transform_7, window_bounds = array<i64: 8, 8>}, {pipeline_mode = #tpu.pipeline_mode<synchronous>, transform_indices = @transform_8, window_bounds = array<i64: 8, 1>}, {pipeline_mode = #tpu.pipeline_mode<synchronous>, transform_indices = @transform_9, window_bounds = array<i64: 8, 25>}, {pipeline_mode = #tpu.pipeline_mode<synchronous>, transform_indices = @transform_10, window_bounds = array<i64: 8, 1>}, {pipeline_mode = #tpu.pipeline_mode<synchronous>, transform_indices = @transform_11, window_bounds = array<i64: 8, 25>}, {pipeline_mode = #tpu.pipeline_mode<synchronous>, transform_indices = @transform_12, window_bounds = array<i64: 8, 1>}, {pipeline_mode = #tpu.pipeline_mode<synchronous>, transform_indices = @transform_13, window_bounds = array<i64: 8, 8>}, {pipeline_mode = #tpu.pipeline_mode<synchronous>, transform_indices = @transform_14, window_bounds = array<i64: 8, 1>}, {pipeline_mode = #tpu.pipeline_mode<synchronous>, transform_indices = @transform_15, window_bounds = array<i64: 2, 8>}, {pipeline_mode = #tpu.pipeline_mode<synchronous>, transform_indices = @transform_16, window_bounds = array<i64: 8, 2>}, {pipeline_mode = #tpu.pipeline_mode<synchronous>, transform_indices = @transform_17, window_bounds = array<i64: 8, 8>}, {pipeline_mode = #tpu.pipeline_mode<synchronous>, transform_indices = @transform_18, window_bounds = array<i64: 8, 1>}, {transform_indices = @transform_19, window_bounds = array<i64: 1, 8, 512>}]} {
    %c0 = arith.constant 0 : index
    %c0_0 = arith.constant 0 : index
    %0 = vector.load %arg8[%c0, %c0_0] : memref<8x8xf32, #tpu.memory_space<vmem>>, vector<8x8xf32>
    %c0_1 = arith.constant 0 : index
    %c0_2 = arith.constant 0 : index
    %c0_3 = arith.constant 0 : index
    %1 = vector.load %arg1[%c0_1, %c0_2, %c0_3] : memref<1x8x512xf32, #tpu.memory_space<vmem>>, vector<1x8x512xf32>
    %2 = vector.shape_cast %1 : vector<1x8x512xf32> to vector<8x512xf32>
    %cst = arith.constant dense<0.000000e+00> : vector<8x512xf32>
    %3 = tpu.matmul %0, %2, %cst {dimension_numbers = #tpu.dot_dimension_numbers<[1], [0], [0], [1], [0, 0, 1, 1], [], []>} : vector<8x8xf32>, vector<8x512xf32>, vector<8x512xf32> -> vector<8x512xf32>
    %c0_4 = arith.constant 0 : index
    %c0_5 = arith.constant 0 : index
    %4 = vector.load %arg9[%c0_4, %c0_5] : memref<8x1xf32, #tpu.memory_space<vmem>>, vector<8x1xf32>
    %5 = vector.broadcast %4 : vector<8x1xf32> to vector<8x512xf32>
    %6 = arith.addf %3, %5 : vector<8x512xf32>
    %cst_6 = arith.constant 5.000000e-01 : f32
    %7 = vector.broadcast %cst_6 : f32 to vector<8x512xf32>
    %8 = arith.mulf %7, %6 : vector<8x512xf32>
    %cst_7 = arith.constant 0.707106769 : f32
    %9 = vector.broadcast %cst_7 : f32 to vector<8x512xf32>
    %10 = arith.mulf %6, %9 : vector<8x512xf32>
    %cst_8 = arith.constant -3.8325069 : f32
    %cst_9 = arith.constant 3.8325069 : f32
    %11 = vector.broadcast %cst_8 : f32 to vector<8x512xf32>
    %12 = arith.maximumf %11, %10 : vector<8x512xf32>
    %13 = vector.broadcast %cst_9 : f32 to vector<8x512xf32>
    %14 = arith.minimumf %13, %12 : vector<8x512xf32>
    %15 = arith.mulf %14, %14 : vector<8x512xf32>
    %cst_10 = arith.constant -2.72614237E-10 : f32
    %16 = vector.broadcast %cst_10 : f32 to vector<8x512xf32>
    %17 = arith.mulf %15, %16 : vector<8x512xf32>
    %cst_11 = arith.constant 2.77068146E-8 : f32
    %18 = vector.broadcast %cst_11 : f32 to vector<8x512xf32>
    %19 = arith.addf %17, %18 : vector<8x512xf32>
    %20 = arith.mulf %19, %15 : vector<8x512xf32>
    %cst_12 = arith.constant -2.10102394E-6 : f32
    %21 = vector.broadcast %cst_12 : f32 to vector<8x512xf32>
    %22 = arith.addf %20, %21 : vector<8x512xf32>
    %23 = arith.mulf %22, %15 : vector<8x512xf32>
    %cst_13 = arith.constant -5.69250624E-5 : f32
    %24 = vector.broadcast %cst_13 : f32 to vector<8x512xf32>
    %25 = arith.addf %23, %24 : vector<8x512xf32>
    %26 = arith.mulf %25, %15 : vector<8x512xf32>
    %cst_14 = arith.constant -7.34990637E-4 : f32
    %27 = vector.broadcast %cst_14 : f32 to vector<8x512xf32>
    %28 = arith.addf %26, %27 : vector<8x512xf32>
    %29 = arith.mulf %28, %15 : vector<8x512xf32>
    %cst_15 = arith.constant -2.954600e-03 : f32
    %30 = vector.broadcast %cst_15 : f32 to vector<8x512xf32>
    %31 = arith.addf %29, %30 : vector<8x512xf32>
    %32 = arith.mulf %31, %15 : vector<8x512xf32>
    %cst_16 = arith.constant -0.0160960332 : f32
    %33 = vector.broadcast %cst_16 : f32 to vector<8x512xf32>
    %34 = arith.addf %32, %33 : vector<8x512xf32>
    %35 = arith.mulf %34, %14 : vector<8x512xf32>
    %cst_17 = arith.constant -1.45660715E-5 : f32
    %36 = vector.broadcast %cst_17 : f32 to vector<8x512xf32>
    %37 = arith.mulf %15, %36 : vector<8x512xf32>
    %cst_18 = arith.constant -2.13374049E-4 : f32
    %38 = vector.broadcast %cst_18 : f32 to vector<8x512xf32>
    %39 = arith.addf %37, %38 : vector<8x512xf32>
    %40 = arith.mulf %39, %15 : vector<8x512xf32>
    %cst_19 = arith.constant -0.00168282702 : f32
    %41 = vector.broadcast %cst_19 : f32 to vector<8x512xf32>
    %42 = arith.addf %40, %41 : vector<8x512xf32>
    %43 = arith.mulf %42, %15 : vector<8x512xf32>
    %cst_20 = arith.constant -0.00737332925 : f32
    %44 = vector.broadcast %cst_20 : f32 to vector<8x512xf32>
    %45 = arith.addf %43, %44 : vector<8x512xf32>
    %46 = arith.mulf %45, %15 : vector<8x512xf32>
    %cst_21 = arith.constant -0.0142647391 : f32
    %47 = vector.broadcast %cst_21 : f32 to vector<8x512xf32>
    %48 = arith.addf %46, %47 : vector<8x512xf32>
    %49 = tpu.reciprocal %48 {approx = true} : vector<8x512xf32> -> vector<8x512xf32>
    %50 = arith.mulf %48, %49 : vector<8x512xf32>
    %cst_22 = arith.constant 2.000000e+00 : f32
    %51 = vector.broadcast %cst_22 : f32 to vector<8x512xf32>
    %52 = arith.subf %51, %50 : vector<8x512xf32>
    %53 = arith.mulf %49, %52 : vector<8x512xf32>
    %54 = arith.mulf %35, %53 : vector<8x512xf32>
    %cst_23 = arith.constant 1.000000e+00 : f32
    %55 = vector.broadcast %cst_23 : f32 to vector<8x512xf32>
    %56 = arith.addf %55, %54 : vector<8x512xf32>
    %57 = arith.mulf %8, %56 : vector<8x512xf32>
    %c0_24 = arith.constant 0 : index
    %c0_25 = arith.constant 0 : index
    %58 = vector.load %arg10[%c0_24, %c0_25] : memref<8x25xf32, #tpu.memory_space<vmem>>, vector<8x25xf32>
    %c2_i32 = arith.constant 2 : i32
    %59 = tpu.dynamic_rotate %57 by %c2_i32 dim 1 : vector<8x512xf32>, i32 -> vector<8x512xf32>
    %c0_26 = arith.constant 0 : index
    %c0_27 = arith.constant 0 : index
    %60 = vector.load %arg2[%c0_26, %c0_27] : memref<5x512xf32, #tpu.memory_space<vmem>>, vector<1x512xf32>
    %61 = vector.broadcast %60 : vector<1x512xf32> to vector<8x512xf32>
    %62 = arith.mulf %59, %61 : vector<8x512xf32>
    %c1_i32 = arith.constant 1 : i32
    %63 = tpu.dynamic_rotate %57 by %c1_i32 dim 1 : vector<8x512xf32>, i32 -> vector<8x512xf32>
    %c1 = arith.constant 1 : index
    %c0_28 = arith.constant 0 : index
    %64 = vector.load %arg2[%c1, %c0_28] : memref<5x512xf32, #tpu.memory_space<vmem>>, vector<1x512xf32>
    %65 = vector.broadcast %64 : vector<1x512xf32> to vector<8x512xf32>
    %66 = arith.mulf %63, %65 : vector<8x512xf32>
    %c511_i32 = arith.constant 511 : i32
    %67 = tpu.dynamic_rotate %57 by %c511_i32 dim 1 : vector<8x512xf32>, i32 -> vector<8x512xf32>
    %c3 = arith.constant 3 : index
    %c0_29 = arith.constant 0 : index
    %68 = vector.load %arg2[%c3, %c0_29] : memref<5x512xf32, #tpu.memory_space<vmem>>, vector<1x512xf32>
    %69 = vector.broadcast %68 : vector<1x512xf32> to vector<8x512xf32>
    %70 = arith.mulf %67, %69 : vector<8x512xf32>
    %c510_i32 = arith.constant 510 : i32
    %71 = tpu.dynamic_rotate %57 by %c510_i32 dim 1 : vector<8x512xf32>, i32 -> vector<8x512xf32>
    %c4 = arith.constant 4 : index
    %c0_30 = arith.constant 0 : index
    %72 = vector.load %arg2[%c4, %c0_30] : memref<5x512xf32, #tpu.memory_space<vmem>>, vector<1x512xf32>
    %73 = vector.broadcast %72 : vector<1x512xf32> to vector<8x512xf32>
    %74 = arith.mulf %71, %73 : vector<8x512xf32>
    %75 = vector.extract_strided_slice %58 {offsets = [0, 0], sizes = [8, 1], strides = [1, 1]} : vector<8x25xf32> to vector<8x1xf32>
    %76 = vector.broadcast %75 : vector<8x1xf32> to vector<8x512xf32>
    %77 = arith.mulf %76, %62 : vector<8x512xf32>
    %78 = vector.extract_strided_slice %58 {offsets = [0, 1], sizes = [8, 1], strides = [1, 1]} : vector<8x25xf32> to vector<8x1xf32>
    %79 = vector.broadcast %78 : vector<8x1xf32> to vector<8x512xf32>
    %80 = arith.mulf %79, %66 : vector<8x512xf32>
    %81 = arith.addf %77, %80 : vector<8x512xf32>
    %82 = vector.extract_strided_slice %58 {offsets = [0, 2], sizes = [8, 1], strides = [1, 1]} : vector<8x25xf32> to vector<8x1xf32>
    %83 = vector.broadcast %82 : vector<8x1xf32> to vector<8x512xf32>
    %84 = arith.mulf %83, %57 : vector<8x512xf32>
    %85 = arith.addf %81, %84 : vector<8x512xf32>
    %86 = vector.extract_strided_slice %58 {offsets = [0, 3], sizes = [8, 1], strides = [1, 1]} : vector<8x25xf32> to vector<8x1xf32>
    %87 = vector.broadcast %86 : vector<8x1xf32> to vector<8x512xf32>
    %88 = arith.mulf %87, %70 : vector<8x512xf32>
    %89 = arith.addf %85, %88 : vector<8x512xf32>
    %90 = vector.extract_strided_slice %58 {offsets = [0, 4], sizes = [8, 1], strides = [1, 1]} : vector<8x25xf32> to vector<8x1xf32>
    %91 = vector.broadcast %90 : vector<8x1xf32> to vector<8x512xf32>
    %92 = arith.mulf %91, %74 : vector<8x512xf32>
    %93 = arith.addf %89, %92 : vector<8x512xf32>
    %c32_i32 = arith.constant 32 : i32
    %94 = tpu.dynamic_rotate %93 by %c32_i32 dim 1 : vector<8x512xf32>, i32 -> vector<8x512xf32>
    %c0_31 = arith.constant 0 : index
    %c0_32 = arith.constant 0 : index
    %95 = vector.load %arg3[%c0_31, %c0_32] : memref<5x512xf32, #tpu.memory_space<vmem>>, vector<1x512xf32>
    %96 = vector.broadcast %95 : vector<1x512xf32> to vector<8x512xf32>
    %97 = arith.mulf %94, %96 : vector<8x512xf32>
    %98 = vector.extract_strided_slice %58 {offsets = [0, 5], sizes = [8, 1], strides = [1, 1]} : vector<8x25xf32> to vector<8x1xf32>
    %99 = vector.broadcast %98 : vector<8x1xf32> to vector<8x512xf32>
    %100 = arith.mulf %99, %62 : vector<8x512xf32>
    %101 = vector.extract_strided_slice %58 {offsets = [0, 6], sizes = [8, 1], strides = [1, 1]} : vector<8x25xf32> to vector<8x1xf32>
    %102 = vector.broadcast %101 : vector<8x1xf32> to vector<8x512xf32>
    %103 = arith.mulf %102, %66 : vector<8x512xf32>
    %104 = arith.addf %100, %103 : vector<8x512xf32>
    %105 = vector.extract_strided_slice %58 {offsets = [0, 7], sizes = [8, 1], strides = [1, 1]} : vector<8x25xf32> to vector<8x1xf32>
    %106 = vector.broadcast %105 : vector<8x1xf32> to vector<8x512xf32>
    %107 = arith.mulf %106, %57 : vector<8x512xf32>
    %108 = arith.addf %104, %107 : vector<8x512xf32>
    %109 = vector.extract_strided_slice %58 {offsets = [0, 8], sizes = [8, 1], strides = [1, 1]} : vector<8x25xf32> to vector<8x1xf32>
    %110 = vector.broadcast %109 : vector<8x1xf32> to vector<8x512xf32>
    %111 = arith.mulf %110, %70 : vector<8x512xf32>
    %112 = arith.addf %108, %111 : vector<8x512xf32>
    %113 = vector.extract_strided_slice %58 {offsets = [0, 9], sizes = [8, 1], strides = [1, 1]} : vector<8x25xf32> to vector<8x1xf32>
    %114 = vector.broadcast %113 : vector<8x1xf32> to vector<8x512xf32>
    %115 = arith.mulf %114, %74 : vector<8x512xf32>
    %116 = arith.addf %112, %115 : vector<8x512xf32>
    %c16_i32 = arith.constant 16 : i32
    %117 = tpu.dynamic_rotate %116 by %c16_i32 dim 1 : vector<8x512xf32>, i32 -> vector<8x512xf32>
    %c1_33 = arith.constant 1 : index
    %c0_34 = arith.constant 0 : index
    %118 = vector.load %arg3[%c1_33, %c0_34] : memref<5x512xf32, #tpu.memory_space<vmem>>, vector<1x512xf32>
    %119 = vector.broadcast %118 : vector<1x512xf32> to vector<8x512xf32>
    %120 = arith.mulf %117, %119 : vector<8x512xf32>
    %121 = arith.addf %97, %120 : vector<8x512xf32>
    %122 = vector.extract_strided_slice %58 {offsets = [0, 10], sizes = [8, 1], strides = [1, 1]} : vector<8x25xf32> to vector<8x1xf32>
    %123 = vector.broadcast %122 : vector<8x1xf32> to vector<8x512xf32>
    %124 = arith.mulf %123, %62 : vector<8x512xf32>
    %125 = vector.extract_strided_slice %58 {offsets = [0, 11], sizes = [8, 1], strides = [1, 1]} : vector<8x25xf32> to vector<8x1xf32>
    %126 = vector.broadcast %125 : vector<8x1xf32> to vector<8x512xf32>
    %127 = arith.mulf %126, %66 : vector<8x512xf32>
    %128 = arith.addf %124, %127 : vector<8x512xf32>
    %129 = vector.extract_strided_slice %58 {offsets = [0, 12], sizes = [8, 1], strides = [1, 1]} : vector<8x25xf32> to vector<8x1xf32>
    %130 = vector.broadcast %129 : vector<8x1xf32> to vector<8x512xf32>
    %131 = arith.mulf %130, %57 : vector<8x512xf32>
    %132 = arith.addf %128, %131 : vector<8x512xf32>
    %133 = vector.extract_strided_slice %58 {offsets = [0, 13], sizes = [8, 1], strides = [1, 1]} : vector<8x25xf32> to vector<8x1xf32>
    %134 = vector.broadcast %133 : vector<8x1xf32> to vector<8x512xf32>
    %135 = arith.mulf %134, %70 : vector<8x512xf32>
    %136 = arith.addf %132, %135 : vector<8x512xf32>
    %137 = vector.extract_strided_slice %58 {offsets = [0, 14], sizes = [8, 1], strides = [1, 1]} : vector<8x25xf32> to vector<8x1xf32>
    %138 = vector.broadcast %137 : vector<8x1xf32> to vector<8x512xf32>
    %139 = arith.mulf %138, %74 : vector<8x512xf32>
    %140 = arith.addf %136, %139 : vector<8x512xf32>
    %141 = arith.addf %121, %140 : vector<8x512xf32>
    %142 = vector.extract_strided_slice %58 {offsets = [0, 15], sizes = [8, 1], strides = [1, 1]} : vector<8x25xf32> to vector<8x1xf32>
    %143 = vector.broadcast %142 : vector<8x1xf32> to vector<8x512xf32>
    %144 = arith.mulf %143, %62 : vector<8x512xf32>
    %145 = vector.extract_strided_slice %58 {offsets = [0, 16], sizes = [8, 1], strides = [1, 1]} : vector<8x25xf32> to vector<8x1xf32>
    %146 = vector.broadcast %145 : vector<8x1xf32> to vector<8x512xf32>
    %147 = arith.mulf %146, %66 : vector<8x512xf32>
    %148 = arith.addf %144, %147 : vector<8x512xf32>
    %149 = vector.extract_strided_slice %58 {offsets = [0, 17], sizes = [8, 1], strides = [1, 1]} : vector<8x25xf32> to vector<8x1xf32>
    %150 = vector.broadcast %149 : vector<8x1xf32> to vector<8x512xf32>
    %151 = arith.mulf %150, %57 : vector<8x512xf32>
    %152 = arith.addf %148, %151 : vector<8x512xf32>
    %153 = vector.extract_strided_slice %58 {offsets = [0, 18], sizes = [8, 1], strides = [1, 1]} : vector<8x25xf32> to vector<8x1xf32>
    %154 = vector.broadcast %153 : vector<8x1xf32> to vector<8x512xf32>
    %155 = arith.mulf %154, %70 : vector<8x512xf32>
    %156 = arith.addf %152, %155 : vector<8x512xf32>
    %157 = vector.extract_strided_slice %58 {offsets = [0, 19], sizes = [8, 1], strides = [1, 1]} : vector<8x25xf32> to vector<8x1xf32>
    %158 = vector.broadcast %157 : vector<8x1xf32> to vector<8x512xf32>
    %159 = arith.mulf %158, %74 : vector<8x512xf32>
    %160 = arith.addf %156, %159 : vector<8x512xf32>
    %c496_i32 = arith.constant 496 : i32
    %161 = tpu.dynamic_rotate %160 by %c496_i32 dim 1 : vector<8x512xf32>, i32 -> vector<8x512xf32>
    %c3_35 = arith.constant 3 : index
    %c0_36 = arith.constant 0 : index
    %162 = vector.load %arg3[%c3_35, %c0_36] : memref<5x512xf32, #tpu.memory_space<vmem>>, vector<1x512xf32>
    %163 = vector.broadcast %162 : vector<1x512xf32> to vector<8x512xf32>
    %164 = arith.mulf %161, %163 : vector<8x512xf32>
    %165 = arith.addf %141, %164 : vector<8x512xf32>
    %166 = vector.extract_strided_slice %58 {offsets = [0, 20], sizes = [8, 1], strides = [1, 1]} : vector<8x25xf32> to vector<8x1xf32>
    %167 = vector.broadcast %166 : vector<8x1xf32> to vector<8x512xf32>
    %168 = arith.mulf %167, %62 : vector<8x512xf32>
    %169 = vector.extract_strided_slice %58 {offsets = [0, 21], sizes = [8, 1], strides = [1, 1]} : vector<8x25xf32> to vector<8x1xf32>
    %170 = vector.broadcast %169 : vector<8x1xf32> to vector<8x512xf32>
    %171 = arith.mulf %170, %66 : vector<8x512xf32>
    %172 = arith.addf %168, %171 : vector<8x512xf32>
    %173 = vector.extract_strided_slice %58 {offsets = [0, 22], sizes = [8, 1], strides = [1, 1]} : vector<8x25xf32> to vector<8x1xf32>
    %174 = vector.broadcast %173 : vector<8x1xf32> to vector<8x512xf32>
    %175 = arith.mulf %174, %57 : vector<8x512xf32>
    %176 = arith.addf %172, %175 : vector<8x512xf32>
    %177 = vector.extract_strided_slice %58 {offsets = [0, 23], sizes = [8, 1], strides = [1, 1]} : vector<8x25xf32> to vector<8x1xf32>
    %178 = vector.broadcast %177 : vector<8x1xf32> to vector<8x512xf32>
    %179 = arith.mulf %178, %70 : vector<8x512xf32>
    %180 = arith.addf %176, %179 : vector<8x512xf32>
    %181 = vector.extract_strided_slice %58 {offsets = [0, 24], sizes = [8, 1], strides = [1, 1]} : vector<8x25xf32> to vector<8x1xf32>
    %182 = vector.broadcast %181 : vector<8x1xf32> to vector<8x512xf32>
    %183 = arith.mulf %182, %74 : vector<8x512xf32>
    %184 = arith.addf %180, %183 : vector<8x512xf32>
    %c480_i32 = arith.constant 480 : i32
    %185 = tpu.dynamic_rotate %184 by %c480_i32 dim 1 : vector<8x512xf32>, i32 -> vector<8x512xf32>
    %c4_37 = arith.constant 4 : index
    %c0_38 = arith.constant 0 : index
    %186 = vector.load %arg3[%c4_37, %c0_38] : memref<5x512xf32, #tpu.memory_space<vmem>>, vector<1x512xf32>
    %187 = vector.broadcast %186 : vector<1x512xf32> to vector<8x512xf32>
    %188 = arith.mulf %185, %187 : vector<8x512xf32>
    %189 = arith.addf %165, %188 : vector<8x512xf32>
    %c0_39 = arith.constant 0 : index
    %c0_40 = arith.constant 0 : index
    %190 = vector.load %arg11[%c0_39, %c0_40] : memref<8x1xf32, #tpu.memory_space<vmem>>, vector<8x1xf32>
    %191 = vector.broadcast %190 : vector<8x1xf32> to vector<8x512xf32>
    %192 = arith.addf %189, %191 : vector<8x512xf32>
    %c0_41 = arith.constant 0 : index
    %c0_42 = arith.constant 0 : index
    %193 = vector.load %arg12[%c0_41, %c0_42] : memref<8x25xf32, #tpu.memory_space<vmem>>, vector<8x25xf32>
    %c6_i32 = arith.constant 6 : i32
    %194 = tpu.dynamic_rotate %192 by %c6_i32 dim 1 : vector<8x512xf32>, i32 -> vector<8x512xf32>
    %c0_43 = arith.constant 0 : index
    %c0_44 = arith.constant 0 : index
    %195 = vector.load %arg4[%c0_43, %c0_44] : memref<5x512xf32, #tpu.memory_space<vmem>>, vector<1x512xf32>
    %196 = vector.broadcast %195 : vector<1x512xf32> to vector<8x512xf32>
    %197 = arith.mulf %194, %196 : vector<8x512xf32>
    %c3_i32 = arith.constant 3 : i32
    %198 = tpu.dynamic_rotate %192 by %c3_i32 dim 1 : vector<8x512xf32>, i32 -> vector<8x512xf32>
    %c1_45 = arith.constant 1 : index
    %c0_46 = arith.constant 0 : index
    %199 = vector.load %arg4[%c1_45, %c0_46] : memref<5x512xf32, #tpu.memory_space<vmem>>, vector<1x512xf32>
    %200 = vector.broadcast %199 : vector<1x512xf32> to vector<8x512xf32>
    %201 = arith.mulf %198, %200 : vector<8x512xf32>
    %c509_i32 = arith.constant 509 : i32
    %202 = tpu.dynamic_rotate %192 by %c509_i32 dim 1 : vector<8x512xf32>, i32 -> vector<8x512xf32>
    %c3_47 = arith.constant 3 : index
    %c0_48 = arith.constant 0 : index
    %203 = vector.load %arg4[%c3_47, %c0_48] : memref<5x512xf32, #tpu.memory_space<vmem>>, vector<1x512xf32>
    %204 = vector.broadcast %203 : vector<1x512xf32> to vector<8x512xf32>
    %205 = arith.mulf %202, %204 : vector<8x512xf32>
    %c506_i32 = arith.constant 506 : i32
    %206 = tpu.dynamic_rotate %192 by %c506_i32 dim 1 : vector<8x512xf32>, i32 -> vector<8x512xf32>
    %c4_49 = arith.constant 4 : index
    %c0_50 = arith.constant 0 : index
    %207 = vector.load %arg4[%c4_49, %c0_50] : memref<5x512xf32, #tpu.memory_space<vmem>>, vector<1x512xf32>
    %208 = vector.broadcast %207 : vector<1x512xf32> to vector<8x512xf32>
    %209 = arith.mulf %206, %208 : vector<8x512xf32>
    %210 = vector.extract_strided_slice %193 {offsets = [0, 0], sizes = [8, 1], strides = [1, 1]} : vector<8x25xf32> to vector<8x1xf32>
    %211 = vector.broadcast %210 : vector<8x1xf32> to vector<8x512xf32>
    %212 = arith.mulf %211, %197 : vector<8x512xf32>
    %213 = vector.extract_strided_slice %193 {offsets = [0, 1], sizes = [8, 1], strides = [1, 1]} : vector<8x25xf32> to vector<8x1xf32>
    %214 = vector.broadcast %213 : vector<8x1xf32> to vector<8x512xf32>
    %215 = arith.mulf %214, %201 : vector<8x512xf32>
    %216 = arith.addf %212, %215 : vector<8x512xf32>
    %217 = vector.extract_strided_slice %193 {offsets = [0, 2], sizes = [8, 1], strides = [1, 1]} : vector<8x25xf32> to vector<8x1xf32>
    %218 = vector.broadcast %217 : vector<8x1xf32> to vector<8x512xf32>
    %219 = arith.mulf %218, %192 : vector<8x512xf32>
    %220 = arith.addf %216, %219 : vector<8x512xf32>
    %221 = vector.extract_strided_slice %193 {offsets = [0, 3], sizes = [8, 1], strides = [1, 1]} : vector<8x25xf32> to vector<8x1xf32>
    %222 = vector.broadcast %221 : vector<8x1xf32> to vector<8x512xf32>
    %223 = arith.mulf %222, %205 : vector<8x512xf32>
    %224 = arith.addf %220, %223 : vector<8x512xf32>
    %225 = vector.extract_strided_slice %193 {offsets = [0, 4], sizes = [8, 1], strides = [1, 1]} : vector<8x25xf32> to vector<8x1xf32>
    %226 = vector.broadcast %225 : vector<8x1xf32> to vector<8x512xf32>
    %227 = arith.mulf %226, %209 : vector<8x512xf32>
    %228 = arith.addf %224, %227 : vector<8x512xf32>
    %c96_i32 = arith.constant 96 : i32
    %229 = tpu.dynamic_rotate %228 by %c96_i32 dim 1 : vector<8x512xf32>, i32 -> vector<8x512xf32>
    %c0_51 = arith.constant 0 : index
    %c0_52 = arith.constant 0 : index
    %230 = vector.load %arg5[%c0_51, %c0_52] : memref<5x512xf32, #tpu.memory_space<vmem>>, vector<1x512xf32>
    %231 = vector.broadcast %230 : vector<1x512xf32> to vector<8x512xf32>
    %232 = arith.mulf %229, %231 : vector<8x512xf32>
    %233 = vector.extract_strided_slice %193 {offsets = [0, 5], sizes = [8, 1], strides = [1, 1]} : vector<8x25xf32> to vector<8x1xf32>
    %234 = vector.broadcast %233 : vector<8x1xf32> to vector<8x512xf32>
    %235 = arith.mulf %234, %197 : vector<8x512xf32>
    %236 = vector.extract_strided_slice %193 {offsets = [0, 6], sizes = [8, 1], strides = [1, 1]} : vector<8x25xf32> to vector<8x1xf32>
    %237 = vector.broadcast %236 : vector<8x1xf32> to vector<8x512xf32>
    %238 = arith.mulf %237, %201 : vector<8x512xf32>
    %239 = arith.addf %235, %238 : vector<8x512xf32>
    %240 = vector.extract_strided_slice %193 {offsets = [0, 7], sizes = [8, 1], strides = [1, 1]} : vector<8x25xf32> to vector<8x1xf32>
    %241 = vector.broadcast %240 : vector<8x1xf32> to vector<8x512xf32>
    %242 = arith.mulf %241, %192 : vector<8x512xf32>
    %243 = arith.addf %239, %242 : vector<8x512xf32>
    %244 = vector.extract_strided_slice %193 {offsets = [0, 8], sizes = [8, 1], strides = [1, 1]} : vector<8x25xf32> to vector<8x1xf32>
    %245 = vector.broadcast %244 : vector<8x1xf32> to vector<8x512xf32>
    %246 = arith.mulf %245, %205 : vector<8x512xf32>
    %247 = arith.addf %243, %246 : vector<8x512xf32>
    %248 = vector.extract_strided_slice %193 {offsets = [0, 9], sizes = [8, 1], strides = [1, 1]} : vector<8x25xf32> to vector<8x1xf32>
    %249 = vector.broadcast %248 : vector<8x1xf32> to vector<8x512xf32>
    %250 = arith.mulf %249, %209 : vector<8x512xf32>
    %251 = arith.addf %247, %250 : vector<8x512xf32>
    %c48_i32 = arith.constant 48 : i32
    %252 = tpu.dynamic_rotate %251 by %c48_i32 dim 1 : vector<8x512xf32>, i32 -> vector<8x512xf32>
    %c1_53 = arith.constant 1 : index
    %c0_54 = arith.constant 0 : index
    %253 = vector.load %arg5[%c1_53, %c0_54] : memref<5x512xf32, #tpu.memory_space<vmem>>, vector<1x512xf32>
    %254 = vector.broadcast %253 : vector<1x512xf32> to vector<8x512xf32>
    %255 = arith.mulf %252, %254 : vector<8x512xf32>
    %256 = arith.addf %232, %255 : vector<8x512xf32>
    %257 = vector.extract_strided_slice %193 {offsets = [0, 10], sizes = [8, 1], strides = [1, 1]} : vector<8x25xf32> to vector<8x1xf32>
    %258 = vector.broadcast %257 : vector<8x1xf32> to vector<8x512xf32>
    %259 = arith.mulf %258, %197 : vector<8x512xf32>
    %260 = vector.extract_strided_slice %193 {offsets = [0, 11], sizes = [8, 1], strides = [1, 1]} : vector<8x25xf32> to vector<8x1xf32>
    %261 = vector.broadcast %260 : vector<8x1xf32> to vector<8x512xf32>
    %262 = arith.mulf %261, %201 : vector<8x512xf32>
    %263 = arith.addf %259, %262 : vector<8x512xf32>
    %264 = vector.extract_strided_slice %193 {offsets = [0, 12], sizes = [8, 1], strides = [1, 1]} : vector<8x25xf32> to vector<8x1xf32>
    %265 = vector.broadcast %264 : vector<8x1xf32> to vector<8x512xf32>
    %266 = arith.mulf %265, %192 : vector<8x512xf32>
    %267 = arith.addf %263, %266 : vector<8x512xf32>
    %268 = vector.extract_strided_slice %193 {offsets = [0, 13], sizes = [8, 1], strides = [1, 1]} : vector<8x25xf32> to vector<8x1xf32>
    %269 = vector.broadcast %268 : vector<8x1xf32> to vector<8x512xf32>
    %270 = arith.mulf %269, %205 : vector<8x512xf32>
    %271 = arith.addf %267, %270 : vector<8x512xf32>
    %272 = vector.extract_strided_slice %193 {offsets = [0, 14], sizes = [8, 1], strides = [1, 1]} : vector<8x25xf32> to vector<8x1xf32>
    %273 = vector.broadcast %272 : vector<8x1xf32> to vector<8x512xf32>
    %274 = arith.mulf %273, %209 : vector<8x512xf32>
    %275 = arith.addf %271, %274 : vector<8x512xf32>
    %276 = arith.addf %256, %275 : vector<8x512xf32>
    %277 = vector.extract_strided_slice %193 {offsets = [0, 15], sizes = [8, 1], strides = [1, 1]} : vector<8x25xf32> to vector<8x1xf32>
    %278 = vector.broadcast %277 : vector<8x1xf32> to vector<8x512xf32>
    %279 = arith.mulf %278, %197 : vector<8x512xf32>
    %280 = vector.extract_strided_slice %193 {offsets = [0, 16], sizes = [8, 1], strides = [1, 1]} : vector<8x25xf32> to vector<8x1xf32>
    %281 = vector.broadcast %280 : vector<8x1xf32> to vector<8x512xf32>
    %282 = arith.mulf %281, %201 : vector<8x512xf32>
    %283 = arith.addf %279, %282 : vector<8x512xf32>
    %284 = vector.extract_strided_slice %193 {offsets = [0, 17], sizes = [8, 1], strides = [1, 1]} : vector<8x25xf32> to vector<8x1xf32>
    %285 = vector.broadcast %284 : vector<8x1xf32> to vector<8x512xf32>
    %286 = arith.mulf %285, %192 : vector<8x512xf32>
    %287 = arith.addf %283, %286 : vector<8x512xf32>
    %288 = vector.extract_strided_slice %193 {offsets = [0, 18], sizes = [8, 1], strides = [1, 1]} : vector<8x25xf32> to vector<8x1xf32>
    %289 = vector.broadcast %288 : vector<8x1xf32> to vector<8x512xf32>
    %290 = arith.mulf %289, %205 : vector<8x512xf32>
    %291 = arith.addf %287, %290 : vector<8x512xf32>
    %292 = vector.extract_strided_slice %193 {offsets = [0, 19], sizes = [8, 1], strides = [1, 1]} : vector<8x25xf32> to vector<8x1xf32>
    %293 = vector.broadcast %292 : vector<8x1xf32> to vector<8x512xf32>
    %294 = arith.mulf %293, %209 : vector<8x512xf32>
    %295 = arith.addf %291, %294 : vector<8x512xf32>
    %c464_i32 = arith.constant 464 : i32
    %296 = tpu.dynamic_rotate %295 by %c464_i32 dim 1 : vector<8x512xf32>, i32 -> vector<8x512xf32>
    %c3_55 = arith.constant 3 : index
    %c0_56 = arith.constant 0 : index
    %297 = vector.load %arg5[%c3_55, %c0_56] : memref<5x512xf32, #tpu.memory_space<vmem>>, vector<1x512xf32>
    %298 = vector.broadcast %297 : vector<1x512xf32> to vector<8x512xf32>
    %299 = arith.mulf %296, %298 : vector<8x512xf32>
    %300 = arith.addf %276, %299 : vector<8x512xf32>
    %301 = vector.extract_strided_slice %193 {offsets = [0, 20], sizes = [8, 1], strides = [1, 1]} : vector<8x25xf32> to vector<8x1xf32>
    %302 = vector.broadcast %301 : vector<8x1xf32> to vector<8x512xf32>
    %303 = arith.mulf %302, %197 : vector<8x512xf32>
    %304 = vector.extract_strided_slice %193 {offsets = [0, 21], sizes = [8, 1], strides = [1, 1]} : vector<8x25xf32> to vector<8x1xf32>
    %305 = vector.broadcast %304 : vector<8x1xf32> to vector<8x512xf32>
    %306 = arith.mulf %305, %201 : vector<8x512xf32>
    %307 = arith.addf %303, %306 : vector<8x512xf32>
    %308 = vector.extract_strided_slice %193 {offsets = [0, 22], sizes = [8, 1], strides = [1, 1]} : vector<8x25xf32> to vector<8x1xf32>
    %309 = vector.broadcast %308 : vector<8x1xf32> to vector<8x512xf32>
    %310 = arith.mulf %309, %192 : vector<8x512xf32>
    %311 = arith.addf %307, %310 : vector<8x512xf32>
    %312 = vector.extract_strided_slice %193 {offsets = [0, 23], sizes = [8, 1], strides = [1, 1]} : vector<8x25xf32> to vector<8x1xf32>
    %313 = vector.broadcast %312 : vector<8x1xf32> to vector<8x512xf32>
    %314 = arith.mulf %313, %205 : vector<8x512xf32>
    %315 = arith.addf %311, %314 : vector<8x512xf32>
    %316 = vector.extract_strided_slice %193 {offsets = [0, 24], sizes = [8, 1], strides = [1, 1]} : vector<8x25xf32> to vector<8x1xf32>
    %317 = vector.broadcast %316 : vector<8x1xf32> to vector<8x512xf32>
    %318 = arith.mulf %317, %209 : vector<8x512xf32>
    %319 = arith.addf %315, %318 : vector<8x512xf32>
    %c416_i32 = arith.constant 416 : i32
    %320 = tpu.dynamic_rotate %319 by %c416_i32 dim 1 : vector<8x512xf32>, i32 -> vector<8x512xf32>
    %c4_57 = arith.constant 4 : index
    %c0_58 = arith.constant 0 : index
    %321 = vector.load %arg5[%c4_57, %c0_58] : memref<5x512xf32, #tpu.memory_space<vmem>>, vector<1x512xf32>
    %322 = vector.broadcast %321 : vector<1x512xf32> to vector<8x512xf32>
    %323 = arith.mulf %320, %322 : vector<8x512xf32>
    %324 = arith.addf %300, %323 : vector<8x512xf32>
    %c0_59 = arith.constant 0 : index
    %c0_60 = arith.constant 0 : index
    %325 = vector.load %arg13[%c0_59, %c0_60] : memref<8x1xf32, #tpu.memory_space<vmem>>, vector<8x1xf32>
    %326 = vector.broadcast %325 : vector<8x1xf32> to vector<8x512xf32>
    %327 = arith.addf %324, %326 : vector<8x512xf32>
    %c0_61 = arith.constant 0 : index
    %c0_62 = arith.constant 0 : index
    %328 = vector.load %arg14[%c0_61, %c0_62] : memref<8x8xf32, #tpu.memory_space<vmem>>, vector<8x8xf32>
    %cst_63 = arith.constant dense<0.000000e+00> : vector<8x512xf32>
    %329 = tpu.matmul %328, %327, %cst_63 {dimension_numbers = #tpu.dot_dimension_numbers<[1], [0], [0], [1], [0, 0, 1, 1], [], []>} : vector<8x8xf32>, vector<8x512xf32>, vector<8x512xf32> -> vector<8x512xf32>
    %c0_64 = arith.constant 0 : index
    %c0_65 = arith.constant 0 : index
    %330 = vector.load %arg15[%c0_64, %c0_65] : memref<8x1xf32, #tpu.memory_space<vmem>>, vector<8x1xf32>
    %331 = vector.broadcast %330 : vector<8x1xf32> to vector<8x512xf32>
    %332 = arith.addf %329, %331 : vector<8x512xf32>
    %c0_66 = arith.constant 0 : index
    %c0_67 = arith.constant 0 : index
    %333 = vector.load %arg6[%c0_66, %c0_67] : memref<512x2xf32, #tpu.memory_space<vmem>>, vector<512x2xf32>
    %cst_68 = arith.constant dense<0.000000e+00> : vector<8x2xf32>
    %334 = tpu.matmul %57, %333, %cst_68 {dimension_numbers = #tpu.dot_dimension_numbers<[1], [0], [0], [1], [0, 0, 1, 1], [], []>} : vector<8x512xf32>, vector<512x2xf32>, vector<8x2xf32> -> vector<8x2xf32>
    %cst_69 = arith.constant 3.906250e-03 : f32
    %335 = vector.broadcast %cst_69 : f32 to vector<8x2xf32>
    %336 = arith.mulf %334, %335 : vector<8x2xf32>
    %c0_70 = arith.constant 0 : index
    %c0_71 = arith.constant 0 : index
    %337 = vector.load %arg16[%c0_70, %c0_71] : memref<2x8xf32, #tpu.memory_space<vmem>>, vector<2x8xf32>
    %cst_72 = arith.constant dense<0.000000e+00> : vector<2x2xf32>
    %338 = tpu.matmul %337, %336, %cst_72 {dimension_numbers = #tpu.dot_dimension_numbers<[1], [0], [0], [1], [0, 0, 1, 1], [], []>} : vector<2x8xf32>, vector<8x2xf32>, vector<2x2xf32> -> vector<2x2xf32>
    %cst_73 = arith.constant 0.000000e+00 : f32
    %339 = vector.broadcast %cst_73 : f32 to vector<2x2xf32>
    %340 = arith.maximumf %338, %339 : vector<2x2xf32>
    %c0_74 = arith.constant 0 : index
    %c0_75 = arith.constant 0 : index
    %341 = vector.load %arg17[%c0_74, %c0_75] : memref<8x2xf32, #tpu.memory_space<vmem>>, vector<8x2xf32>
    %cst_76 = arith.constant dense<0.000000e+00> : vector<8x2xf32>
    %342 = tpu.matmul %341, %340, %cst_76 {dimension_numbers = #tpu.dot_dimension_numbers<[1], [0], [0], [1], [0, 0, 1, 1], [], []>} : vector<8x2xf32>, vector<2x2xf32>, vector<8x2xf32> -> vector<8x2xf32>
    %cst_77 = arith.constant 0.000000e+00 : f32
    %343 = vector.broadcast %cst_77 : f32 to vector<8x2xf32>
    %344 = arith.subf %343, %342 : vector<8x2xf32>
    %345 = math.exp %344 : vector<8x2xf32>
    %cst_78 = arith.constant 1.000000e+00 : f32
    %346 = vector.broadcast %cst_78 : f32 to vector<8x2xf32>
    %347 = arith.addf %346, %345 : vector<8x2xf32>
    %348 = tpu.reciprocal %347 {approx = true} : vector<8x2xf32> -> vector<8x2xf32>
    %349 = arith.mulf %347, %348 : vector<8x2xf32>
    %cst_79 = arith.constant 2.000000e+00 : f32
    %350 = vector.broadcast %cst_79 : f32 to vector<8x2xf32>
    %351 = arith.subf %350, %349 : vector<8x2xf32>
    %352 = arith.mulf %348, %351 : vector<8x2xf32>
    %c0_80 = arith.constant 0 : index
    %c0_81 = arith.constant 0 : index
    %353 = vector.load %arg7[%c0_80, %c0_81] : memref<2x512xf32, #tpu.memory_space<vmem>>, vector<2x512xf32>
    %cst_82 = arith.constant dense<0.000000e+00> : vector<8x512xf32>
    %354 = tpu.matmul %352, %353, %cst_82 {dimension_numbers = #tpu.dot_dimension_numbers<[1], [0], [0], [1], [0, 0, 1, 1], [], []>} : vector<8x2xf32>, vector<2x512xf32>, vector<8x512xf32> -> vector<8x512xf32>
    %355 = arith.mulf %354, %332 : vector<8x512xf32>
    %356 = arith.mulf %355, %57 : vector<8x512xf32>
    %c0_83 = arith.constant 0 : index
    %c0_84 = arith.constant 0 : index
    %357 = vector.load %arg18[%c0_83, %c0_84] : memref<8x8xf32, #tpu.memory_space<vmem>>, vector<8x8xf32>
    %cst_85 = arith.constant dense<0.000000e+00> : vector<8x512xf32>
    %358 = tpu.matmul %357, %356, %cst_85 {dimension_numbers = #tpu.dot_dimension_numbers<[1], [0], [0], [1], [0, 0, 1, 1], [], []>} : vector<8x8xf32>, vector<8x512xf32>, vector<8x512xf32> -> vector<8x512xf32>
    %c0_86 = arith.constant 0 : index
    %c0_87 = arith.constant 0 : index
    %359 = vector.load %arg19[%c0_86, %c0_87] : memref<8x1xf32, #tpu.memory_space<vmem>>, vector<8x1xf32>
    %360 = vector.broadcast %359 : vector<8x1xf32> to vector<8x512xf32>
    %361 = arith.addf %358, %360 : vector<8x512xf32>
    %c0_88 = arith.constant 0 : index
    %c0_89 = arith.constant 0 : index
    %c0_90 = arith.constant 0 : index
    %362 = vector.load %arg1[%c0_88, %c0_89, %c0_90] : memref<1x8x512xf32, #tpu.memory_space<vmem>>, vector<1x8x512xf32>
    %363 = vector.shape_cast %362 : vector<1x8x512xf32> to vector<8x512xf32>
    %364 = arith.addf %361, %363 : vector<8x512xf32>
    %c0_91 = arith.constant 0 : index
    %c0_92 = arith.constant 0 : index
    %c0_93 = arith.constant 0 : index
    %365 = vector.load %arg20[%c0_91, %c0_92, %c0_93] : memref<1x8x512xf32, #tpu.memory_space<vmem>>, vector<1x8x512xf32>
    %366 = vector.shape_cast %365 : vector<1x8x512xf32> to vector<8x512xf32>
    %367 = vector.shape_cast %364 : vector<8x512xf32> to vector<1x8x512xf32>
    tpu.vector_store %arg20[%c0_91, %c0_92, %c0_93], %367 {strides = array<i32>} : memref<1x8x512xf32, #tpu.memory_space<vmem>>, vector<1x8x512xf32>,
    return
  }
  func.func @transform_0(%arg0: i32) -> (i32, i32, i32) {
    %c0_i32 = arith.constant 0 : i32
    %c0_i32_0 = arith.constant 0 : i32
    %c0_i32_1 = arith.constant 0 : i32
    return %arg0, %c0_i32, %c0_i32_0 : i32, i32, i32
  }
  func.func @transform_1(%arg0: i32) -> (i32, i32) {
    %c0_i32 = arith.constant 0 : i32
    %c0_i32_0 = arith.constant 0 : i32
    %c0_i32_1 = arith.constant 0 : i32
    return %c0_i32, %c0_i32_0 : i32, i32
  }
  func.func @transform_2(%arg0: i32) -> (i32, i32) {
    %c0_i32 = arith.constant 0 : i32
    %c0_i32_0 = arith.constant 0 : i32
    %c0_i32_1 = arith.constant 0 : i32
    return %c0_i32, %c0_i32_0 : i32, i32
  }
  func.func @transform_3(%arg0: i32) -> (i32, i32) {
    %c0_i32 = arith.constant 0 : i32
    %c0_i32_0 = arith.constant 0 : i32
    %c0_i32_1 = arith.constant 0 : i32
    return %c0_i32, %c0_i32_0 : i32, i32
  }
  func.func @transform_4(%arg0: i32) -> (i32, i32) {
    %c0_i32 = arith.constant 0 : i32
    %c0_i32_0 = arith.constant 0 : i32
    %c0_i32_1 = arith.constant 0 : i32
    return %c0_i32, %c0_i32_0 : i32, i32
  }
  func.func @transform_5(%arg0: i32) -> (i32, i32) {
    %c0_i32 = arith.constant 0 : i32
    %c0_i32_0 = arith.constant 0 : i32
    %c0_i32_1 = arith.constant 0 : i32
    return %c0_i32, %c0_i32_0 : i32, i32
  }
  func.func @transform_6(%arg0: i32) -> (i32, i32) {
    %c0_i32 = arith.constant 0 : i32
    %c0_i32_0 = arith.constant 0 : i32
    %c0_i32_1 = arith.constant 0 : i32
    return %c0_i32, %c0_i32_0 : i32, i32
  }
  func.func @transform_7(%arg0: i32) -> (i32, i32) {
    %c0_i32 = arith.constant 0 : i32
    %c0_i32_0 = arith.constant 0 : i32
    %c0_i32_1 = arith.constant 0 : i32
    return %c0_i32, %c0_i32_0 : i32, i32
  }
  func.func @transform_8(%arg0: i32) -> (i32, i32) {
    %c0_i32 = arith.constant 0 : i32
    %c0_i32_0 = arith.constant 0 : i32
    %c0_i32_1 = arith.constant 0 : i32
    return %c0_i32, %c0_i32_0 : i32, i32
  }
  func.func @transform_9(%arg0: i32) -> (i32, i32) {
    %c0_i32 = arith.constant 0 : i32
    %c0_i32_0 = arith.constant 0 : i32
    %c0_i32_1 = arith.constant 0 : i32
    return %c0_i32, %c0_i32_0 : i32, i32
  }
  func.func @transform_10(%arg0: i32) -> (i32, i32) {
    %c0_i32 = arith.constant 0 : i32
    %c0_i32_0 = arith.constant 0 : i32
    %c0_i32_1 = arith.constant 0 : i32
    return %c0_i32, %c0_i32_0 : i32, i32
  }
  func.func @transform_11(%arg0: i32) -> (i32, i32) {
    %c0_i32 = arith.constant 0 : i32
    %c0_i32_0 = arith.constant 0 : i32
    %c0_i32_1 = arith.constant 0 : i32
    return %c0_i32, %c0_i32_0 : i32, i32
  }
  func.func @transform_12(%arg0: i32) -> (i32, i32) {
    %c0_i32 = arith.constant 0 : i32
    %c0_i32_0 = arith.constant 0 : i32
    %c0_i32_1 = arith.constant 0 : i32
    return %c0_i32, %c0_i32_0 : i32, i32
  }
  func.func @transform_13(%arg0: i32) -> (i32, i32) {
    %c0_i32 = arith.constant 0 : i32
    %c0_i32_0 = arith.constant 0 : i32
    %c0_i32_1 = arith.constant 0 : i32
    return %c0_i32, %c0_i32_0 : i32, i32
  }
  func.func @transform_14(%arg0: i32) -> (i32, i32) {
    %c0_i32 = arith.constant 0 : i32
    %c0_i32_0 = arith.constant 0 : i32
    %c0_i32_1 = arith.constant 0 : i32
    return %c0_i32, %c0_i32_0 : i32, i32
  }
  func.func @transform_15(%arg0: i32) -> (i32, i32) {
    %c0_i32 = arith.constant 0 : i32
    %c0_i32_0 = arith.constant 0 : i32
    %c0_i32_1 = arith.constant 0 : i32
    return %c0_i32, %c0_i32_0 : i32, i32
  }
  func.func @transform_16(%arg0: i32) -> (i32, i32) {
    %c0_i32 = arith.constant 0 : i32
    %c0_i32_0 = arith.constant 0 : i32
    %c0_i32_1 = arith.constant 0 : i32
    return %c0_i32, %c0_i32_0 : i32, i32
  }
  func.func @transform_17(%arg0: i32) -> (i32, i32) {
    %c0_i32 = arith.constant 0 : i32
    %c0_i32_0 = arith.constant 0 : i32
    %c0_i32_1 = arith.constant 0 : i32
    return %c0_i32, %c0_i32_0 : i32, i32
  }
  func.func @transform_18(%arg0: i32) -> (i32, i32) {
    %c0_i32 = arith.constant 0 : i32
    %c0_i32_0 = arith.constant 0 : i32
    %c0_i32_1 = arith.constant 0 : i32
    return %c0_i32, %c0_i32_0 : i32, i32
  }
  func.func @transform_19(%arg0: i32) -> (i32, i32, i32) {
    %c0_i32 = arith.constant 0 : i32
    %c0_i32_0 = arith.constant 0 : i32
    %c0_i32_1 = arith.constant 0 : i32
    return %arg0, %c0_i32, %c0_i32_0 : i32, i32, i32
  }
}

</mosaic_0001>

<llo_original>
// kernel: tpu_custom_call.1
$region0: #{tpu_custom_call.1}
  #allocation0 [shape = 'u32[]', space=smem, size = 0x4, offset = 0x4, fixed_abs, tag = 'smem constant byte address 0x4 - core index']
  #allocation1 [shape = 'u32[144,128]{1,0:T(1,128)}', space=vmem, size = 0x12000, scoped, tag = 'internal scratch']
  %s0 = inlined_call_operand.vmem [shape: f32[1,8,512], index: 0, kind: input, shape index: {}]
  %s1 = inlined_call_operand.vmem [shape: f32[5,512], index: 1, kind: input, shape index: {}]
  %s2 = inlined_call_operand.vmem [shape: f32[5,512], index: 2, kind: input, shape index: {}]
  %s3 = inlined_call_operand.vmem [shape: f32[5,512], index: 3, kind: input, shape index: {}]
  %s4 = inlined_call_operand.vmem [shape: f32[5,512], index: 4, kind: input, shape index: {}]
  %s5 = inlined_call_operand.vmem [shape: f32[512,2], index: 5, kind: input, shape index: {}]
  %s6 = inlined_call_operand.vmem [shape: f32[2,512], index: 6, kind: input, shape index: {}]
  %s7 = inlined_call_operand.vmem [shape: f32[8,8], index: 7, kind: input, shape index: {}]
  %s8 = inlined_call_operand.vmem [shape: f32[8,1], index: 8, kind: input, shape index: {}]
  %s9 = inlined_call_operand.vmem [shape: f32[8,25], index: 9, kind: input, shape index: {}]
  %s10 = inlined_call_operand.vmem [shape: f32[8,1], index: 10, kind: input, shape index: {}]
  %s11 = inlined_call_operand.vmem [shape: f32[8,25], index: 11, kind: input, shape index: {}]
  %s12 = inlined_call_operand.vmem [shape: f32[8,1], index: 12, kind: input, shape index: {}]
  %s13 = inlined_call_operand.vmem [shape: f32[8,8], index: 13, kind: input, shape index: {}]
  %s14 = inlined_call_operand.vmem [shape: f32[8,1], index: 14, kind: input, shape index: {}]
  %s15 = inlined_call_operand.vmem [shape: f32[2,8], index: 15, kind: input, shape index: {}]
  %s16 = inlined_call_operand.vmem [shape: f32[8,2], index: 16, kind: input, shape index: {}]
  %s17 = inlined_call_operand.vmem [shape: f32[8,8], index: 17, kind: input, shape index: {}]
  %s18 = inlined_call_operand.vmem [shape: f32[8,1], index: 18, kind: input, shape index: {}]
  %s19 = inlined_call_operand.hbm [shape: f32[1,8,512], index: 19, kind: output, shape index: {}]
  %s20 = sld [smem:[#allocation0]]
  $region86: #{tpu_custom_call.1} parent=0
    _
  %s22 = ssub.s32 1, %s20
  %s23 = scalar_select 0, %s22, %s20
  $region1: #{tpu_custom_call.1} parent=0
    #allocation2 [shape = 'u8[16384]{0}', space=vmem, size = 0x4000, scoped, tag = 'output window, operand 0, single buffered']
    #allocation3 [shape = 's32[1]{0}', space=sflag, size = 0x4, scoped, tag = 'scoped memory for tpu_custom_call.1']
    %24 = vsyncpa [#allocation3], 0
    // Predicated region
    $region2: #{tpu_custom_call.1} parent=1 // pred_check
      _
    $region3: #{tpu_custom_call.1} parent=1 // pred_check_branch
      %26 = sbr.rel (0) target = $region5
    $region4: #{tpu_custom_call.1} parent=1 // pred_region
      _
    $region5: #{tpu_custom_call.1} parent=1 // pred_fallthru
      _
    // Predicated region
    $region6: #{tpu_custom_call.1} parent=1 // pred_check
      _
    $region7: #{tpu_custom_call.1} parent=1 // pred_check_branch
      %28 = sbr.rel (0) target = $region9
    $region8: #{tpu_custom_call.1} parent=1 // pred_region
      _
    $region9: #{tpu_custom_call.1} parent=1 // pred_fallthru
      _
    // Predicated region
    $region10: #{tpu_custom_call.1} parent=1 // pred_check
      _
    $region11: #{tpu_custom_call.1} parent=1 // pred_check_branch
      %30 = sbr.rel (0) target = $region13
    $region12: #{tpu_custom_call.1} parent=1 // pred_region
      _
    $region13: #{tpu_custom_call.1} parent=1 // pred_fallthru
      _
    // Predicated region
    $region14: #{tpu_custom_call.1} parent=1 // pred_check
      _
    $region15: #{tpu_custom_call.1} parent=1 // pred_check_branch
      %32 = sbr.rel (0) target = $region17
    $region16: #{tpu_custom_call.1} parent=1 // pred_region
      _
    $region17: #{tpu_custom_call.1} parent=1 // pred_fallthru
      _
    // Predicated region
    $region18: #{tpu_custom_call.1} parent=1 // pred_check
      _
    $region19: #{tpu_custom_call.1} parent=1 // pred_check_branch
      %34 = sbr.rel (0) target = $region21
    $region20: #{tpu_custom_call.1} parent=1 // pred_region
      _
    $region21: #{tpu_custom_call.1} parent=1 // pred_fallthru
      _
    // Predicated region
    $region22: #{tpu_custom_call.1} parent=1 // pred_check
      _
    $region23: #{tpu_custom_call.1} parent=1 // pred_check_branch
      %36 = sbr.rel (0) target = $region25
    $region24: #{tpu_custom_call.1} parent=1 // pred_region
      _
    $region25: #{tpu_custom_call.1} parent=1 // pred_fallthru
      _
    // Predicated region
    $region26: #{tpu_custom_call.1} parent=1 // pred_check
      _
    $region27: #{tpu_custom_call.1} parent=1 // pred_check_branch
      %38 = sbr.rel (0) target = $region29
    $region28: #{tpu_custom_call.1} parent=1 // pred_region
      _
    $region29: #{tpu_custom_call.1} parent=1 // pred_fallthru
      _
    // Predicated region
    $region30: #{tpu_custom_call.1} parent=1 // pred_check
      _
    $region31: #{tpu_custom_call.1} parent=1 // pred_check_branch
      %40 = sbr.rel (0) target = $region33
    $region32: #{tpu_custom_call.1} parent=1 // pred_region
      _
    $region33: #{tpu_custom_call.1} parent=1 // pred_fallthru
      _
    // Predicated region
    $region34: #{tpu_custom_call.1} parent=1 // pred_check
      _
    $region35: #{tpu_custom_call.1} parent=1 // pred_check_branch
      %42 = sbr.rel (0) target = $region37
    $region36: #{tpu_custom_call.1} parent=1 // pred_region
      _
    $region37: #{tpu_custom_call.1} parent=1 // pred_fallthru
      _
    // Predicated region
    $region38: #{tpu_custom_call.1} parent=1 // pred_check
      _
    $region39: #{tpu_custom_call.1} parent=1 // pred_check_branch
      %44 = sbr.rel (0) target = $region41
    $region40: #{tpu_custom_call.1} parent=1 // pred_region
      _
    $region41: #{tpu_custom_call.1} parent=1 // pred_fallthru
      _
    // Predicated region
    $region42: #{tpu_custom_call.1} parent=1 // pred_check
      _
    $region43: #{tpu_custom_call.1} parent=1 // pred_check_branch
      %46 = sbr.rel (0) target = $region45
    $region44: #{tpu_custom_call.1} parent=1 // pred_region
      _
    $region45: #{tpu_custom_call.1} parent=1 // pred_fallthru
      _
    // Predicated region
    $region46: #{tpu_custom_call.1} parent=1 // pred_check
      _
    $region47: #{tpu_custom_call.1} parent=1 // pred_check_branch
      %48 = sbr.rel (0) target = $region49
    $region48: #{tpu_custom_call.1} parent=1 // pred_region
      _
    $region49: #{tpu_custom_call.1} parent=1 // pred_fallthru
      _
    // Predicated region
    $region50: #{tpu_custom_call.1} parent=1 // pred_check
      _
    $region51: #{tpu_custom_call.1} parent=1 // pred_check_branch
      %50 = sbr.rel (0) target = $region53
    $region52: #{tpu_custom_call.1} parent=1 // pred_region
      _
    $region53: #{tpu_custom_call.1} parent=1 // pred_fallthru
      _
    // Predicated region
    $region54: #{tpu_custom_call.1} parent=1 // pred_check
      _
    $region55: #{tpu_custom_call.1} parent=1 // pred_check_branch
      %52 = sbr.rel (0) target = $region57
    $region56: #{tpu_custom_call.1} parent=1 // pred_region
      _
    $region57: #{tpu_custom_call.1} parent=1 // pred_fallthru
      _
    // Predicated region
    $region58: #{tpu_custom_call.1} parent=1 // pred_check
      _
    $region59: #{tpu_custom_call.1} parent=1 // pred_check_branch
      %54 = sbr.rel (0) target = $region61
    $region60: #{tpu_custom_call.1} parent=1 // pred_region
      _
    $region61: #{tpu_custom_call.1} parent=1 // pred_fallthru
      _
    // Predicated region
    $region62: #{tpu_custom_call.1} parent=1 // pred_check
      _
    $region63: #{tpu_custom_call.1} parent=1 // pred_check_branch
      %56 = sbr.rel (0) target = $region65
    $region64: #{tpu_custom_call.1} parent=1 // pred_region
      _
    $region65: #{tpu_custom_call.1} parent=1 // pred_fallthru
      _
    // Predicated region
    $region66: #{tpu_custom_call.1} parent=1 // pred_check
      _
    $region67: #{tpu_custom_call.1} parent=1 // pred_check_branch
      %58 = sbr.rel (0) target = $region69
    $region68: #{tpu_custom_call.1} parent=1 // pred_region
      _
    $region69: #{tpu_custom_call.1} parent=1 // pred_fallthru
      _
    // Predicated region
    $region70: #{tpu_custom_call.1} parent=1 // pred_check
      _
    $region71: #{tpu_custom_call.1} parent=1 // pred_check_branch
      %60 = sbr.rel (0) target = $region73
    $region72: #{tpu_custom_call.1} parent=1 // pred_region
      _
    $region73: #{tpu_custom_call.1} parent=1 // pred_fallthru
      _
    // Predicated region
    $region74: #{tpu_custom_call.1} parent=1 // pred_check
      _
    $region75: #{tpu_custom_call.1} parent=1 // pred_check_branch
      %62 = sbr.rel (0) target = $region77
    $region76: #{tpu_custom_call.1} parent=1 // pred_region
      _
    $region77: #{tpu_custom_call.1} parent=1 // pred_fallthru
      _
    %v63 = vld [vmem:[%s7] sm:$0xff]
    %v64 = vld [vmem:[%s0] sm:$0xff]
    %v65 = vld [vmem:[%s0 + $0x8] sm:$0xff]
    %v66 = vld [vmem:[%s0 + $0x10] sm:$0xff]
    %v67 = vld [vmem:[%s0 + $0x18] sm:$0xff]
    %v68 = vld [vmem:[%s8] sm:$0xff]
    %70 = vset.pattern.permute.xlu0 0
    %71 = vperm.xlu0 %70, %v68
    %v72 = vpop.permute.xlu0 %71
    %vm74 = vcmask 64512
    %v76 = vsel %vm74, %v63, 0
    %78 = vmatprep.subr.mxu0 %v65
    %79 = vmatpush1.msra.mxu0 %v64
    %80 = vmatprep.subr.mxu0 0.0
    %81 = vmatpush1.msra.mxu0 0.0
    %82 = vmatprep.subr.mxu0 0.0
    %83 = vmatpush1.msra.mxu0 0.0
    %84 = vmatprep.subr.mxu0 0.0
    %85 = vmatpush1.msra.mxu0 0.0
    %86 = vmatprep.subr.mxu0 0.0
    %87 = vmatpush1.msra.mxu0 0.0
    %88 = vmatprep.subr.mxu0 0.0
    %89 = vmatpush1.msra.mxu0 0.0
    %90 = vmatprep.subr.mxu0 0.0
    %91 = vmatpush1.msra.mxu0 0.0
    %92 = vmatprep.subr.mxu0 0.0
    %93 = vmatpush1.msra.mxu0 0.0
    %94 = vmatprep.subr.mxu0 0.0
    %95 = vmatpush1.msra.mxu0 0.0
    %96 = vmatprep.subr.mxu0 0.0
    %97 = vmatpush1.msra.mxu0 0.0
    %98 = vmatprep.subr.mxu0 0.0
    %99 = vmatpush1.msra.mxu0 0.0
    %100 = vmatprep.subr.mxu0 0.0
    %101 = vmatpush1.msra.mxu0 0.0
    %102 = vmatprep.subr.mxu0 0.0
    %103 = vmatpush1.msra.mxu0 0.0
    %104 = vmatprep.subr.mxu0 0.0
    %105 = vmatpush1.msra.mxu0 0.0
    %106 = vmatprep.subr.mxu0 0.0
    %107 = vmatpush1.msra.mxu0 0.0
    %108 = vmatprep.subr.mxu0 0.0
    %109 = vmatpush1.msra.mxu0 0.0
    %110 = vmatprep.subr.mxu0 0.0
    %111 = vmatpush1.msra.mxu0 0.0
    %112 = vmatprep.subr.mxu0 0.0
    %113 = vmatpush1.msra.mxu0 0.0
    %114 = vmatprep.subr.mxu0 0.0
    %115 = vmatpush1.msra.mxu0 0.0
    %116 = vmatprep.subr.mxu0 0.0
    %117 = vmatpush1.msra.mxu0 0.0
    %118 = vmatprep.subr.mxu0 0.0
    %119 = vmatpush1.msra.mxu0 0.0
    %120 = vmatprep.subr.mxu0 0.0
    %121 = vmatpush1.msra.mxu0 0.0
    %122 = vmatprep.subr.mxu0 0.0
    %123 = vmatpush1.msra.mxu0 0.0
    %124 = vmatprep.subr.mxu0 0.0
    %125 = vmatpush1.msra.mxu0 0.0
    %126 = vmatprep.subr.mxu0 0.0
    %127 = vmatpush1.msra.mxu0 0.0
    %128 = vmatprep.subr.mxu0 0.0
    %129 = vmatpush1.msra.mxu0 0.0
    %130 = vmatprep.subr.mxu0 0.0
    %131 = vmatpush1.msra.mxu0 0.0
    %132 = vmatprep.subr.mxu0 0.0
    %133 = vmatpush1.msra.mxu0 0.0
    %134 = vmatprep.subr.mxu0 0.0
    %135 = vmatpush1.msra.mxu0 0.0
    %136 = vmatprep.subr.mxu0 0.0
    %137 = vmatpush1.msra.mxu0 0.0
    %138 = vmatprep.subr.mxu0 0.0
    %139 = vmatpush1.msra.mxu0 0.0
    %140 = vmatprep.subr.mxu0 0.0
    %141 = vmatpush1.msra.mxu0 0.0
    %142 = vmatprep.mubr.f32.mxu0 0.0
    %143 = vmatmul.mubr.f32.gmra.mrb[0].mxu0 %v76
    %v144 = vpop.f32.mrb[0].mxu0
    %v145 = vadd.f32 %v72, %v144
    %v146 = vpop.f32.mrb[0].mxu0
    %v147 = vadd.f32 %v72, %v146
    %148 = vdwg.mxu0
    %149 = vmatprep.subr.mxu0 %v67
    %150 = vmatpush1.msra.mxu0 %v66
    %151 = vmatprep.subr.mxu0 0.0
    %152 = vmatpush1.msra.mxu0 0.0
    %153 = vmatprep.subr.mxu0 0.0
    %154 = vmatpush1.msra.mxu0 0.0
    %155 = vmatprep.subr.mxu0 0.0
    %156 = vmatpush1.msra.mxu0 0.0
    %157 = vmatprep.subr.mxu0 0.0
    %158 = vmatpush1.msra.mxu0 0.0
    %159 = vmatprep.subr.mxu0 0.0
    %160 = vmatpush1.msra.mxu0 0.0
    %161 = vmatprep.subr.mxu0 0.0
    %162 = vmatpush1.msra.mxu0 0.0
    %163 = vmatprep.subr.mxu0 0.0
    %164 = vmatpush1.msra.mxu0 0.0
    %165 = vmatprep.subr.mxu0 0.0
    %166 = vmatpush1.msra.mxu0 0.0
    %167 = vmatprep.subr.mxu0 0.0
    %168 = vmatpush1.msra.mxu0 0.0
    %169 = vmatprep.subr.mxu0 0.0
    %170 = vmatpush1.msra.mxu0 0.0
    %171 = vmatprep.subr.mxu0 0.0
    %172 = vmatpush1.msra.mxu0 0.0
    %173 = vmatprep.subr.mxu0 0.0
    %174 = vmatpush1.msra.mxu0 0.0
    %175 = vmatprep.subr.mxu0 0.0
    %176 = vmatpush1.msra.mxu0 0.0
    %177 = vmatprep.subr.mxu0 0.0
    %178 = vmatpush1.msra.mxu0 0.0
    %179 = vmatprep.subr.mxu0 0.0
    %180 = vmatpush1.msra.mxu0 0.0
    %181 = vmatprep.subr.mxu0 0.0
    %182 = vmatpush1.msra.mxu0 0.0
    %183 = vmatprep.subr.mxu0 0.0
    %184 = vmatpush1.msra.mxu0 0.0
    %185 = vmatprep.subr.mxu0 0.0
    %186 = vmatpush1.msra.mxu0 0.0
    %187 = vmatprep.subr.mxu0 0.0
    %188 = vmatpush1.msra.mxu0 0.0
    %189 = vmatprep.subr.mxu0 0.0
    %190 = vmatpush1.msra.mxu0 0.0
    %191 = vmatprep.subr.mxu0 0.0
    %192 = vmatpush1.msra.mxu0 0.0
    %193 = vmatprep.subr.mxu0 0.0
    %194 = vmatpush1.msra.mxu0 0.0
    %195 = vmatprep.subr.mxu0 0.0
    %196 = vmatpush1.msra.mxu0 0.0
    %197 = vmatprep.subr.mxu0 0.0
    %198 = vmatpush1.msra.mxu0 0.0
    %199 = vmatprep.subr.mxu0 0.0
    %200 = vmatpush1.msra.mxu0 0.0
    %201 = vmatprep.subr.mxu0 0.0
    %202 = vmatpush1.msra.mxu0 0.0
    %203 = vmatprep.subr.mxu0 0.0
    %204 = vmatpush1.msra.mxu0 0.0
    %205 = vmatprep.subr.mxu0 0.0
    %206 = vmatpush1.msra.mxu0 0.0
    %207 = vmatprep.subr.mxu0 0.0
    %208 = vmatpush1.msra.mxu0 0.0
    %209 = vmatprep.subr.mxu0 0.0
    %210 = vmatpush1.msra.mxu0 0.0
    %211 = vmatprep.subr.mxu0 0.0
    %212 = vmatpush1.msra.mxu0 0.0
    %213 = vmatprep.mubr.f32.mxu0 0.0
    %214 = vmatmul.mubr.f32.gmra.mrb[0].mxu0 %v76
    %v215 = vpop.f32.mrb[0].mxu0
    %v216 = vadd.f32 %v72, %v215
    %v217 = vpop.f32.mrb[0].mxu0
    %v218 = vadd.f32 %v72, %v217
    %219 = vdwg.mxu0
    %v220 = vmul.f32 %v145, 0.5
    %v221 = vmul.f32 %v147, 0.5
    %v222 = vmul.f32 %v216, 0.5
    %v223 = vmul.f32 %v218, 0.5
    %v224 = vmul.f32 %v145, 0.70710677
    %v225 = vmul.f32 %v147, 0.70710677
    %v226 = vmul.f32 %v216, 0.70710677
    %v227 = vmul.f32 %v218, 0.70710677
    %v228 = vmax.f32 %v224, -3.832507
    %v229 = vmax.f32 %v225, -3.832507
    %v230 = vmax.f32 %v226, -3.832507
    %v231 = vmax.f32 %v227, -3.832507
    %v232 = vmin.f32 %v228, 3.832507
    %v233 = vmin.f32 %v229, 3.832507
    %v234 = vmin.f32 %v230, 3.832507
    %v235 = vmin.f32 %v231, 3.832507
    %v236 = vmul.f32 %v232, %v232
    %v237 = vmul.f32 %v233, %v233
    %v238 = vmul.f32 %v234, %v234
    %v239 = vmul.f32 %v235, %v235
    %v240 = vmul.f32 %v236, -2.7261424e-10
    %v241 = vmul.f32 %v237, -2.7261424e-10
    %v242 = vmul.f32 %v238, -2.7261424e-10
    %v243 = vmul.f32 %v239, -2.7261424e-10
    %v244 = vadd.f32 %v240, 2.7706815e-08
    %v245 = vadd.f32 %v241, 2.7706815e-08
    %v246 = vadd.f32 %v242, 2.7706815e-08
    %v247 = vadd.f32 %v243, 2.7706815e-08
    %v248 = vmul.f32 %v244, %v236
    %v249 = vmul.f32 %v245, %v237
    %v250 = vmul.f32 %v246, %v238
    %v251 = vmul.f32 %v247, %v239
    %v252 = vadd.f32 %v248, -2.101024e-06
    %v253 = vadd.f32 %v249, -2.101024e-06
    %v254 = vadd.f32 %v250, -2.101024e-06
    %v255 = vadd.f32 %v251, -2.101024e-06
    %v256 = vmul.f32 %v252, %v236
    %v257 = vmul.f32 %v253, %v237
    %v258 = vmul.f32 %v254, %v238
    %v259 = vmul.f32 %v255, %v239
    %v260 = vadd.f32 %v256, -5.6925062e-05
    %v261 = vadd.f32 %v257, -5.6925062e-05
    %v262 = vadd.f32 %v258, -5.6925062e-05
    %v263 = vadd.f32 %v259, -5.6925062e-05
    %v264 = vmul.f32 %v260, %v236
    %v265 = vmul.f32 %v261, %v237
    %v266 = vmul.f32 %v262, %v238
    %v267 = vmul.f32 %v263, %v239
    %v268 = vadd.f32 %v264, -0.00073499064
    %v269 = vadd.f32 %v265, -0.00073499064
    %v270 = vadd.f32 %v266, -0.00073499064
    %v271 = vadd.f32 %v267, -0.00073499064
    %v272 = vmul.f32 %v268, %v236
    %v273 = vmul.f32 %v269, %v237
    %v274 = vmul.f32 %v270, %v238
    %v275 = vmul.f32 %v271, %v239
    %v276 = vadd.f32 %v272, -0.0029546
    %v277 = vadd.f32 %v273, -0.0029546
    %v278 = vadd.f32 %v274, -0.0029546
    %v279 = vadd.f32 %v275, -0.0029546
    %v280 = vmul.f32 %v276, %v236
    %v281 = vmul.f32 %v277, %v237
    %v282 = vmul.f32 %v278, %v238
    %v283 = vmul.f32 %v279, %v239
    %v284 = vadd.f32 %v280, -0.016096033
    %v285 = vadd.f32 %v281, -0.016096033
    %v286 = vadd.f32 %v282, -0.016096033
    %v287 = vadd.f32 %v283, -0.016096033
    %v288 = vmul.f32 %v284, %v232
    %v289 = vmul.f32 %v285, %v233
    %v290 = vmul.f32 %v286, %v234
    %v291 = vmul.f32 %v287, %v235
    %v292 = vmul.f32 %v236, -1.45660715e-05
    %v293 = vmul.f32 %v237, -1.45660715e-05
    %v294 = vmul.f32 %v238, -1.45660715e-05
    %v295 = vmul.f32 %v239, -1.45660715e-05
    %v296 = vadd.f32 %v292, -0.00021337405
    %v297 = vadd.f32 %v293, -0.00021337405
    %v298 = vadd.f32 %v294, -0.00021337405
    %v299 = vadd.f32 %v295, -0.00021337405
    %v300 = vmul.f32 %v296, %v236
    %v301 = vmul.f32 %v297, %v237
    %v302 = vmul.f32 %v298, %v238
    %v303 = vmul.f32 %v299, %v239
    %v304 = vadd.f32 %v300, -0.001682827
    %v305 = vadd.f32 %v301, -0.001682827
    %v306 = vadd.f32 %v302, -0.001682827
    %v307 = vadd.f32 %v303, -0.001682827
    %v308 = vmul.f32 %v304, %v236
    %v309 = vmul.f32 %v305, %v237
    %v310 = vmul.f32 %v306, %v238
    %v311 = vmul.f32 %v307, %v239
    %v312 = vadd.f32 %v308, -0.0073733293
    %v313 = vadd.f32 %v309, -0.0073733293
    %v314 = vadd.f32 %v310, -0.0073733293
    %v315 = vadd.f32 %v311, -0.0073733293
    %v316 = vmul.f32 %v312, %v236
    %v317 = vmul.f32 %v313, %v237
    %v318 = vmul.f32 %v314, %v238
    %v319 = vmul.f32 %v315, %v239
    %v320 = vadd.f32 %v316, -0.014264739
    %v321 = vadd.f32 %v317, -0.014264739
    %v322 = vadd.f32 %v318, -0.014264739
    %v323 = vadd.f32 %v319, -0.014264739
    %v324 = vrcp.pop %v320
    %v325 = vrcp.pop %v321
    %v326 = vrcp.pop %v322
    %v327 = vrcp.pop %v323
    %v328 = vmul.f32 %v320, %v324
    %v329 = vmul.f32 %v321, %v325
    %v330 = vmul.f32 %v322, %v326
    %v331 = vmul.f32 %v323, %v327
    %v332 = vsub.f32 2.0, %v328
    %v333 = vsub.f32 2.0, %v329
    %v334 = vsub.f32 2.0, %v330
    %v335 = vsub.f32 2.0, %v331
    %v336 = vmul.f32 %v324, %v332
    %v337 = vmul.f32 %v325, %v333
    %v338 = vmul.f32 %v326, %v334
    %v339 = vmul.f32 %v327, %v335
    %v340 = vmul.f32 %v288, %v336
    %v341 = vmul.f32 %v289, %v337
    %v342 = vmul.f32 %v290, %v338
    %v343 = vmul.f32 %v291, %v339
    %v344 = vadd.f32 %v340, 1.0
    %v345 = vadd.f32 %v341, 1.0
    %v346 = vadd.f32 %v342, 1.0
    %v347 = vadd.f32 %v343, 1.0
    %v348 = vmul.f32 %v220, %v344
    %v349 = vmul.f32 %v221, %v345
    %v350 = vmul.f32 %v222, %v346
    %v351 = vmul.f32 %v223, %v347
    %v352 = vld [vmem:[%s9] sm:$0xff]
    %353 = vrot.lane.b32.xlu0 %v348, 2
    %v354 = vpop.permute.xlu0 %353
    %355 = vrot.lane.b32.xlu0 %v349, 2
    %v356 = vpop.permute.xlu0 %355
    %357 = vrot.lane.b32.xlu0 %v350, 2
    %v358 = vpop.permute.xlu0 %357
    %359 = vrot.lane.b32.xlu0 %v351, 2
    %v360 = vpop.permute.xlu0 %359
    %v361 = vlaneseq
    %v362 = vand.u32 %v361, 127
    %vm363 = vcmp.lt.s32.totalorder %v362, 2
    %v364 = vsel %vm363, %v358, %v360
    %v365 = vsel %vm363, %v356, %v358
    %v366 = vsel %vm363, %v354, %v356
    %v367 = vsel %vm363, %v360, %v354
    %v368 = vld [vmem:[%s1] ss:$8 sm:$0xf]
    %v370 = vlaneseq
    %v371 = vshrl.u32 %v370, 7
    %v372 = vsub.s32 0, %v371
    %v373 = vrot.slane %v368, %v372
    %v374 = vlaneseq
    %v375 = vshrl.u32 %v374, 7
    %v376 = vsub.s32 1, %v375
    %v377 = vrot.slane %v368, %v376
    %v378 = vlaneseq
    %v379 = vshrl.u32 %v378, 7
    %v380 = vsub.s32 2, %v379
    %v381 = vrot.slane %v368, %v380
    %v382 = vlaneseq
    %v383 = vshrl.u32 %v382, 7
    %v384 = vsub.s32 3, %v383
    %v385 = vrot.slane %v368, %v384
    %v390 = vmul.f32 %v367, %v373
    %v391 = vmul.f32 %v366, %v377
    %v392 = vmul.f32 %v365, %v381
    %v393 = vmul.f32 %v364, %v385
    %394 = vrot.lane.b32.xlu0 %v348, 1
    %v395 = vpop.permute.xlu0 %394
    %396 = vrot.lane.b32.xlu0 %v349, 1
    %v397 = vpop.permute.xlu0 %396
    %398 = vrot.lane.b32.xlu0 %v350, 1
    %v399 = vpop.permute.xlu0 %398
    %400 = vrot.lane.b32.xlu0 %v351, 1
    %v401 = vpop.permute.xlu0 %400
    %vm402 = vcmp.lt.s32.totalorder %v362, 1
    %v403 = vsel %vm402, %v399, %v401
    %v404 = vsel %vm402, %v397, %v399
    %v405 = vsel %vm402, %v395, %v397
    %v406 = vsel %vm402, %v401, %v395
    %s407 = scalar_lea.vmem %s1, 1
    %v408 = vld [vmem:[%s407] ss:$8 sm:$0xf]
    %v410 = vlaneseq
    %v411 = vshrl.u32 %v410, 7
    %v412 = vsub.s32 0, %v411
    %v413 = vrot.slane %v408, %v412
    %v414 = vlaneseq
    %v415 = vshrl.u32 %v414, 7
    %v416 = vsub.s32 1, %v415
    %v417 = vrot.slane %v408, %v416
    %v418 = vlaneseq
    %v419 = vshrl.u32 %v418, 7
    %v420 = vsub.s32 2, %v419
    %v421 = vrot.slane %v408, %v420
    %v422 = vlaneseq
    %v423 = vshrl.u32 %v422, 7
    %v424 = vsub.s32 3, %v423
    %v425 = vrot.slane %v408, %v424
    %v430 = vmul.f32 %v406, %v413
    %v431 = vmul.f32 %v405, %v417
    %v432 = vmul.f32 %v404, %v421
    %v433 = vmul.f32 %v403, %v425
    %434 = vrot.lane.b32.xlu0 %v348, 127
    %v435 = vpop.permute.xlu0 %434
    %436 = vrot.lane.b32.xlu0 %v349, 127
    %v437 = vpop.permute.xlu0 %436
    %438 = vrot.lane.b32.xlu0 %v350, 127
    %v439 = vpop.permute.xlu0 %438
    %440 = vrot.lane.b32.xlu0 %v351, 127
    %v441 = vpop.permute.xlu0 %440
    %vm442 = vcmp.lt.s32.totalorder %v362, 127
    %v443 = vsel %vm442, %v439, %v441
    %v444 = vsel %vm442, %v437, %v439
    %v445 = vsel %vm442, %v435, %v437
    %v446 = vsel %vm442, %v441, %v435
    %s447 = scalar_lea.vmem %s1, 3
    %v448 = vld [vmem:[%s447] ss:$8 sm:$0xf]
    %v450 = vlaneseq
    %v451 = vshrl.u32 %v450, 7
    %v452 = vsub.s32 0, %v451
    %v453 = vrot.slane %v448, %v452
    %v454 = vlaneseq
    %v455 = vshrl.u32 %v454, 7
    %v456 = vsub.s32 1, %v455
    %v457 = vrot.slane %v448, %v456
    %v458 = vlaneseq
    %v459 = vshrl.u32 %v458, 7
    %v460 = vsub.s32 2, %v459
    %v461 = vrot.slane %v448, %v460
    %v462 = vlaneseq
    %v463 = vshrl.u32 %v462, 7
    %v464 = vsub.s32 3, %v463
    %v465 = vrot.slane %v448, %v464
    %v470 = vmul.f32 %v445, %v453
    %v471 = vmul.f32 %v444, %v457
    %v472 = vmul.f32 %v443, %v461
    %v473 = vmul.f32 %v446, %v465
    %474 = vrot.lane.b32.xlu0 %v348, 126
    %v475 = vpop.permute.xlu0 %474
    %476 = vrot.lane.b32.xlu0 %v349, 126
    %v477 = vpop.permute.xlu0 %476
    %478 = vrot.lane.b32.xlu0 %v350, 126
    %v479 = vpop.permute.xlu0 %478
    %480 = vrot.lane.b32.xlu0 %v351, 126
    %v481 = vpop.permute.xlu0 %480
    %vm482 = vcmp.lt.s32.totalorder %v362, 126
    %v483 = vsel %vm482, %v479, %v481
    %v484 = vsel %vm482, %v477, %v479
    %v485 = vsel %vm482, %v475, %v477
    %v486 = vsel %vm482, %v481, %v475
    %s487 = scalar_lea.vmem %s1, 4
    %v488 = vld [vmem:[%s487] ss:$8 sm:$0xf]
    %v490 = vlaneseq
    %v491 = vshrl.u32 %v490, 7
    %v492 = vsub.s32 0, %v491
    %v493 = vrot.slane %v488, %v492
    %v494 = vlaneseq
    %v495 = vshrl.u32 %v494, 7
    %v496 = vsub.s32 1, %v495
    %v497 = vrot.slane %v488, %v496
    %v498 = vlaneseq
    %v499 = vshrl.u32 %v498, 7
    %v500 = vsub.s32 2, %v499
    %v501 = vrot.slane %v488, %v500
    %v502 = vlaneseq
    %v503 = vshrl.u32 %v502, 7
    %v504 = vsub.s32 3, %v503
    %v505 = vrot.slane %v488, %v504
    %v510 = vmul.f32 %v485, %v493
    %v511 = vmul.f32 %v484, %v497
    %v512 = vmul.f32 %v483, %v501
    %v513 = vmul.f32 %v486, %v505
    %515 = vset.pattern.permute.xlu0 0
    %516 = vperm.xlu0 %515, %v352
    %v517 = vpop.permute.xlu0 %516
    %v519 = vmul.f32 %v517, %v390
    %v520 = vmul.f32 %v517, %v391
    %v521 = vmul.f32 %v517, %v392
    %v522 = vmul.f32 %v517, %v393
    %523 = vset.pattern.permute.xlu0 1
    %524 = vperm.xlu0 %523, %v352
    %v525 = vpop.permute.xlu0 %524
    %v527 = vmul.f32 %v525, %v430
    %v528 = vmul.f32 %v525, %v431
    %v529 = vmul.f32 %v525, %v432
    %v530 = vmul.f32 %v525, %v433
    %v531 = vadd.f32 %v519, %v527
    %v532 = vadd.f32 %v520, %v528
    %v533 = vadd.f32 %v521, %v529
    %v534 = vadd.f32 %v522, %v530
    %535 = vset.pattern.permute.xlu0 2
    %536 = vperm.xlu0 %535, %v352
    %v537 = vpop.permute.xlu0 %536
    %v539 = vmul.f32 %v537, %v348
    %v540 = vmul.f32 %v537, %v349
    %v541 = vmul.f32 %v537, %v350
    %v542 = vmul.f32 %v537, %v351
    %v543 = vadd.f32 %v531, %v539
    %v544 = vadd.f32 %v532, %v540
    %v545 = vadd.f32 %v533, %v541
    %v546 = vadd.f32 %v534, %v542
    %547 = vset.pattern.permute.xlu0 3
    %548 = vperm.xlu0 %547, %v352
    %v549 = vpop.permute.xlu0 %548
    %v551 = vmul.f32 %v549, %v470
    %v552 = vmul.f32 %v549, %v471
    %v553 = vmul.f32 %v549, %v472
    %v554 = vmul.f32 %v549, %v473
    %v555 = vadd.f32 %v543, %v551
    %v556 = vadd.f32 %v544, %v552
    %v557 = vadd.f32 %v545, %v553
    %v558 = vadd.f32 %v546, %v554
    %559 = vset.pattern.permute.xlu0 4
    %560 = vperm.xlu0 %559, %v352
    %v561 = vpop.permute.xlu0 %560
    %v563 = vmul.f32 %v561, %v510
    %v564 = vmul.f32 %v561, %v511
    %v565 = vmul.f32 %v561, %v512
    %v566 = vmul.f32 %v561, %v513
    %v567 = vadd.f32 %v555, %v563
    %v568 = vadd.f32 %v556, %v564
    %v569 = vadd.f32 %v557, %v565
    %v570 = vadd.f32 %v558, %v566
    %571 = vrot.lane.b32.xlu0 %v567, 32
    %v572 = vpop.permute.xlu0 %571
    %573 = vrot.lane.b32.xlu0 %v568, 32
    %v574 = vpop.permute.xlu0 %573
    %575 = vrot.lane.b32.xlu0 %v569, 32
    %v576 = vpop.permute.xlu0 %575
    %577 = vrot.lane.b32.xlu0 %v570, 32
    %v578 = vpop.permute.xlu0 %577
    %vm579 = vcmp.lt.s32.totalorder %v362, 32
    %v580 = vsel %vm579, %v576, %v578
    %v581 = vsel %vm579, %v574, %v576
    %v582 = vsel %vm579, %v572, %v574
    %v583 = vsel %vm579, %v578, %v572
    %v584 = vld [vmem:[%s2] ss:$8 sm:$0xf]
    %v586 = vlaneseq
    %v587 = vshrl.u32 %v586, 7
    %v588 = vsub.s32 0, %v587
    %v589 = vrot.slane %v584, %v588
    %v590 = vlaneseq
    %v591 = vshrl.u32 %v590, 7
    %v592 = vsub.s32 1, %v591
    %v593 = vrot.slane %v584, %v592
    %v594 = vlaneseq
    %v595 = vshrl.u32 %v594, 7
    %v596 = vsub.s32 2, %v595
    %v597 = vrot.slane %v584, %v596
    %v598 = vlaneseq
    %v599 = vshrl.u32 %v598, 7
    %v600 = vsub.s32 3, %v599
    %v601 = vrot.slane %v584, %v600
    %v606 = vmul.f32 %v583, %v589
    %v607 = vmul.f32 %v582, %v593
    %v608 = vmul.f32 %v581, %v597
    %v609 = vmul.f32 %v580, %v601
    %610 = vset.pattern.permute.xlu0 5
    %611 = vperm.xlu0 %610, %v352
    %v612 = vpop.permute.xlu0 %611
    %v614 = vmul.f32 %v612, %v390
    %v615 = vmul.f32 %v612, %v391
    %v616 = vmul.f32 %v612, %v392
    %v617 = vmul.f32 %v612, %v393
    %618 = vset.pattern.permute.xlu0 6
    %619 = vperm.xlu0 %618, %v352
    %v620 = vpop.permute.xlu0 %619
    %v622 = vmul.f32 %v620, %v430
    %v623 = vmul.f32 %v620, %v431
    %v624 = vmul.f32 %v620, %v432
    %v625 = vmul.f32 %v620, %v433
    %v626 = vadd.f32 %v614, %v622
    %v627 = vadd.f32 %v615, %v623
    %v628 = vadd.f32 %v616, %v624
    %v629 = vadd.f32 %v617, %v625
    %630 = vset.pattern.permute.xlu0 7
    %631 = vperm.xlu0 %630, %v352
    %v632 = vpop.permute.xlu0 %631
    %v634 = vmul.f32 %v632, %v348
    %v635 = vmul.f32 %v632, %v349
    %v636 = vmul.f32 %v632, %v350
    %v637 = vmul.f32 %v632, %v351
    %v638 = vadd.f32 %v626, %v634
    %v639 = vadd.f32 %v627, %v635
    %v640 = vadd.f32 %v628, %v636
    %v641 = vadd.f32 %v629, %v637
    %642 = vset.pattern.permute.xlu0 8
    %643 = vperm.xlu0 %642, %v352
    %v644 = vpop.permute.xlu0 %643
    %v646 = vmul.f32 %v644, %v470
    %v647 = vmul.f32 %v644, %v471
    %v648 = vmul.f32 %v644, %v472
    %v649 = vmul.f32 %v644, %v473
    %v650 = vadd.f32 %v638, %v646
    %v651 = vadd.f32 %v639, %v647
    %v652 = vadd.f32 %v640, %v648
    %v653 = vadd.f32 %v641, %v649
    %654 = vset.pattern.permute.xlu0 9
    %655 = vperm.xlu0 %654, %v352
    %v656 = vpop.permute.xlu0 %655
    %v658 = vmul.f32 %v656, %v510
    %v659 = vmul.f32 %v656, %v511
    %v660 = vmul.f32 %v656, %v512
    %v661 = vmul.f32 %v656, %v513
    %v662 = vadd.f32 %v650, %v658
    %v663 = vadd.f32 %v651, %v659
    %v664 = vadd.f32 %v652, %v660
    %v665 = vadd.f32 %v653, %v661
    %666 = vrot.lane.b32.xlu0 %v662, 16
    %v667 = vpop.permute.xlu0 %666
    %668 = vrot.lane.b32.xlu0 %v663, 16
    %v669 = vpop.permute.xlu0 %668
    %670 = vrot.lane.b32.xlu0 %v664, 16
    %v671 = vpop.permute.xlu0 %670
    %672 = vrot.lane.b32.xlu0 %v665, 16
    %v673 = vpop.permute.xlu0 %672
    %vm674 = vcmp.lt.s32.totalorder %v362, 16
    %v675 = vsel %vm674, %v671, %v673
    %v676 = vsel %vm674, %v669, %v671
    %v677 = vsel %vm674, %v667, %v669
    %v678 = vsel %vm674, %v673, %v667
    %s679 = scalar_lea.vmem %s2, 1
    %v680 = vld [vmem:[%s679] ss:$8 sm:$0xf]
    %v682 = vlaneseq
    %v683 = vshrl.u32 %v682, 7
    %v684 = vsub.s32 0, %v683
    %v685 = vrot.slane %v680, %v684
    %v686 = vlaneseq
    %v687 = vshrl.u32 %v686, 7
    %v688 = vsub.s32 1, %v687
    %v689 = vrot.slane %v680, %v688
    %v690 = vlaneseq
    %v691 = vshrl.u32 %v690, 7
    %v692 = vsub.s32 2, %v691
    %v693 = vrot.slane %v680, %v692
    %v694 = vlaneseq
    %v695 = vshrl.u32 %v694, 7
    %v696 = vsub.s32 3, %v695
    %v697 = vrot.slane %v680, %v696
    %v702 = vmul.f32 %v678, %v685
    %v703 = vmul.f32 %v677, %v689
    %v704 = vmul.f32 %v676, %v693
    %v705 = vmul.f32 %v675, %v697
    %v706 = vadd.f32 %v606, %v702
    %v707 = vadd.f32 %v607, %v703
    %v708 = vadd.f32 %v608, %v704
    %v709 = vadd.f32 %v609, %v705
    %710 = vset.pattern.permute.xlu0 10
    %711 = vperm.xlu0 %710, %v352
    %v712 = vpop.permute.xlu0 %711
    %v714 = vmul.f32 %v712, %v390
    %v715 = vmul.f32 %v712, %v391
    %v716 = vmul.f32 %v712, %v392
    %v717 = vmul.f32 %v712, %v393
    %718 = vset.pattern.permute.xlu0 11
    %719 = vperm.xlu0 %718, %v352
    %v720 = vpop.permute.xlu0 %719
    %v722 = vmul.f32 %v720, %v430
    %v723 = vmul.f32 %v720, %v431
    %v724 = vmul.f32 %v720, %v432
    %v725 = vmul.f32 %v720, %v433
    %v726 = vadd.f32 %v714, %v722
    %v727 = vadd.f32 %v715, %v723
    %v728 = vadd.f32 %v716, %v724
    %v729 = vadd.f32 %v717, %v725
    %730 = vset.pattern.permute.xlu0 12
    %731 = vperm.xlu0 %730, %v352
    %v732 = vpop.permute.xlu0 %731
    %v734 = vmul.f32 %v732, %v348
    %v735 = vmul.f32 %v732, %v349
    %v736 = vmul.f32 %v732, %v350
    %v737 = vmul.f32 %v732, %v351
    %v738 = vadd.f32 %v726, %v734
    %v739 = vadd.f32 %v727, %v735
    %v740 = vadd.f32 %v728, %v736
    %v741 = vadd.f32 %v729, %v737
    %742 = vset.pattern.permute.xlu0 13
    %743 = vperm.xlu0 %742, %v352
    %v744 = vpop.permute.xlu0 %743
    %v746 = vmul.f32 %v744, %v470
    %v747 = vmul.f32 %v744, %v471
    %v748 = vmul.f32 %v744, %v472
    %v749 = vmul.f32 %v744, %v473
    %v750 = vadd.f32 %v738, %v746
    %v751 = vadd.f32 %v739, %v747
    %v752 = vadd.f32 %v740, %v748
    %v753 = vadd.f32 %v741, %v749
    %754 = vset.pattern.permute.xlu0 14
    %755 = vperm.xlu0 %754, %v352
    %v756 = vpop.permute.xlu0 %755
    %v758 = vmul.f32 %v756, %v510
    %v759 = vmul.f32 %v756, %v511
    %v760 = vmul.f32 %v756, %v512
    %v761 = vmul.f32 %v756, %v513
    %v762 = vadd.f32 %v750, %v758
    %v763 = vadd.f32 %v751, %v759
    %v764 = vadd.f32 %v752, %v760
    %v765 = vadd.f32 %v753, %v761
    %v766 = vadd.f32 %v706, %v762
    %v767 = vadd.f32 %v707, %v763
    %v768 = vadd.f32 %v708, %v764
    %v769 = vadd.f32 %v709, %v765
    %770 = vset.pattern.permute.xlu0 15
    %771 = vperm.xlu0 %770, %v352
    %v772 = vpop.permute.xlu0 %771
    %v774 = vmul.f32 %v772, %v390
    %v775 = vmul.f32 %v772, %v391
    %v776 = vmul.f32 %v772, %v392
    %v777 = vmul.f32 %v772, %v393
    %778 = vset.pattern.permute.xlu0 16
    %779 = vperm.xlu0 %778, %v352
    %v780 = vpop.permute.xlu0 %779
    %v782 = vmul.f32 %v780, %v430
    %v783 = vmul.f32 %v780, %v431
    %v784 = vmul.f32 %v780, %v432
    %v785 = vmul.f32 %v780, %v433
    %v786 = vadd.f32 %v774, %v782
    %v787 = vadd.f32 %v775, %v783
    %v788 = vadd.f32 %v776, %v784
    %v789 = vadd.f32 %v777, %v785
    %790 = vset.pattern.permute.xlu0 17
    %791 = vperm.xlu0 %790, %v352
    %v792 = vpop.permute.xlu0 %791
    %v794 = vmul.f32 %v792, %v348
    %v795 = vmul.f32 %v792, %v349
    %v796 = vmul.f32 %v792, %v350
    %v797 = vmul.f32 %v792, %v351
    %v798 = vadd.f32 %v786, %v794
    %v799 = vadd.f32 %v787, %v795
    %v800 = vadd.f32 %v788, %v796
    %v801 = vadd.f32 %v789, %v797
    %802 = vset.pattern.permute.xlu0 18
    %803 = vperm.xlu0 %802, %v352
    %v804 = vpop.permute.xlu0 %803
    %v806 = vmul.f32 %v804, %v470
    %v807 = vmul.f32 %v804, %v471
    %v808 = vmul.f32 %v804, %v472
    %v809 = vmul.f32 %v804, %v473
    %v810 = vadd.f32 %v798, %v806
    %v811 = vadd.f32 %v799, %v807
    %v812 = vadd.f32 %v800, %v808
    %v813 = vadd.f32 %v801, %v809
    %814 = vset.pattern.permute.xlu0 19
    %815 = vperm.xlu0 %814, %v352
    %v816 = vpop.permute.xlu0 %815
    %v818 = vmul.f32 %v816, %v510
    %v819 = vmul.f32 %v816, %v511
    %v820 = vmul.f32 %v816, %v512
    %v821 = vmul.f32 %v816, %v513
    %v822 = vadd.f32 %v810, %v818
    %v823 = vadd.f32 %v811, %v819
    %v824 = vadd.f32 %v812, %v820
    %v825 = vadd.f32 %v813, %v821
    %826 = vrot.lane.b32.xlu0 %v822, 112
    %v827 = vpop.permute.xlu0 %826
    %828 = vrot.lane.b32.xlu0 %v823, 112
    %v829 = vpop.permute.xlu0 %828
    %830 = vrot.lane.b32.xlu0 %v824, 112
    %v831 = vpop.permute.xlu0 %830
    %832 = vrot.lane.b32.xlu0 %v825, 112
    %v833 = vpop.permute.xlu0 %832
    %vm834 = vcmp.lt.s32.totalorder %v362, 112
    %v835 = vsel %vm834, %v831, %v833
    %v836 = vsel %vm834, %v829, %v831
    %v837 = vsel %vm834, %v827, %v829
    %v838 = vsel %vm834, %v833, %v827
    %s839 = scalar_lea.vmem %s2, 3
    %v840 = vld [vmem:[%s839] ss:$8 sm:$0xf]
    %v842 = vlaneseq
    %v843 = vshrl.u32 %v842, 7
    %v844 = vsub.s32 0, %v843
    %v845 = vrot.slane %v840, %v844
    %v846 = vlaneseq
    %v847 = vshrl.u32 %v846, 7
    %v848 = vsub.s32 1, %v847
    %v849 = vrot.slane %v840, %v848
    %v850 = vlaneseq
    %v851 = vshrl.u32 %v850, 7
    %v852 = vsub.s32 2, %v851
    %v853 = vrot.slane %v840, %v852
    %v854 = vlaneseq
    %v855 = vshrl.u32 %v854, 7
    %v856 = vsub.s32 3, %v855
    %v857 = vrot.slane %v840, %v856
    %v862 = vmul.f32 %v837, %v845
    %v863 = vmul.f32 %v836, %v849
    %v864 = vmul.f32 %v835, %v853
    %v865 = vmul.f32 %v838, %v857
    %v866 = vadd.f32 %v766, %v862
    %v867 = vadd.f32 %v767, %v863
    %v868 = vadd.f32 %v768, %v864
    %v869 = vadd.f32 %v769, %v865
    %870 = vset.pattern.permute.xlu0 20
    %871 = vperm.xlu0 %870, %v352
    %v872 = vpop.permute.xlu0 %871
    %v874 = vmul.f32 %v872, %v390
    %v875 = vmul.f32 %v872, %v391
    %v876 = vmul.f32 %v872, %v392
    %v877 = vmul.f32 %v872, %v393
    %878 = vset.pattern.permute.xlu0 21
    %879 = vperm.xlu0 %878, %v352
    %v880 = vpop.permute.xlu0 %879
    %v882 = vmul.f32 %v880, %v430
    %v883 = vmul.f32 %v880, %v431
    %v884 = vmul.f32 %v880, %v432
    %v885 = vmul.f32 %v880, %v433
    %v886 = vadd.f32 %v874, %v882
    %v887 = vadd.f32 %v875, %v883
    %v888 = vadd.f32 %v876, %v884
    %v889 = vadd.f32 %v877, %v885
    %890 = vset.pattern.permute.xlu0 22
    %891 = vperm.xlu0 %890, %v352
    %v892 = vpop.permute.xlu0 %891
    %v894 = vmul.f32 %v892, %v348
    %v895 = vmul.f32 %v892, %v349
    %v896 = vmul.f32 %v892, %v350
    %v897 = vmul.f32 %v892, %v351
    %v898 = vadd.f32 %v886, %v894
    %v899 = vadd.f32 %v887, %v895
    %v900 = vadd.f32 %v888, %v896
    %v901 = vadd.f32 %v889, %v897
    %902 = vset.pattern.permute.xlu0 23
    %903 = vperm.xlu0 %902, %v352
    %v904 = vpop.permute.xlu0 %903
    %v906 = vmul.f32 %v904, %v470
    %v907 = vmul.f32 %v904, %v471
    %v908 = vmul.f32 %v904, %v472
    %v909 = vmul.f32 %v904, %v473
    %v910 = vadd.f32 %v898, %v906
    %v911 = vadd.f32 %v899, %v907
    %v912 = vadd.f32 %v900, %v908
    %v913 = vadd.f32 %v901, %v909
    %914 = vset.pattern.permute.xlu0 24
    %915 = vperm.xlu0 %914, %v352
    %v916 = vpop.permute.xlu0 %915
    %v918 = vmul.f32 %v916, %v510
    %v919 = vmul.f32 %v916, %v511
    %v920 = vmul.f32 %v916, %v512
    %v921 = vmul.f32 %v916, %v513
    %v922 = vadd.f32 %v910, %v918
    %v923 = vadd.f32 %v911, %v919
    %v924 = vadd.f32 %v912, %v920
    %v925 = vadd.f32 %v913, %v921
    %926 = vrot.lane.b32.xlu0 %v922, 96
    %v927 = vpop.permute.xlu0 %926
    %928 = vrot.lane.b32.xlu0 %v923, 96
    %v929 = vpop.permute.xlu0 %928
    %930 = vrot.lane.b32.xlu0 %v924, 96
    %v931 = vpop.permute.xlu0 %930
    %932 = vrot.lane.b32.xlu0 %v925, 96
    %v933 = vpop.permute.xlu0 %932
    %vm934 = vcmp.lt.s32.totalorder %v362, 96
    %v935 = vsel %vm934, %v931, %v933
    %v936 = vsel %vm934, %v929, %v931
    %v937 = vsel %vm934, %v927, %v929
    %v938 = vsel %vm934, %v933, %v927
    %s939 = scalar_lea.vmem %s2, 4
    %v940 = vld [vmem:[%s939] ss:$8 sm:$0xf]
    %v942 = vlaneseq
    %v943 = vshrl.u32 %v942, 7
    %v944 = vsub.s32 0, %v943
    %v945 = vrot.slane %v940, %v944
    %v946 = vlaneseq
    %v947 = vshrl.u32 %v946, 7
    %v948 = vsub.s32 1, %v947
    %v949 = vrot.slane %v940, %v948
    %v950 = vlaneseq
    %v951 = vshrl.u32 %v950, 7
    %v952 = vsub.s32 2, %v951
    %v953 = vrot.slane %v940, %v952
    %v954 = vlaneseq
    %v955 = vshrl.u32 %v954, 7
    %v956 = vsub.s32 3, %v955
    %v957 = vrot.slane %v940, %v956
    %v962 = vmul.f32 %v937, %v945
    %v963 = vmul.f32 %v936, %v949
    %v964 = vmul.f32 %v935, %v953
    %v965 = vmul.f32 %v938, %v957
    %v966 = vadd.f32 %v866, %v962
    %v967 = vadd.f32 %v867, %v963
    %v968 = vadd.f32 %v868, %v964
    %v969 = vadd.f32 %v869, %v965
    %v970 = vld [vmem:[%s10] sm:$0xff]
    %972 = vset.pattern.permute.xlu0 0
    %973 = vperm.xlu0 %972, %v970
    %v974 = vpop.permute.xlu0 %973
    %v976 = vadd.f32 %v966, %v974
    %v977 = vadd.f32 %v967, %v974
    %v978 = vadd.f32 %v968, %v974
    %v979 = vadd.f32 %v969, %v974
    %v980 = vld [vmem:[%s11] sm:$0xff]
    %981 = vrot.lane.b32.xlu0 %v976, 6
    %v982 = vpop.permute.xlu0 %981
    %983 = vrot.lane.b32.xlu0 %v977, 6
    %v984 = vpop.permute.xlu0 %983
    %985 = vrot.lane.b32.xlu0 %v978, 6
    %v986 = vpop.permute.xlu0 %985
    %987 = vrot.lane.b32.xlu0 %v979, 6
    %v988 = vpop.permute.xlu0 %987
    %vm989 = vcmp.lt.s32.totalorder %v362, 6
    %v990 = vsel %vm989, %v986, %v988
    %v991 = vsel %vm989, %v984, %v986
    %v992 = vsel %vm989, %v982, %v984
    %v993 = vsel %vm989, %v988, %v982
    %v994 = vld [vmem:[%s3] ss:$8 sm:$0xf]
    %v996 = vlaneseq
    %v997 = vshrl.u32 %v996, 7
    %v998 = vsub.s32 0, %v997
    %v999 = vrot.slane %v994, %v998
    %v1000 = vlaneseq
    %v1001 = vshrl.u32 %v1000, 7
    %v1002 = vsub.s32 1, %v1001
    %v1003 = vrot.slane %v994, %v1002
    %v1004 = vlaneseq
    %v1005 = vshrl.u32 %v1004, 7
    %v1006 = vsub.s32 2, %v1005
    %v1007 = vrot.slane %v994, %v1006
    %v1008 = vlaneseq
    %v1009 = vshrl.u32 %v1008, 7
    %v1010 = vsub.s32 3, %v1009
    %v1011 = vrot.slane %v994, %v1010
    %v1016 = vmul.f32 %v993, %v999
    %v1017 = vmul.f32 %v992, %v1003
    %v1018 = vmul.f32 %v991, %v1007
    %v1019 = vmul.f32 %v990, %v1011
    %1020 = vrot.lane.b32.xlu0 %v976, 3
    %v1021 = vpop.permute.xlu0 %1020
    %1022 = vrot.lane.b32.xlu0 %v977, 3
    %v1023 = vpop.permute.xlu0 %1022
    %1024 = vrot.lane.b32.xlu0 %v978, 3
    %v1025 = vpop.permute.xlu0 %1024
    %1026 = vrot.lane.b32.xlu0 %v979, 3
    %v1027 = vpop.permute.xlu0 %1026
    %vm1028 = vcmp.lt.s32.totalorder %v362, 3
    %v1029 = vsel %vm1028, %v1025, %v1027
    %v1030 = vsel %vm1028, %v1023, %v1025
    %v1031 = vsel %vm1028, %v1021, %v1023
    %v1032 = vsel %vm1028, %v1027, %v1021
    %s1033 = scalar_lea.vmem %s3, 1
    %v1034 = vld [vmem:[%s1033] ss:$8 sm:$0xf]
    %v1036 = vlaneseq
    %v1037 = vshrl.u32 %v1036, 7
    %v1038 = vsub.s32 0, %v1037
    %v1039 = vrot.slane %v1034, %v1038
    %v1040 = vlaneseq
    %v1041 = vshrl.u32 %v1040, 7
    %v1042 = vsub.s32 1, %v1041
    %v1043 = vrot.slane %v1034, %v1042
    %v1044 = vlaneseq
    %v1045 = vshrl.u32 %v1044, 7
    %v1046 = vsub.s32 2, %v1045
    %v1047 = vrot.slane %v1034, %v1046
    %v1048 = vlaneseq
    %v1049 = vshrl.u32 %v1048, 7
    %v1050 = vsub.s32 3, %v1049
    %v1051 = vrot.slane %v1034, %v1050
    %v1056 = vmul.f32 %v1032, %v1039
    %v1057 = vmul.f32 %v1031, %v1043
    %v1058 = vmul.f32 %v1030, %v1047
    %v1059 = vmul.f32 %v1029, %v1051
    %1060 = vrot.lane.b32.xlu0 %v976, 125
    %v1061 = vpop.permute.xlu0 %1060
    %1062 = vrot.lane.b32.xlu0 %v977, 125
    %v1063 = vpop.permute.xlu0 %1062
    %1064 = vrot.lane.b32.xlu0 %v978, 125
    %v1065 = vpop.permute.xlu0 %1064
    %1066 = vrot.lane.b32.xlu0 %v979, 125
    %v1067 = vpop.permute.xlu0 %1066
    %vm1068 = vcmp.lt.s32.totalorder %v362, 125
    %v1069 = vsel %vm1068, %v1065, %v1067
    %v1070 = vsel %vm1068, %v1063, %v1065
    %v1071 = vsel %vm1068, %v1061, %v1063
    %v1072 = vsel %vm1068, %v1067, %v1061
    %s1073 = scalar_lea.vmem %s3, 3
    %v1074 = vld [vmem:[%s1073] ss:$8 sm:$0xf]
    %v1076 = vlaneseq
    %v1077 = vshrl.u32 %v1076, 7
    %v1078 = vsub.s32 0, %v1077
    %v1079 = vrot.slane %v1074, %v1078
    %v1080 = vlaneseq
    %v1081 = vshrl.u32 %v1080, 7
    %v1082 = vsub.s32 1, %v1081
    %v1083 = vrot.slane %v1074, %v1082
    %v1084 = vlaneseq
    %v1085 = vshrl.u32 %v1084, 7
    %v1086 = vsub.s32 2, %v1085
    %v1087 = vrot.slane %v1074, %v1086
    %v1088 = vlaneseq
    %v1089 = vshrl.u32 %v1088, 7
    %v1090 = vsub.s32 3, %v1089
    %v1091 = vrot.slane %v1074, %v1090
    %v1096 = vmul.f32 %v1071, %v1079
    %v1097 = vmul.f32 %v1070, %v1083
    %v1098 = vmul.f32 %v1069, %v1087
    %v1099 = vmul.f32 %v1072, %v1091
    %1100 = vrot.lane.b32.xlu0 %v976, 122
    %v1101 = vpop.permute.xlu0 %1100
    %1102 = vrot.lane.b32.xlu0 %v977, 122
    %v1103 = vpop.permute.xlu0 %1102
    %1104 = vrot.lane.b32.xlu0 %v978, 122
    %v1105 = vpop.permute.xlu0 %1104
    %1106 = vrot.lane.b32.xlu0 %v979, 122
    %v1107 = vpop.permute.xlu0 %1106
    %vm1108 = vcmp.lt.s32.totalorder %v362, 122
    %v1109 = vsel %vm1108, %v1105, %v1107
    %v1110 = vsel %vm1108, %v1103, %v1105
    %v1111 = vsel %vm1108, %v1101, %v1103
    %v1112 = vsel %vm1108, %v1107, %v1101
    %s1113 = scalar_lea.vmem %s3, 4
    %v1114 = vld [vmem:[%s1113] ss:$8 sm:$0xf]
    %v1116 = vlaneseq
    %v1117 = vshrl.u32 %v1116, 7
    %v1118 = vsub.s32 0, %v1117
    %v1119 = vrot.slane %v1114, %v1118
    %v1120 = vlaneseq
    %v1121 = vshrl.u32 %v1120, 7
    %v1122 = vsub.s32 1, %v1121
    %v1123 = vrot.slane %v1114, %v1122
    %v1124 = vlaneseq
    %v1125 = vshrl.u32 %v1124, 7
    %v1126 = vsub.s32 2, %v1125
    %v1127 = vrot.slane %v1114, %v1126
    %v1128 = vlaneseq
    %v1129 = vshrl.u32 %v1128, 7
    %v1130 = vsub.s32 3, %v1129
    %v1131 = vrot.slane %v1114, %v1130
    %v1136 = vmul.f32 %v1111, %v1119
    %v1137 = vmul.f32 %v1110, %v1123
    %v1138 = vmul.f32 %v1109, %v1127
    %v1139 = vmul.f32 %v1112, %v1131
    %1141 = vset.pattern.permute.xlu0 0
    %1142 = vperm.xlu0 %1141, %v980
    %v1143 = vpop.permute.xlu0 %1142
    %v1145 = vmul.f32 %v1143, %v1016
    %v1146 = vmul.f32 %v1143, %v1017
    %v1147 = vmul.f32 %v1143, %v1018
    %v1148 = vmul.f32 %v1143, %v1019
    %1149 = vset.pattern.permute.xlu0 1
    %1150 = vperm.xlu0 %1149, %v980
    %v1151 = vpop.permute.xlu0 %1150
    %v1153 = vmul.f32 %v1151, %v1056
    %v1154 = vmul.f32 %v1151, %v1057
    %v1155 = vmul.f32 %v1151, %v1058
    %v1156 = vmul.f32 %v1151, %v1059
    %v1157 = vadd.f32 %v1145, %v1153
    %v1158 = vadd.f32 %v1146, %v1154
    %v1159 = vadd.f32 %v1147, %v1155
    %v1160 = vadd.f32 %v1148, %v1156
    %1161 = vset.pattern.permute.xlu0 2
    %1162 = vperm.xlu0 %1161, %v980
    %v1163 = vpop.permute.xlu0 %1162
    %v1165 = vmul.f32 %v1163, %v976
    %v1166 = vmul.f32 %v1163, %v977
    %v1167 = vmul.f32 %v1163, %v978
    %v1168 = vmul.f32 %v1163, %v979
    %v1169 = vadd.f32 %v1157, %v1165
    %v1170 = vadd.f32 %v1158, %v1166
    %v1171 = vadd.f32 %v1159, %v1167
    %v1172 = vadd.f32 %v1160, %v1168
    %1173 = vset.pattern.permute.xlu0 3
    %1174 = vperm.xlu0 %1173, %v980
    %v1175 = vpop.permute.xlu0 %1174
    %v1177 = vmul.f32 %v1175, %v1096
    %v1178 = vmul.f32 %v1175, %v1097
    %v1179 = vmul.f32 %v1175, %v1098
    %v1180 = vmul.f32 %v1175, %v1099
    %v1181 = vadd.f32 %v1169, %v1177
    %v1182 = vadd.f32 %v1170, %v1178
    %v1183 = vadd.f32 %v1171, %v1179
    %v1184 = vadd.f32 %v1172, %v1180
    %1185 = vset.pattern.permute.xlu0 4
    %1186 = vperm.xlu0 %1185, %v980
    %v1187 = vpop.permute.xlu0 %1186
    %v1189 = vmul.f32 %v1187, %v1136
    %v1190 = vmul.f32 %v1187, %v1137
    %v1191 = vmul.f32 %v1187, %v1138
    %v1192 = vmul.f32 %v1187, %v1139
    %v1193 = vadd.f32 %v1181, %v1189
    %v1194 = vadd.f32 %v1182, %v1190
    %v1195 = vadd.f32 %v1183, %v1191
    %v1196 = vadd.f32 %v1184, %v1192
    %1197 = vrot.lane.b32.xlu0 %v1193, 96
    %v1198 = vpop.permute.xlu0 %1197
    %1199 = vrot.lane.b32.xlu0 %v1194, 96
    %v1200 = vpop.permute.xlu0 %1199
    %1201 = vrot.lane.b32.xlu0 %v1195, 96
    %v1202 = vpop.permute.xlu0 %1201
    %1203 = vrot.lane.b32.xlu0 %v1196, 96
    %v1204 = vpop.permute.xlu0 %1203
    %v1205 = vsel %vm934, %v1202, %v1204
    %v1206 = vsel %vm934, %v1200, %v1202
    %v1207 = vsel %vm934, %v1198, %v1200
    %v1208 = vsel %vm934, %v1204, %v1198
    %v1209 = vld [vmem:[%s4] ss:$8 sm:$0xf]
    %v1211 = vlaneseq
    %v1212 = vshrl.u32 %v1211, 7
    %v1213 = vsub.s32 0, %v1212
    %v1214 = vrot.slane %v1209, %v1213
    %v1215 = vlaneseq
    %v1216 = vshrl.u32 %v1215, 7
    %v1217 = vsub.s32 1, %v1216
    %v1218 = vrot.slane %v1209, %v1217
    %v1219 = vlaneseq
    %v1220 = vshrl.u32 %v1219, 7
    %v1221 = vsub.s32 2, %v1220
    %v1222 = vrot.slane %v1209, %v1221
    %v1223 = vlaneseq
    %v1224 = vshrl.u32 %v1223, 7
    %v1225 = vsub.s32 3, %v1224
    %v1226 = vrot.slane %v1209, %v1225
    %v1231 = vmul.f32 %v1208, %v1214
    %v1232 = vmul.f32 %v1207, %v1218
    %v1233 = vmul.f32 %v1206, %v1222
    %v1234 = vmul.f32 %v1205, %v1226
    %1235 = vset.pattern.permute.xlu0 5
    %1236 = vperm.xlu0 %1235, %v980
    %v1237 = vpop.permute.xlu0 %1236
    %v1239 = vmul.f32 %v1237, %v1016
    %v1240 = vmul.f32 %v1237, %v1017
    %v1241 = vmul.f32 %v1237, %v1018
    %v1242 = vmul.f32 %v1237, %v1019
    %1243 = vset.pattern.permute.xlu0 6
    %1244 = vperm.xlu0 %1243, %v980
    %v1245 = vpop.permute.xlu0 %1244
    %v1247 = vmul.f32 %v1245, %v1056
    %v1248 = vmul.f32 %v1245, %v1057
    %v1249 = vmul.f32 %v1245, %v1058
    %v1250 = vmul.f32 %v1245, %v1059
    %v1251 = vadd.f32 %v1239, %v1247
    %v1252 = vadd.f32 %v1240, %v1248
    %v1253 = vadd.f32 %v1241, %v1249
    %v1254 = vadd.f32 %v1242, %v1250
    %1255 = vset.pattern.permute.xlu0 7
    %1256 = vperm.xlu0 %1255, %v980
    %v1257 = vpop.permute.xlu0 %1256
    %v1259 = vmul.f32 %v1257, %v976
    %v1260 = vmul.f32 %v1257, %v977
    %v1261 = vmul.f32 %v1257, %v978
    %v1262 = vmul.f32 %v1257, %v979
    %v1263 = vadd.f32 %v1251, %v1259
    %v1264 = vadd.f32 %v1252, %v1260
    %v1265 = vadd.f32 %v1253, %v1261
    %v1266 = vadd.f32 %v1254, %v1262
    %1267 = vset.pattern.permute.xlu0 8
    %1268 = vperm.xlu0 %1267, %v980
    %v1269 = vpop.permute.xlu0 %1268
    %v1271 = vmul.f32 %v1269, %v1096
    %v1272 = vmul.f32 %v1269, %v1097
    %v1273 = vmul.f32 %v1269, %v1098
    %v1274 = vmul.f32 %v1269, %v1099
    %v1275 = vadd.f32 %v1263, %v1271
    %v1276 = vadd.f32 %v1264, %v1272
    %v1277 = vadd.f32 %v1265, %v1273
    %v1278 = vadd.f32 %v1266, %v1274
    %1279 = vset.pattern.permute.xlu0 9
    %1280 = vperm.xlu0 %1279, %v980
    %v1281 = vpop.permute.xlu0 %1280
    %v1283 = vmul.f32 %v1281, %v1136
    %v1284 = vmul.f32 %v1281, %v1137
    %v1285 = vmul.f32 %v1281, %v1138
    %v1286 = vmul.f32 %v1281, %v1139
    %v1287 = vadd.f32 %v1275, %v1283
    %v1288 = vadd.f32 %v1276, %v1284
    %v1289 = vadd.f32 %v1277, %v1285
    %v1290 = vadd.f32 %v1278, %v1286
    %1291 = vrot.lane.b32.xlu0 %v1287, 48
    %v1292 = vpop.permute.xlu0 %1291
    %1293 = vrot.lane.b32.xlu0 %v1288, 48
    %v1294 = vpop.permute.xlu0 %1293
    %1295 = vrot.lane.b32.xlu0 %v1289, 48
    %v1296 = vpop.permute.xlu0 %1295
    %1297 = vrot.lane.b32.xlu0 %v1290, 48
    %v1298 = vpop.permute.xlu0 %1297
    %vm1299 = vcmp.lt.s32.totalorder %v362, 48
    %v1300 = vsel %vm1299, %v1296, %v1298
    %v1301 = vsel %vm1299, %v1294, %v1296
    %v1302 = vsel %vm1299, %v1292, %v1294
    %v1303 = vsel %vm1299, %v1298, %v1292
    %s1304 = scalar_lea.vmem %s4, 1
    %v1305 = vld [vmem:[%s1304] ss:$8 sm:$0xf]
    %v1307 = vlaneseq
    %v1308 = vshrl.u32 %v1307, 7
    %v1309 = vsub.s32 0, %v1308
    %v1310 = vrot.slane %v1305, %v1309
    %v1311 = vlaneseq
    %v1312 = vshrl.u32 %v1311, 7
    %v1313 = vsub.s32 1, %v1312
    %v1314 = vrot.slane %v1305, %v1313
    %v1315 = vlaneseq
    %v1316 = vshrl.u32 %v1315, 7
    %v1317 = vsub.s32 2, %v1316
    %v1318 = vrot.slane %v1305, %v1317
    %v1319 = vlaneseq
    %v1320 = vshrl.u32 %v1319, 7
    %v1321 = vsub.s32 3, %v1320
    %v1322 = vrot.slane %v1305, %v1321
    %v1327 = vmul.f32 %v1303, %v1310
    %v1328 = vmul.f32 %v1302, %v1314
    %v1329 = vmul.f32 %v1301, %v1318
    %v1330 = vmul.f32 %v1300, %v1322
    %v1331 = vadd.f32 %v1231, %v1327
    %v1332 = vadd.f32 %v1232, %v1328
    %v1333 = vadd.f32 %v1233, %v1329
    %v1334 = vadd.f32 %v1234, %v1330
    %1335 = vset.pattern.permute.xlu0 10
    %1336 = vperm.xlu0 %1335, %v980
    %v1337 = vpop.permute.xlu0 %1336
    %v1339 = vmul.f32 %v1337, %v1016
    %v1340 = vmul.f32 %v1337, %v1017
    %v1341 = vmul.f32 %v1337, %v1018
    %v1342 = vmul.f32 %v1337, %v1019
    %1343 = vset.pattern.permute.xlu0 11
    %1344 = vperm.xlu0 %1343, %v980
    %v1345 = vpop.permute.xlu0 %1344
    %v1347 = vmul.f32 %v1345, %v1056
    %v1348 = vmul.f32 %v1345, %v1057
    %v1349 = vmul.f32 %v1345, %v1058
    %v1350 = vmul.f32 %v1345, %v1059
    %v1351 = vadd.f32 %v1339, %v1347
    %v1352 = vadd.f32 %v1340, %v1348
    %v1353 = vadd.f32 %v1341, %v1349
    %v1354 = vadd.f32 %v1342, %v1350
    %1355 = vset.pattern.permute.xlu0 12
    %1356 = vperm.xlu0 %1355, %v980
    %v1357 = vpop.permute.xlu0 %1356
    %v1359 = vmul.f32 %v1357, %v976
    %v1360 = vmul.f32 %v1357, %v977
    %v1361 = vmul.f32 %v1357, %v978
    %v1362 = vmul.f32 %v1357, %v979
    %v1363 = vadd.f32 %v1351, %v1359
    %v1364 = vadd.f32 %v1352, %v1360
    %v1365 = vadd.f32 %v1353, %v1361
    %v1366 = vadd.f32 %v1354, %v1362
    %1367 = vset.pattern.permute.xlu0 13
    %1368 = vperm.xlu0 %1367, %v980
    %v1369 = vpop.permute.xlu0 %1368
    %v1371 = vmul.f32 %v1369, %v1096
    %v1372 = vmul.f32 %v1369, %v1097
    %v1373 = vmul.f32 %v1369, %v1098
    %v1374 = vmul.f32 %v1369, %v1099
    %v1375 = vadd.f32 %v1363, %v1371
    %v1376 = vadd.f32 %v1364, %v1372
    %v1377 = vadd.f32 %v1365, %v1373
    %v1378 = vadd.f32 %v1366, %v1374
    %1379 = vset.pattern.permute.xlu0 14
    %1380 = vperm.xlu0 %1379, %v980
    %v1381 = vpop.permute.xlu0 %1380
    %v1383 = vmul.f32 %v1381, %v1136
    %v1384 = vmul.f32 %v1381, %v1137
    %v1385 = vmul.f32 %v1381, %v1138
    %v1386 = vmul.f32 %v1381, %v1139
    %v1387 = vadd.f32 %v1375, %v1383
    %v1388 = vadd.f32 %v1376, %v1384
    %v1389 = vadd.f32 %v1377, %v1385
    %v1390 = vadd.f32 %v1378, %v1386
    %v1391 = vadd.f32 %v1331, %v1387
    %v1392 = vadd.f32 %v1332, %v1388
    %v1393 = vadd.f32 %v1333, %v1389
    %v1394 = vadd.f32 %v1334, %v1390
    %1395 = vset.pattern.permute.xlu0 15
    %1396 = vperm.xlu0 %1395, %v980
    %v1397 = vpop.permute.xlu0 %1396
    %v1399 = vmul.f32 %v1397, %v1016
    %v1400 = vmul.f32 %v1397, %v1017
    %v1401 = vmul.f32 %v1397, %v1018
    %v1402 = vmul.f32 %v1397, %v1019
    %1403 = vset.pattern.permute.xlu0 16
    %1404 = vperm.xlu0 %1403, %v980
    %v1405 = vpop.permute.xlu0 %1404
    %v1407 = vmul.f32 %v1405, %v1056
    %v1408 = vmul.f32 %v1405, %v1057
    %v1409 = vmul.f32 %v1405, %v1058
    %v1410 = vmul.f32 %v1405, %v1059
    %v1411 = vadd.f32 %v1399, %v1407
    %v1412 = vadd.f32 %v1400, %v1408
    %v1413 = vadd.f32 %v1401, %v1409
    %v1414 = vadd.f32 %v1402, %v1410
    %1415 = vset.pattern.permute.xlu0 17
    %1416 = vperm.xlu0 %1415, %v980
    %v1417 = vpop.permute.xlu0 %1416
    %v1419 = vmul.f32 %v1417, %v976
    %v1420 = vmul.f32 %v1417, %v977
    %v1421 = vmul.f32 %v1417, %v978
    %v1422 = vmul.f32 %v1417, %v979
    %v1423 = vadd.f32 %v1411, %v1419
    %v1424 = vadd.f32 %v1412, %v1420
    %v1425 = vadd.f32 %v1413, %v1421
    %v1426 = vadd.f32 %v1414, %v1422
    %1427 = vset.pattern.permute.xlu0 18
    %1428 = vperm.xlu0 %1427, %v980
    %v1429 = vpop.permute.xlu0 %1428
    %v1431 = vmul.f32 %v1429, %v1096
    %v1432 = vmul.f32 %v1429, %v1097
    %v1433 = vmul.f32 %v1429, %v1098
    %v1434 = vmul.f32 %v1429, %v1099
    %v1435 = vadd.f32 %v1423, %v1431
    %v1436 = vadd.f32 %v1424, %v1432
    %v1437 = vadd.f32 %v1425, %v1433
    %v1438 = vadd.f32 %v1426, %v1434
    %1439 = vset.pattern.permute.xlu0 19
    %1440 = vperm.xlu0 %1439, %v980
    %v1441 = vpop.permute.xlu0 %1440
    %v1443 = vmul.f32 %v1441, %v1136
    %v1444 = vmul.f32 %v1441, %v1137
    %v1445 = vmul.f32 %v1441, %v1138
    %v1446 = vmul.f32 %v1441, %v1139
    %v1447 = vadd.f32 %v1435, %v1443
    %v1448 = vadd.f32 %v1436, %v1444
    %v1449 = vadd.f32 %v1437, %v1445
    %v1450 = vadd.f32 %v1438, %v1446
    %1451 = vrot.lane.b32.xlu0 %v1447, 80
    %v1452 = vpop.permute.xlu0 %1451
    %1453 = vrot.lane.b32.xlu0 %v1448, 80
    %v1454 = vpop.permute.xlu0 %1453
    %1455 = vrot.lane.b32.xlu0 %v1449, 80
    %v1456 = vpop.permute.xlu0 %1455
    %1457 = vrot.lane.b32.xlu0 %v1450, 80
    %v1458 = vpop.permute.xlu0 %1457
    %vm1459 = vcmp.lt.s32.totalorder %v362, 80
    %v1460 = vsel %vm1459, %v1456, %v1458
    %v1461 = vsel %vm1459, %v1454, %v1456
    %v1462 = vsel %vm1459, %v1452, %v1454
    %v1463 = vsel %vm1459, %v1458, %v1452
    %s1464 = scalar_lea.vmem %s4, 3
    %v1465 = vld [vmem:[%s1464] ss:$8 sm:$0xf]
    %v1467 = vlaneseq
    %v1468 = vshrl.u32 %v1467, 7
    %v1469 = vsub.s32 0, %v1468
    %v1470 = vrot.slane %v1465, %v1469
    %v1471 = vlaneseq
    %v1472 = vshrl.u32 %v1471, 7
    %v1473 = vsub.s32 1, %v1472
    %v1474 = vrot.slane %v1465, %v1473
    %v1475 = vlaneseq
    %v1476 = vshrl.u32 %v1475, 7
    %v1477 = vsub.s32 2, %v1476
    %v1478 = vrot.slane %v1465, %v1477
    %v1479 = vlaneseq
    %v1480 = vshrl.u32 %v1479, 7
    %v1481 = vsub.s32 3, %v1480
    %v1482 = vrot.slane %v1465, %v1481
    %v1487 = vmul.f32 %v1462, %v1470
    %v1488 = vmul.f32 %v1461, %v1474
    %v1489 = vmul.f32 %v1460, %v1478
    %v1490 = vmul.f32 %v1463, %v1482
    %v1491 = vadd.f32 %v1391, %v1487
    %v1492 = vadd.f32 %v1392, %v1488
    %v1493 = vadd.f32 %v1393, %v1489
    %v1494 = vadd.f32 %v1394, %v1490
    %1495 = vset.pattern.permute.xlu0 20
    %1496 = vperm.xlu0 %1495, %v980
    %v1497 = vpop.permute.xlu0 %1496
    %v1499 = vmul.f32 %v1497, %v1016
    %v1500 = vmul.f32 %v1497, %v1017
    %v1501 = vmul.f32 %v1497, %v1018
    %v1502 = vmul.f32 %v1497, %v1019
    %1503 = vset.pattern.permute.xlu0 21
    %1504 = vperm.xlu0 %1503, %v980
    %v1505 = vpop.permute.xlu0 %1504
    %v1507 = vmul.f32 %v1505, %v1056
    %v1508 = vmul.f32 %v1505, %v1057
    %v1509 = vmul.f32 %v1505, %v1058
    %v1510 = vmul.f32 %v1505, %v1059
    %v1511 = vadd.f32 %v1499, %v1507
    %v1512 = vadd.f32 %v1500, %v1508
    %v1513 = vadd.f32 %v1501, %v1509
    %v1514 = vadd.f32 %v1502, %v1510
    %1515 = vset.pattern.permute.xlu0 22
    %1516 = vperm.xlu0 %1515, %v980
    %v1517 = vpop.permute.xlu0 %1516
    %v1519 = vmul.f32 %v1517, %v976
    %v1520 = vmul.f32 %v1517, %v977
    %v1521 = vmul.f32 %v1517, %v978
    %v1522 = vmul.f32 %v1517, %v979
    %v1523 = vadd.f32 %v1511, %v1519
    %v1524 = vadd.f32 %v1512, %v1520
    %v1525 = vadd.f32 %v1513, %v1521
    %v1526 = vadd.f32 %v1514, %v1522
    %1527 = vset.pattern.permute.xlu0 23
    %1528 = vperm.xlu0 %1527, %v980
    %v1529 = vpop.permute.xlu0 %1528
    %v1531 = vmul.f32 %v1529, %v1096
    %v1532 = vmul.f32 %v1529, %v1097
    %v1533 = vmul.f32 %v1529, %v1098
    %v1534 = vmul.f32 %v1529, %v1099
    %v1535 = vadd.f32 %v1523, %v1531
    %v1536 = vadd.f32 %v1524, %v1532
    %v1537 = vadd.f32 %v1525, %v1533
    %v1538 = vadd.f32 %v1526, %v1534
    %1539 = vset.pattern.permute.xlu0 24
    %1540 = vperm.xlu0 %1539, %v980
    %v1541 = vpop.permute.xlu0 %1540
    %v1543 = vmul.f32 %v1541, %v1136
    %v1544 = vmul.f32 %v1541, %v1137
    %v1545 = vmul.f32 %v1541, %v1138
    %v1546 = vmul.f32 %v1541, %v1139
    %v1547 = vadd.f32 %v1535, %v1543
    %v1548 = vadd.f32 %v1536, %v1544
    %v1549 = vadd.f32 %v1537, %v1545
    %v1550 = vadd.f32 %v1538, %v1546
    %1551 = vrot.lane.b32.xlu0 %v1547, 32
    %v1552 = vpop.permute.xlu0 %1551
    %1553 = vrot.lane.b32.xlu0 %v1548, 32
    %v1554 = vpop.permute.xlu0 %1553
    %1555 = vrot.lane.b32.xlu0 %v1549, 32
    %v1556 = vpop.permute.xlu0 %1555
    %1557 = vrot.lane.b32.xlu0 %v1550, 32
    %v1558 = vpop.permute.xlu0 %1557
    %v1559 = vsel %vm579, %v1556, %v1558
    %v1560 = vsel %vm579, %v1554, %v1556
    %v1561 = vsel %vm579, %v1552, %v1554
    %v1562 = vsel %vm579, %v1558, %v1552
    %s1563 = scalar_lea.vmem %s4, 4
    %v1564 = vld [vmem:[%s1563] ss:$8 sm:$0xf]
    %v1566 = vlaneseq
    %v1567 = vshrl.u32 %v1566, 7
    %v1568 = vsub.s32 0, %v1567
    %v1569 = vrot.slane %v1564, %v1568
    %v1570 = vlaneseq
    %v1571 = vshrl.u32 %v1570, 7
    %v1572 = vsub.s32 1, %v1571
    %v1573 = vrot.slane %v1564, %v1572
    %v1574 = vlaneseq
    %v1575 = vshrl.u32 %v1574, 7
    %v1576 = vsub.s32 2, %v1575
    %v1577 = vrot.slane %v1564, %v1576
    %v1578 = vlaneseq
    %v1579 = vshrl.u32 %v1578, 7
    %v1580 = vsub.s32 3, %v1579
    %v1581 = vrot.slane %v1564, %v1580
    %v1586 = vmul.f32 %v1561, %v1569
    %v1587 = vmul.f32 %v1560, %v1573
    %v1588 = vmul.f32 %v1559, %v1577
    %v1589 = vmul.f32 %v1562, %v1581
    %v1590 = vadd.f32 %v1491, %v1586
    %v1591 = vadd.f32 %v1492, %v1587
    %v1592 = vadd.f32 %v1493, %v1588
    %v1593 = vadd.f32 %v1494, %v1589
    %v1594 = vld [vmem:[%s12] sm:$0xff]
    %1596 = vset.pattern.permute.xlu0 0
    %1597 = vperm.xlu0 %1596, %v1594
    %v1598 = vpop.permute.xlu0 %1597
    %v1600 = vadd.f32 %v1590, %v1598
    %v1601 = vadd.f32 %v1591, %v1598
    %v1602 = vadd.f32 %v1592, %v1598
    %v1603 = vadd.f32 %v1593, %v1598
    %v1604 = vld [vmem:[%s13] sm:$0xff]
    %v1605 = vld [vmem:[%s14] sm:$0xff]
    %1607 = vset.pattern.permute.xlu0 0
    %1608 = vperm.xlu0 %1607, %v1605
    %v1609 = vpop.permute.xlu0 %1608
    %v1612 = vsel %vm74, %v1604, 0
    %1614 = vmatprep.subr.mxu0 %v1601
    %1615 = vmatpush1.msra.mxu0 %v1600
    %1616 = vmatprep.subr.mxu0 0.0
    %1617 = vmatpush1.msra.mxu0 0.0
    %1618 = vmatprep.subr.mxu0 0.0
    %1619 = vmatpush1.msra.mxu0 0.0
    %1620 = vmatprep.subr.mxu0 0.0
    %1621 = vmatpush1.msra.mxu0 0.0
    %1622 = vmatprep.subr.mxu0 0.0
    %1623 = vmatpush1.msra.mxu0 0.0
    %1624 = vmatprep.subr.mxu0 0.0
    %1625 = vmatpush1.msra.mxu0 0.0
    %1626 = vmatprep.subr.mxu0 0.0
    %1627 = vmatpush1.msra.mxu0 0.0
    %1628 = vmatprep.subr.mxu0 0.0
    %1629 = vmatpush1.msra.mxu0 0.0
    %1630 = vmatprep.subr.mxu0 0.0
    %1631 = vmatpush1.msra.mxu0 0.0
    %1632 = vmatprep.subr.mxu0 0.0
    %1633 = vmatpush1.msra.mxu0 0.0
    %1634 = vmatprep.subr.mxu0 0.0
    %1635 = vmatpush1.msra.mxu0 0.0
    %1636 = vmatprep.subr.mxu0 0.0
    %1637 = vmatpush1.msra.mxu0 0.0
    %1638 = vmatprep.subr.mxu0 0.0
    %1639 = vmatpush1.msra.mxu0 0.0
    %1640 = vmatprep.subr.mxu0 0.0
    %1641 = vmatpush1.msra.mxu0 0.0
    %1642 = vmatprep.subr.mxu0 0.0
    %1643 = vmatpush1.msra.mxu0 0.0
    %1644 = vmatprep.subr.mxu0 0.0
    %1645 = vmatpush1.msra.mxu0 0.0
    %1646 = vmatprep.subr.mxu0 0.0
    %1647 = vmatpush1.msra.mxu0 0.0
    %1648 = vmatprep.subr.mxu0 0.0
    %1649 = vmatpush1.msra.mxu0 0.0
    %1650 = vmatprep.subr.mxu0 0.0
    %1651 = vmatpush1.msra.mxu0 0.0
    %1652 = vmatprep.subr.mxu0 0.0
    %1653 = vmatpush1.msra.mxu0 0.0
    %1654 = vmatprep.subr.mxu0 0.0
    %1655 = vmatpush1.msra.mxu0 0.0
    %1656 = vmatprep.subr.mxu0 0.0
    %1657 = vmatpush1.msra.mxu0 0.0
    %1658 = vmatprep.subr.mxu0 0.0
    %1659 = vmatpush1.msra.mxu0 0.0
    %1660 = vmatprep.subr.mxu0 0.0
    %1661 = vmatpush1.msra.mxu0 0.0
    %1662 = vmatprep.subr.mxu0 0.0
    %1663 = vmatpush1.msra.mxu0 0.0
    %1664 = vmatprep.subr.mxu0 0.0
    %1665 = vmatpush1.msra.mxu0 0.0
    %1666 = vmatprep.subr.mxu0 0.0
    %1667 = vmatpush1.msra.mxu0 0.0
    %1668 = vmatprep.subr.mxu0 0.0
    %1669 = vmatpush1.msra.mxu0 0.0
    %1670 = vmatprep.subr.mxu0 0.0
    %1671 = vmatpush1.msra.mxu0 0.0
    %1672 = vmatprep.subr.mxu0 0.0
    %1673 = vmatpush1.msra.mxu0 0.0
    %1674 = vmatprep.subr.mxu0 0.0
    %1675 = vmatpush1.msra.mxu0 0.0
    %1676 = vmatprep.subr.mxu0 0.0
    %1677 = vmatpush1.msra.mxu0 0.0
    %1678 = vmatprep.mubr.f32.mxu0 0.0
    %1679 = vmatmul.mubr.f32.gmra.mrb[0].mxu0 %v1612
    %v1680 = vpop.f32.mrb[0].mxu0
    %v1681 = vadd.f32 %v1609, %v1680
    %v1682 = vpop.f32.mrb[0].mxu0
    %v1683 = vadd.f32 %v1609, %v1682
    %1684 = vdwg.mxu0
    %1685 = vmatprep.subr.mxu0 %v1603
    %1686 = vmatpush1.msra.mxu0 %v1602
    %1687 = vmatprep.subr.mxu0 0.0
    %1688 = vmatpush1.msra.mxu0 0.0
    %1689 = vmatprep.subr.mxu0 0.0
    %1690 = vmatpush1.msra.mxu0 0.0
    %1691 = vmatprep.subr.mxu0 0.0
    %1692 = vmatpush1.msra.mxu0 0.0
    %1693 = vmatprep.subr.mxu0 0.0
    %1694 = vmatpush1.msra.mxu0 0.0
    %1695 = vmatprep.subr.mxu0 0.0
    %1696 = vmatpush1.msra.mxu0 0.0
    %1697 = vmatprep.subr.mxu0 0.0
    %1698 = vmatpush1.msra.mxu0 0.0
    %1699 = vmatprep.subr.mxu0 0.0
    %1700 = vmatpush1.msra.mxu0 0.0
    %1701 = vmatprep.subr.mxu0 0.0
    %1702 = vmatpush1.msra.mxu0 0.0
    %1703 = vmatprep.subr.mxu0 0.0
    %1704 = vmatpush1.msra.mxu0 0.0
    %1705 = vmatprep.subr.mxu0 0.0
    %1706 = vmatpush1.msra.mxu0 0.0
    %1707 = vmatprep.subr.mxu0 0.0
    %1708 = vmatpush1.msra.mxu0 0.0
    %1709 = vmatprep.subr.mxu0 0.0
    %1710 = vmatpush1.msra.mxu0 0.0
    %1711 = vmatprep.subr.mxu0 0.0
    %1712 = vmatpush1.msra.mxu0 0.0
    %1713 = vmatprep.subr.mxu0 0.0
    %1714 = vmatpush1.msra.mxu0 0.0
    %1715 = vmatprep.subr.mxu0 0.0
    %1716 = vmatpush1.msra.mxu0 0.0
    %1717 = vmatprep.subr.mxu0 0.0
    %1718 = vmatpush1.msra.mxu0 0.0
    %1719 = vmatprep.subr.mxu0 0.0
    %1720 = vmatpush1.msra.mxu0 0.0
    %1721 = vmatprep.subr.mxu0 0.0
    %1722 = vmatpush1.msra.mxu0 0.0
    %1723 = vmatprep.subr.mxu0 0.0
    %1724 = vmatpush1.msra.mxu0 0.0
    %1725 = vmatprep.subr.mxu0 0.0
    %1726 = vmatpush1.msra.mxu0 0.0
    %1727 = vmatprep.subr.mxu0 0.0
    %1728 = vmatpush1.msra.mxu0 0.0
    %1729 = vmatprep.subr.mxu0 0.0
    %1730 = vmatpush1.msra.mxu0 0.0
    %1731 = vmatprep.subr.mxu0 0.0
    %1732 = vmatpush1.msra.mxu0 0.0
    %1733 = vmatprep.subr.mxu0 0.0
    %1734 = vmatpush1.msra.mxu0 0.0
    %1735 = vmatprep.subr.mxu0 0.0
    %1736 = vmatpush1.msra.mxu0 0.0
    %1737 = vmatprep.subr.mxu0 0.0
    %1738 = vmatpush1.msra.mxu0 0.0
    %1739 = vmatprep.subr.mxu0 0.0
    %1740 = vmatpush1.msra.mxu0 0.0
    %1741 = vmatprep.subr.mxu0 0.0
    %1742 = vmatpush1.msra.mxu0 0.0
    %1743 = vmatprep.subr.mxu0 0.0
    %1744 = vmatpush1.msra.mxu0 0.0
    %1745 = vmatprep.subr.mxu0 0.0
    %1746 = vmatpush1.msra.mxu0 0.0
    %1747 = vmatprep.subr.mxu0 0.0
    %1748 = vmatpush1.msra.mxu0 0.0
    %1749 = vmatprep.mubr.f32.mxu0 0.0
    %1750 = vmatmul.mubr.f32.gmra.mrb[0].mxu0 %v1612
    %v1751 = vpop.f32.mrb[0].mxu0
    %v1752 = vadd.f32 %v1609, %v1751
    %v1753 = vpop.f32.mrb[0].mxu0
    %v1754 = vadd.f32 %v1609, %v1753
    %1755 = vdwg.mxu0
    %v1756 = vld [vmem:[%s5] sm:$0xff]
    %v1757 = vld [vmem:[%s5 + $0x8] sm:$0xff]
    %v1758 = vld [vmem:[%s5 + $0x10] sm:$0xff]
    %v1759 = vld [vmem:[%s5 + $0x18] sm:$0xff]
    %v1760 = vld [vmem:[%s5 + $0x20] sm:$0xff]
    %v1761 = vld [vmem:[%s5 + $0x28] sm:$0xff]
    %v1762 = vld [vmem:[%s5 + $0x30] sm:$0xff]
    %v1763 = vld [vmem:[%s5 + $0x38] sm:$0xff]
    %v1764 = vld [vmem:[%s5 + $0x40] sm:$0xff]
    %v1765 = vld [vmem:[%s5 + $0x48] sm:$0xff]
    %v1766 = vld [vmem:[%s5 + $0x50] sm:$0xff]
    %v1767 = vld [vmem:[%s5 + $0x58] sm:$0xff]
    %v1768 = vld [vmem:[%s5 + $0x60] sm:$0xff]
    %v1769 = vld [vmem:[%s5 + $0x68] sm:$0xff]
    %v1770 = vld [vmem:[%s5 + $0x70] sm:$0xff]
    %v1771 = vld [vmem:[%s5 + $0x78] sm:$0xff]
    %v1772 = vld [vmem:[%s5 + $0x80] sm:$0xff]
    %v1773 = vld [vmem:[%s5 + $0x88] sm:$0xff]
    %v1774 = vld [vmem:[%s5 + $0x90] sm:$0xff]
    %v1775 = vld [vmem:[%s5 + $0x98] sm:$0xff]
    %v1776 = vld [vmem:[%s5 + $0xa0] sm:$0xff]
    %v1777 = vld [vmem:[%s5 + $0xa8] sm:$0xff]
    %v1778 = vld [vmem:[%s5 + $0xb0] sm:$0xff]
    %v1779 = vld [vmem:[%s5 + $0xb8] sm:$0xff]
    %v1780 = vld [vmem:[%s5 + $0xc0] sm:$0xff]
    %v1781 = vld [vmem:[%s5 + $0xc8] sm:$0xff]
    %v1782 = vld [vmem:[%s5 + $0xd0] sm:$0xff]
    %v1783 = vld [vmem:[%s5 + $0xd8] sm:$0xff]
    %v1784 = vld [vmem:[%s5 + $0xe0] sm:$0xff]
    %v1785 = vld [vmem:[%s5 + $0xe8] sm:$0xff]
    %v1786 = vld [vmem:[%s5 + $0xf0] sm:$0xff]
    %v1787 = vld [vmem:[%s5 + $0xf8] sm:$0xff]
    %v1788 = vld [vmem:[%s5 + $0x100] sm:$0xff]
    %v1789 = vld [vmem:[%s5 + $0x108] sm:$0xff]
    %v1790 = vld [vmem:[%s5 + $0x110] sm:$0xff]
    %v1791 = vld [vmem:[%s5 + $0x118] sm:$0xff]
    %v1792 = vld [vmem:[%s5 + $0x120] sm:$0xff]
    %v1793 = vld [vmem:[%s5 + $0x128] sm:$0xff]
    %v1794 = vld [vmem:[%s5 + $0x130] sm:$0xff]
    %v1795 = vld [vmem:[%s5 + $0x138] sm:$0xff]
    %v1796 = vld [vmem:[%s5 + $0x140] sm:$0xff]
    %v1797 = vld [vmem:[%s5 + $0x148] sm:$0xff]
    %v1798 = vld [vmem:[%s5 + $0x150] sm:$0xff]
    %v1799 = vld [vmem:[%s5 + $0x158] sm:$0xff]
    %v1800 = vld [vmem:[%s5 + $0x160] sm:$0xff]
    %v1801 = vld [vmem:[%s5 + $0x168] sm:$0xff]
    %v1802 = vld [vmem:[%s5 + $0x170] sm:$0xff]
    %v1803 = vld [vmem:[%s5 + $0x178] sm:$0xff]
    %v1804 = vld [vmem:[%s5 + $0x180] sm:$0xff]
    %v1805 = vld [vmem:[%s5 + $0x188] sm:$0xff]
    %v1806 = vld [vmem:[%s5 + $0x190] sm:$0xff]
    %v1807 = vld [vmem:[%s5 + $0x198] sm:$0xff]
    %v1808 = vld [vmem:[%s5 + $0x1a0] sm:$0xff]
    %v1809 = vld [vmem:[%s5 + $0x1a8] sm:$0xff]
    %v1810 = vld [vmem:[%s5 + $0x1b0] sm:$0xff]
    %v1811 = vld [vmem:[%s5 + $0x1b8] sm:$0xff]
    %v1812 = vld [vmem:[%s5 + $0x1c0] sm:$0xff]
    %v1813 = vld [vmem:[%s5 + $0x1c8] sm:$0xff]
    %v1814 = vld [vmem:[%s5 + $0x1d0] sm:$0xff]
    %v1815 = vld [vmem:[%s5 + $0x1d8] sm:$0xff]
    %v1816 = vld [vmem:[%s5 + $0x1e0] sm:$0xff]
    %v1817 = vld [vmem:[%s5 + $0x1e8] sm:$0xff]
    %v1818 = vld [vmem:[%s5 + $0x1f0] sm:$0xff]
    %v1819 = vld [vmem:[%s5 + $0x1f8] sm:$0xff]
    %1820 = vmatprep.subr.mxu0 0.0
    %1821 = vmatpush1.msra.mxu0 %v1756
    %1822 = vmatprep.subr.mxu0 0.0
    %1823 = vmatpush1.msra.mxu0 %v1757
    %1824 = vmatprep.subr.mxu0 0.0
    %1825 = vmatpush1.msra.mxu0 %v1758
    %1826 = vmatprep.subr.mxu0 0.0
    %1827 = vmatpush1.msra.mxu0 %v1759
    %1828 = vmatprep.subr.mxu0 0.0
    %1829 = vmatpush1.msra.mxu0 %v1760
    %1830 = vmatprep.subr.mxu0 0.0
    %1831 = vmatpush1.msra.mxu0 %v1761
    %1832 = vmatprep.subr.mxu0 0.0
    %1833 = vmatpush1.msra.mxu0 %v1762
    %1834 = vmatprep.subr.mxu0 0.0
    %1835 = vmatpush1.msra.mxu0 %v1763
    %1836 = vmatprep.subr.mxu0 0.0
    %1837 = vmatpush1.msra.mxu0 %v1764
    %1838 = vmatprep.subr.mxu0 0.0
    %1839 = vmatpush1.msra.mxu0 %v1765
    %1840 = vmatprep.subr.mxu0 0.0
    %1841 = vmatpush1.msra.mxu0 %v1766
    %1842 = vmatprep.subr.mxu0 0.0
    %1843 = vmatpush1.msra.mxu0 %v1767
    %1844 = vmatprep.subr.mxu0 0.0
    %1845 = vmatpush1.msra.mxu0 %v1768
    %1846 = vmatprep.subr.mxu0 0.0
    %1847 = vmatpush1.msra.mxu0 %v1769
    %1848 = vmatprep.subr.mxu0 0.0
    %1849 = vmatpush1.msra.mxu0 %v1770
    %1850 = vmatprep.subr.mxu0 0.0
    %1851 = vmatpush1.msra.mxu0 %v1771
    %1852 = vmatprep.subr.mxu0 0.0
    %1853 = vmatpush1.msra.mxu0 %v1772
    %1854 = vmatprep.subr.mxu0 0.0
    %1855 = vmatpush1.msra.mxu0 %v1773
    %1856 = vmatprep.subr.mxu0 0.0
    %1857 = vmatpush1.msra.mxu0 %v1774
    %1858 = vmatprep.subr.mxu0 0.0
    %1859 = vmatpush1.msra.mxu0 %v1775
    %1860 = vmatprep.subr.mxu0 0.0
    %1861 = vmatpush1.msra.mxu0 %v1776
    %1862 = vmatprep.subr.mxu0 0.0
    %1863 = vmatpush1.msra.mxu0 %v1777
    %1864 = vmatprep.subr.mxu0 0.0
    %1865 = vmatpush1.msra.mxu0 %v1778
    %1866 = vmatprep.subr.mxu0 0.0
    %1867 = vmatpush1.msra.mxu0 %v1779
    %1868 = vmatprep.subr.mxu0 0.0
    %1869 = vmatpush1.msra.mxu0 %v1780
    %1870 = vmatprep.subr.mxu0 0.0
    %1871 = vmatpush1.msra.mxu0 %v1781
    %1872 = vmatprep.subr.mxu0 0.0
    %1873 = vmatpush1.msra.mxu0 %v1782
    %1874 = vmatprep.subr.mxu0 0.0
    %1875 = vmatpush1.msra.mxu0 %v1783
    %1876 = vmatprep.subr.mxu0 0.0
    %1877 = vmatpush1.msra.mxu0 %v1784
    %1878 = vmatprep.subr.mxu0 0.0
    %1879 = vmatpush1.msra.mxu0 %v1785
    %1880 = vmatprep.subr.mxu0 0.0
    %1881 = vmatpush1.msra.mxu0 %v1786
    %1882 = vmatprep.subr.mxu0 0.0
    %1883 = vmatpush1.msra.mxu0 %v1787
    %1884 = vmatprep.mubr.f32.mxu0 %v349
    %1885 = vmatmul.mubr.f32.gmra.mrb[0].mxu0 %v348
    %v1886 = vpop.f32.mrb[0].mxu0
    %v1887 = vadd.f32 0.0, %v1886
    %v1888 = vpop.f32.mrb[0].mxu0
    %1889 = vdwg.mxu0
    %1890 = vmatprep.subr.mxu0 0.0
    %1891 = vmatpush1.msra.mxu0 %v1788
    %1892 = vmatprep.subr.mxu0 0.0
    %1893 = vmatpush1.msra.mxu0 %v1789
    %1894 = vmatprep.subr.mxu0 0.0
    %1895 = vmatpush1.msra.mxu0 %v1790
    %1896 = vmatprep.subr.mxu0 0.0
    %1897 = vmatpush1.msra.mxu0 %v1791
    %1898 = vmatprep.subr.mxu0 0.0
    %1899 = vmatpush1.msra.mxu0 %v1792
    %1900 = vmatprep.subr.mxu0 0.0
    %1901 = vmatpush1.msra.mxu0 %v1793
    %1902 = vmatprep.subr.mxu0 0.0
    %1903 = vmatpush1.msra.mxu0 %v1794
    %1904 = vmatprep.subr.mxu0 0.0
    %1905 = vmatpush1.msra.mxu0 %v1795
    %1906 = vmatprep.subr.mxu0 0.0
    %1907 = vmatpush1.msra.mxu0 %v1796
    %1908 = vmatprep.subr.mxu0 0.0
    %1909 = vmatpush1.msra.mxu0 %v1797
    %1910 = vmatprep.subr.mxu0 0.0
    %1911 = vmatpush1.msra.mxu0 %v1798
    %1912 = vmatprep.subr.mxu0 0.0
    %1913 = vmatpush1.msra.mxu0 %v1799
    %1914 = vmatprep.subr.mxu0 0.0
    %1915 = vmatpush1.msra.mxu0 %v1800
    %1916 = vmatprep.subr.mxu0 0.0
    %1917 = vmatpush1.msra.mxu0 %v1801
    %1918 = vmatprep.subr.mxu0 0.0
    %1919 = vmatpush1.msra.mxu0 %v1802
    %1920 = vmatprep.subr.mxu0 0.0
    %1921 = vmatpush1.msra.mxu0 %v1803
    %1922 = vmatprep.subr.mxu0 0.0
    %1923 = vmatpush1.msra.mxu0 %v1804
    %1924 = vmatprep.subr.mxu0 0.0
    %1925 = vmatpush1.msra.mxu0 %v1805
    %1926 = vmatprep.subr.mxu0 0.0
    %1927 = vmatpush1.msra.mxu0 %v1806
    %1928 = vmatprep.subr.mxu0 0.0
    %1929 = vmatpush1.msra.mxu0 %v1807
    %1930 = vmatprep.subr.mxu0 0.0
    %1931 = vmatpush1.msra.mxu0 %v1808
    %1932 = vmatprep.subr.mxu0 0.0
    %1933 = vmatpush1.msra.mxu0 %v1809
    %1934 = vmatprep.subr.mxu0 0.0
    %1935 = vmatpush1.msra.mxu0 %v1810
    %1936 = vmatprep.subr.mxu0 0.0
    %1937 = vmatpush1.msra.mxu0 %v1811
    %1938 = vmatprep.subr.mxu0 0.0
    %1939 = vmatpush1.msra.mxu0 %v1812
    %1940 = vmatprep.subr.mxu0 0.0
    %1941 = vmatpush1.msra.mxu0 %v1813
    %1942 = vmatprep.subr.mxu0 0.0
    %1943 = vmatpush1.msra.mxu0 %v1814
    %1944 = vmatprep.subr.mxu0 0.0
    %1945 = vmatpush1.msra.mxu0 %v1815
    %1946 = vmatprep.subr.mxu0 0.0
    %1947 = vmatpush1.msra.mxu0 %v1816
    %1948 = vmatprep.subr.mxu0 0.0
    %1949 = vmatpush1.msra.mxu0 %v1817
    %1950 = vmatprep.subr.mxu0 0.0
    %1951 = vmatpush1.msra.mxu0 %v1818
    %1952 = vmatprep.subr.mxu0 0.0
    %1953 = vmatpush1.msra.mxu0 %v1819
    %1954 = vmatprep.mubr.f32.mxu0 %v351
    %1955 = vmatmul.mubr.f32.gmra.mrb[0].mxu0 %v350
    %v1956 = vpop.f32.mrb[0].mxu0
    %v1957 = vadd.f32 %v1887, %v1956
    %v1958 = vpop.f32.mrb[0].mxu0
    %1959 = vdwg.mxu0
    %v1960 = vmul.f32 %v1957, 0.00390625
    %v1961 = vld [vmem:[%s15] sm:$0x3]
    %v1963 = vsel %vm74, %v1961, 0
    %1965 = vmatprep.subr.mxu0 0.0
    %1966 = vmatpush1.msra.mxu0 %v1960
    %1967 = vmatprep.subr.mxu0 0.0
    %1968 = vmatpush1.msra.mxu0 0.0
    %1969 = vmatprep.subr.mxu0 0.0
    %1970 = vmatpush1.msra.mxu0 0.0
    %1971 = vmatprep.subr.mxu0 0.0
    %1972 = vmatpush1.msra.mxu0 0.0
    %1973 = vmatprep.subr.mxu0 0.0
    %1974 = vmatpush1.msra.mxu0 0.0
    %1975 = vmatprep.subr.mxu0 0.0
    %1976 = vmatpush1.msra.mxu0 0.0
    %1977 = vmatprep.subr.mxu0 0.0
    %1978 = vmatpush1.msra.mxu0 0.0
    %1979 = vmatprep.subr.mxu0 0.0
    %1980 = vmatpush1.msra.mxu0 0.0
    %1981 = vmatprep.subr.mxu0 0.0
    %1982 = vmatpush1.msra.mxu0 0.0
    %1983 = vmatprep.subr.mxu0 0.0
    %1984 = vmatpush1.msra.mxu0 0.0
    %1985 = vmatprep.subr.mxu0 0.0
    %1986 = vmatpush1.msra.mxu0 0.0
    %1987 = vmatprep.subr.mxu0 0.0
    %1988 = vmatpush1.msra.mxu0 0.0
    %1989 = vmatprep.subr.mxu0 0.0
    %1990 = vmatpush1.msra.mxu0 0.0
    %1991 = vmatprep.subr.mxu0 0.0
    %1992 = vmatpush1.msra.mxu0 0.0
    %1993 = vmatprep.subr.mxu0 0.0
    %1994 = vmatpush1.msra.mxu0 0.0
    %1995 = vmatprep.subr.mxu0 0.0
    %1996 = vmatpush1.msra.mxu0 0.0
    %1997 = vmatprep.subr.mxu0 0.0
    %1998 = vmatpush1.msra.mxu0 0.0
    %1999 = vmatprep.subr.mxu0 0.0
    %2000 = vmatpush1.msra.mxu0 0.0
    %2001 = vmatprep.subr.mxu0 0.0
    %2002 = vmatpush1.msra.mxu0 0.0
    %2003 = vmatprep.subr.mxu0 0.0
    %2004 = vmatpush1.msra.mxu0 0.0
    %2005 = vmatprep.subr.mxu0 0.0
    %2006 = vmatpush1.msra.mxu0 0.0
    %2007 = vmatprep.subr.mxu0 0.0
    %2008 = vmatpush1.msra.mxu0 0.0
    %2009 = vmatprep.subr.mxu0 0.0
    %2010 = vmatpush1.msra.mxu0 0.0
    %2011 = vmatprep.subr.mxu0 0.0
    %2012 = vmatpush1.msra.mxu0 0.0
    %2013 = vmatprep.subr.mxu0 0.0
    %2014 = vmatpush1.msra.mxu0 0.0
    %2015 = vmatprep.subr.mxu0 0.0
    %2016 = vmatpush1.msra.mxu0 0.0
    %2017 = vmatprep.subr.mxu0 0.0
    %2018 = vmatpush1.msra.mxu0 0.0
    %2019 = vmatprep.subr.mxu0 0.0
    %2020 = vmatpush1.msra.mxu0 0.0
    %2021 = vmatprep.subr.mxu0 0.0
    %2022 = vmatpush1.msra.mxu0 0.0
    %2023 = vmatprep.subr.mxu0 0.0
    %2024 = vmatpush1.msra.mxu0 0.0
    %2025 = vmatprep.subr.mxu0 0.0
    %2026 = vmatpush1.msra.mxu0 0.0
    %2027 = vmatprep.subr.mxu0 0.0
    %2028 = vmatpush1.msra.mxu0 0.0
    %2029 = vmatprep.mubr.f32.mxu0 0.0
    %2030 = vmatmul.mubr.f32.gmra.mrb[0].mxu0 %v1963
    %v2031 = vpop.f32.mrb[0].mxu0
    %v2032 = vadd.f32 0.0, %v2031
    %v2033 = vpop.f32.mrb[0].mxu0
    %2034 = vdwg.mxu0
    %v2035 = vmax.f32 %v2032, 0.0
    %v2036 = vld [vmem:[%s16] sm:$0xff]
    %vm2037 = vcmask 15360
    %v2039 = vsel %vm2037, %v2036, 0
    %vm2041 = vcmask 1041408
    %v2043 = vsel %vm2041, %v2035, 0
    %2045 = vmatprep.subr.mxu0 0.0
    %2046 = vmatpush1.msra.mxu0 %v2043
    %2047 = vmatprep.subr.mxu0 0.0
    %2048 = vmatpush1.msra.mxu0 0.0
    %2049 = vmatprep.subr.mxu0 0.0
    %2050 = vmatpush1.msra.mxu0 0.0
    %2051 = vmatprep.subr.mxu0 0.0
    %2052 = vmatpush1.msra.mxu0 0.0
    %2053 = vmatprep.subr.mxu0 0.0
    %2054 = vmatpush1.msra.mxu0 0.0
    %2055 = vmatprep.subr.mxu0 0.0
    %2056 = vmatpush1.msra.mxu0 0.0
    %2057 = vmatprep.subr.mxu0 0.0
    %2058 = vmatpush1.msra.mxu0 0.0
    %2059 = vmatprep.subr.mxu0 0.0
    %2060 = vmatpush1.msra.mxu0 0.0
    %2061 = vmatprep.subr.mxu0 0.0
    %2062 = vmatpush1.msra.mxu0 0.0
    %2063 = vmatprep.subr.mxu0 0.0
    %2064 = vmatpush1.msra.mxu0 0.0
    %2065 = vmatprep.subr.mxu0 0.0
    %2066 = vmatpush1.msra.mxu0 0.0
    %2067 = vmatprep.subr.mxu0 0.0
    %2068 = vmatpush1.msra.mxu0 0.0
    %2069 = vmatprep.subr.mxu0 0.0
    %2070 = vmatpush1.msra.mxu0 0.0
    %2071 = vmatprep.subr.mxu0 0.0
    %2072 = vmatpush1.msra.mxu0 0.0
    %2073 = vmatprep.subr.mxu0 0.0
    %2074 = vmatpush1.msra.mxu0 0.0
    %2075 = vmatprep.subr.mxu0 0.0
    %2076 = vmatpush1.msra.mxu0 0.0
    %2077 = vmatprep.subr.mxu0 0.0
    %2078 = vmatpush1.msra.mxu0 0.0
    %2079 = vmatprep.subr.mxu0 0.0
    %2080 = vmatpush1.msra.mxu0 0.0
    %2081 = vmatprep.subr.mxu0 0.0
    %2082 = vmatpush1.msra.mxu0 0.0
    %2083 = vmatprep.subr.mxu0 0.0
    %2084 = vmatpush1.msra.mxu0 0.0
    %2085 = vmatprep.subr.mxu0 0.0
    %2086 = vmatpush1.msra.mxu0 0.0
    %2087 = vmatprep.subr.mxu0 0.0
    %2088 = vmatpush1.msra.mxu0 0.0
    %2089 = vmatprep.subr.mxu0 0.0
    %2090 = vmatpush1.msra.mxu0 0.0
    %2091 = vmatprep.subr.mxu0 0.0
    %2092 = vmatpush1.msra.mxu0 0.0
    %2093 = vmatprep.subr.mxu0 0.0
    %2094 = vmatpush1.msra.mxu0 0.0
    %2095 = vmatprep.subr.mxu0 0.0
    %2096 = vmatpush1.msra.mxu0 0.0
    %2097 = vmatprep.subr.mxu0 0.0
    %2098 = vmatpush1.msra.mxu0 0.0
    %2099 = vmatprep.subr.mxu0 0.0
    %2100 = vmatpush1.msra.mxu0 0.0
    %2101 = vmatprep.subr.mxu0 0.0
    %2102 = vmatpush1.msra.mxu0 0.0
    %2103 = vmatprep.subr.mxu0 0.0
    %2104 = vmatpush1.msra.mxu0 0.0
    %2105 = vmatprep.subr.mxu0 0.0
    %2106 = vmatpush1.msra.mxu0 0.0
    %2107 = vmatprep.subr.mxu0 0.0
    %2108 = vmatpush1.msra.mxu0 0.0
    %2109 = vmatprep.mubr.f32.mxu0 0.0
    %2110 = vmatmul.mubr.f32.gmra.mrb[0].mxu0 %v2039
    %v2111 = vpop.f32.mrb[0].mxu0
    %v2112 = vadd.f32 0.0, %v2111
    %v2113 = vpop.f32.mrb[0].mxu0
    %2114 = vdwg.mxu0
    %v2115 = vsub.f32 0.0, %v2112
    %v2116 = vmul.f32 %v2115, 1.442695
    %v2117 = vpow.pop %v2116
    %v2118 = vadd.f32 %v2117, 1.0
    %v2119 = vrcp.pop %v2118
    %v2120 = vmul.f32 %v2118, %v2119
    %v2121 = vsub.f32 2.0, %v2120
    %v2122 = vmul.f32 %v2119, %v2121
    %v2123 = vld [vmem:[%s6] sm:$0xff]
    %v2125 = vcombine.high %v2123, %v2123
    %v2127 = vunpack.c.l.s4 1983009808
    %v2128 = vunpack.c.0.s8 %v2127
    %v2129 = vlaneseq
    %v2130 = vshrl.u32 %v2129, 7
    %v2131 = vsub.s32 %v2128, %v2130
    %v2132 = vrot.slane %v2123, %v2131
    %v2134 = vunpack.c.l.s4 1983009808
    %v2135 = vunpack.c.0.s8 %v2134
    %v2136 = vlaneseq
    %v2137 = vshrl.u32 %v2136, 7
    %v2138 = vsub.s32 %v2135, %v2137
    %v2139 = vrot.slane %v2125, %v2138
    %v2140 = vcombine.high %v2132, %v2132
    %v2141 = vcombine.high %v2139, %v2139
    %v2143 = vsel %vm2037, %v2122, 0
    %v2145 = vsel %vm2041, %v2132, 0
    %v2147 = vsel %vm2041, %v2140, 0
    %v2149 = vsel %vm2041, %v2139, 0
    %v2151 = vsel %vm2041, %v2141, 0
    %2153 = vmatprep.subr.mxu0 %v2147
    %2154 = vmatpush1.msra.mxu0 %v2145
    %2155 = vmatprep.subr.mxu0 0.0
    %2156 = vmatpush1.msra.mxu0 0.0
    %2157 = vmatprep.subr.mxu0 0.0
    %2158 = vmatpush1.msra.mxu0 0.0
    %2159 = vmatprep.subr.mxu0 0.0
    %2160 = vmatpush1.msra.mxu0 0.0
    %2161 = vmatprep.subr.mxu0 0.0
    %2162 = vmatpush1.msra.mxu0 0.0
    %2163 = vmatprep.subr.mxu0 0.0
    %2164 = vmatpush1.msra.mxu0 0.0
    %2165 = vmatprep.subr.mxu0 0.0
    %2166 = vmatpush1.msra.mxu0 0.0
    %2167 = vmatprep.subr.mxu0 0.0
    %2168 = vmatpush1.msra.mxu0 0.0
    %2169 = vmatprep.subr.mxu0 0.0
    %2170 = vmatpush1.msra.mxu0 0.0
    %2171 = vmatprep.subr.mxu0 0.0
    %2172 = vmatpush1.msra.mxu0 0.0
    %2173 = vmatprep.subr.mxu0 0.0
    %2174 = vmatpush1.msra.mxu0 0.0
    %2175 = vmatprep.subr.mxu0 0.0
    %2176 = vmatpush1.msra.mxu0 0.0
    %2177 = vmatprep.subr.mxu0 0.0
    %2178 = vmatpush1.msra.mxu0 0.0
    %2179 = vmatprep.subr.mxu0 0.0
    %2180 = vmatpush1.msra.mxu0 0.0
    %2181 = vmatprep.subr.mxu0 0.0
    %2182 = vmatpush1.msra.mxu0 0.0
    %2183 = vmatprep.subr.mxu0 0.0
    %2184 = vmatpush1.msra.mxu0 0.0
    %2185 = vmatprep.subr.mxu0 0.0
    %2186 = vmatpush1.msra.mxu0 0.0
    %2187 = vmatprep.subr.mxu0 0.0
    %2188 = vmatpush1.msra.mxu0 0.0
    %2189 = vmatprep.subr.mxu0 0.0
    %2190 = vmatpush1.msra.mxu0 0.0
    %2191 = vmatprep.subr.mxu0 0.0
    %2192 = vmatpush1.msra.mxu0 0.0
    %2193 = vmatprep.subr.mxu0 0.0
    %2194 = vmatpush1.msra.mxu0 0.0
    %2195 = vmatprep.subr.mxu0 0.0
    %2196 = vmatpush1.msra.mxu0 0.0
    %2197 = vmatprep.subr.mxu0 0.0
    %2198 = vmatpush1.msra.mxu0 0.0
    %2199 = vmatprep.subr.mxu0 0.0
    %2200 = vmatpush1.msra.mxu0 0.0
    %2201 = vmatprep.subr.mxu0 0.0
    %2202 = vmatpush1.msra.mxu0 0.0
    %2203 = vmatprep.subr.mxu0 0.0
    %2204 = vmatpush1.msra.mxu0 0.0
    %2205 = vmatprep.subr.mxu0 0.0
    %2206 = vmatpush1.msra.mxu0 0.0
    %2207 = vmatprep.subr.mxu0 0.0
    %2208 = vmatpush1.msra.mxu0 0.0
    %2209 = vmatprep.subr.mxu0 0.0
    %2210 = vmatpush1.msra.mxu0 0.0
    %2211 = vmatprep.subr.mxu0 0.0
    %2212 = vmatpush1.msra.mxu0 0.0
    %2213 = vmatprep.subr.mxu0 0.0
    %2214 = vmatpush1.msra.mxu0 0.0
    %2215 = vmatprep.subr.mxu0 0.0
    %2216 = vmatpush1.msra.mxu0 0.0
    %2217 = vmatprep.mubr.f32.mxu0 0.0
    %2218 = vmatmul.mubr.f32.gmra.mrb[0].mxu0 %v2143
    %v2219 = vpop.f32.mrb[0].mxu0
    %v2220 = vadd.f32 0.0, %v2219
    %v2221 = vpop.f32.mrb[0].mxu0
    %v2222 = vadd.f32 0.0, %v2221
    %2223 = vdwg.mxu0
    %2224 = vmatprep.subr.mxu0 %v2151
    %2225 = vmatpush1.msra.mxu0 %v2149
    %2226 = vmatprep.subr.mxu0 0.0
    %2227 = vmatpush1.msra.mxu0 0.0
    %2228 = vmatprep.subr.mxu0 0.0
    %2229 = vmatpush1.msra.mxu0 0.0
    %2230 = vmatprep.subr.mxu0 0.0
    %2231 = vmatpush1.msra.mxu0 0.0
    %2232 = vmatprep.subr.mxu0 0.0
    %2233 = vmatpush1.msra.mxu0 0.0
    %2234 = vmatprep.subr.mxu0 0.0
    %2235 = vmatpush1.msra.mxu0 0.0
    %2236 = vmatprep.subr.mxu0 0.0
    %2237 = vmatpush1.msra.mxu0 0.0
    %2238 = vmatprep.subr.mxu0 0.0
    %2239 = vmatpush1.msra.mxu0 0.0
    %2240 = vmatprep.subr.mxu0 0.0
    %2241 = vmatpush1.msra.mxu0 0.0
    %2242 = vmatprep.subr.mxu0 0.0
    %2243 = vmatpush1.msra.mxu0 0.0
    %2244 = vmatprep.subr.mxu0 0.0
    %2245 = vmatpush1.msra.mxu0 0.0
    %2246 = vmatprep.subr.mxu0 0.0
    %2247 = vmatpush1.msra.mxu0 0.0
    %2248 = vmatprep.subr.mxu0 0.0
    %2249 = vmatpush1.msra.mxu0 0.0
    %2250 = vmatprep.subr.mxu0 0.0
    %2251 = vmatpush1.msra.mxu0 0.0
    %2252 = vmatprep.subr.mxu0 0.0
    %2253 = vmatpush1.msra.mxu0 0.0
    %2254 = vmatprep.subr.mxu0 0.0
    %2255 = vmatpush1.msra.mxu0 0.0
    %2256 = vmatprep.subr.mxu0 0.0
    %2257 = vmatpush1.msra.mxu0 0.0
    %2258 = vmatprep.subr.mxu0 0.0
    %2259 = vmatpush1.msra.mxu0 0.0
    %2260 = vmatprep.subr.mxu0 0.0
    %2261 = vmatpush1.msra.mxu0 0.0
    %2262 = vmatprep.subr.mxu0 0.0
    %2263 = vmatpush1.msra.mxu0 0.0
    %2264 = vmatprep.subr.mxu0 0.0
    %2265 = vmatpush1.msra.mxu0 0.0
    %2266 = vmatprep.subr.mxu0 0.0
    %2267 = vmatpush1.msra.mxu0 0.0
    %2268 = vmatprep.subr.mxu0 0.0
    %2269 = vmatpush1.msra.mxu0 0.0
    %2270 = vmatprep.subr.mxu0 0.0
    %2271 = vmatpush1.msra.mxu0 0.0
    %2272 = vmatprep.subr.mxu0 0.0
    %2273 = vmatpush1.msra.mxu0 0.0
    %2274 = vmatprep.subr.mxu0 0.0
    %2275 = vmatpush1.msra.mxu0 0.0
    %2276 = vmatprep.subr.mxu0 0.0
    %2277 = vmatpush1.msra.mxu0 0.0
    %2278 = vmatprep.subr.mxu0 0.0
    %2279 = vmatpush1.msra.mxu0 0.0
    %2280 = vmatprep.subr.mxu0 0.0
    %2281 = vmatpush1.msra.mxu0 0.0
    %2282 = vmatprep.subr.mxu0 0.0
    %2283 = vmatpush1.msra.mxu0 0.0
    %2284 = vmatprep.subr.mxu0 0.0
    %2285 = vmatpush1.msra.mxu0 0.0
    %2286 = vmatprep.subr.mxu0 0.0
    %2287 = vmatpush1.msra.mxu0 0.0
    %2288 = vmatprep.mubr.f32.mxu0 0.0
    %2289 = vmatmul.mubr.f32.gmra.mrb[0].mxu0 %v2143
    %v2290 = vpop.f32.mrb[0].mxu0
    %v2291 = vadd.f32 0.0, %v2290
    %v2292 = vpop.f32.mrb[0].mxu0
    %v2293 = vadd.f32 0.0, %v2292
    %2294 = vdwg.mxu0
    %v2295 = vmul.f32 %v2220, %v1681
    %v2296 = vmul.f32 %v2222, %v1683
    %v2297 = vmul.f32 %v2291, %v1752
    %v2298 = vmul.f32 %v2293, %v1754
    %v2299 = vmul.f32 %v2295, %v348
    %v2300 = vmul.f32 %v2296, %v349
    %v2301 = vmul.f32 %v2297, %v350
    %v2302 = vmul.f32 %v2298, %v351
    %v2303 = vld [vmem:[%s17] sm:$0xff]
    %v2304 = vld [vmem:[%s18] sm:$0xff]
    %2306 = vset.pattern.permute.xlu0 0
    %2307 = vperm.xlu0 %2306, %v2304
    %v2308 = vpop.permute.xlu0 %2307
    %v2311 = vsel %vm74, %v2303, 0
    %2313 = vmatprep.subr.mxu0 %v2300
    %2314 = vmatpush1.msra.mxu0 %v2299
    %2315 = vmatprep.subr.mxu0 0.0
    %2316 = vmatpush1.msra.mxu0 0.0
    %2317 = vmatprep.subr.mxu0 0.0
    %2318 = vmatpush1.msra.mxu0 0.0
    %2319 = vmatprep.subr.mxu0 0.0
    %2320 = vmatpush1.msra.mxu0 0.0
    %2321 = vmatprep.subr.mxu0 0.0
    %2322 = vmatpush1.msra.mxu0 0.0
    %2323 = vmatprep.subr.mxu0 0.0
    %2324 = vmatpush1.msra.mxu0 0.0
    %2325 = vmatprep.subr.mxu0 0.0
    %2326 = vmatpush1.msra.mxu0 0.0
    %2327 = vmatprep.subr.mxu0 0.0
    %2328 = vmatpush1.msra.mxu0 0.0
    %2329 = vmatprep.subr.mxu0 0.0
    %2330 = vmatpush1.msra.mxu0 0.0
    %2331 = vmatprep.subr.mxu0 0.0
    %2332 = vmatpush1.msra.mxu0 0.0
    %2333 = vmatprep.subr.mxu0 0.0
    %2334 = vmatpush1.msra.mxu0 0.0
    %2335 = vmatprep.subr.mxu0 0.0
    %2336 = vmatpush1.msra.mxu0 0.0
    %2337 = vmatprep.subr.mxu0 0.0
    %2338 = vmatpush1.msra.mxu0 0.0
    %2339 = vmatprep.subr.mxu0 0.0
    %2340 = vmatpush1.msra.mxu0 0.0
    %2341 = vmatprep.subr.mxu0 0.0
    %2342 = vmatpush1.msra.mxu0 0.0
    %2343 = vmatprep.subr.mxu0 0.0
    %2344 = vmatpush1.msra.mxu0 0.0
    %2345 = vmatprep.subr.mxu0 0.0
    %2346 = vmatpush1.msra.mxu0 0.0
    %2347 = vmatprep.subr.mxu0 0.0
    %2348 = vmatpush1.msra.mxu0 0.0
    %2349 = vmatprep.subr.mxu0 0.0
    %2350 = vmatpush1.msra.mxu0 0.0
    %2351 = vmatprep.subr.mxu0 0.0
    %2352 = vmatpush1.msra.mxu0 0.0
    %2353 = vmatprep.subr.mxu0 0.0
    %2354 = vmatpush1.msra.mxu0 0.0
    %2355 = vmatprep.subr.mxu0 0.0
    %2356 = vmatpush1.msra.mxu0 0.0
    %2357 = vmatprep.subr.mxu0 0.0
    %2358 = vmatpush1.msra.mxu0 0.0
    %2359 = vmatprep.subr.mxu0 0.0
    %2360 = vmatpush1.msra.mxu0 0.0
    %2361 = vmatprep.subr.mxu0 0.0
    %2362 = vmatpush1.msra.mxu0 0.0
    %2363 = vmatprep.subr.mxu0 0.0
    %2364 = vmatpush1.msra.mxu0 0.0
    %2365 = vmatprep.subr.mxu0 0.0
    %2366 = vmatpush1.msra.mxu0 0.0
    %2367 = vmatprep.subr.mxu0 0.0
    %2368 = vmatpush1.msra.mxu0 0.0
    %2369 = vmatprep.subr.mxu0 0.0
    %2370 = vmatpush1.msra.mxu0 0.0
    %2371 = vmatprep.subr.mxu0 0.0
    %2372 = vmatpush1.msra.mxu0 0.0
    %2373 = vmatprep.subr.mxu0 0.0
    %2374 = vmatpush1.msra.mxu0 0.0
    %2375 = vmatprep.subr.mxu0 0.0
    %2376 = vmatpush1.msra.mxu0 0.0
    %2377 = vmatprep.mubr.f32.mxu0 0.0
    %2378 = vmatmul.mubr.f32.gmra.mrb[0].mxu0 %v2311
    %v2379 = vpop.f32.mrb[0].mxu0
    %v2380 = vadd.f32 %v2308, %v2379
    %v2381 = vpop.f32.mrb[0].mxu0
    %v2382 = vadd.f32 %v2308, %v2381
    %2383 = vdwg.mxu0
    %2384 = vmatprep.subr.mxu0 %v2302
    %2385 = vmatpush1.msra.mxu0 %v2301
    %2386 = vmatprep.subr.mxu0 0.0
    %2387 = vmatpush1.msra.mxu0 0.0
    %2388 = vmatprep.subr.mxu0 0.0
    %2389 = vmatpush1.msra.mxu0 0.0
    %2390 = vmatprep.subr.mxu0 0.0
    %2391 = vmatpush1.msra.mxu0 0.0
    %2392 = vmatprep.subr.mxu0 0.0
    %2393 = vmatpush1.msra.mxu0 0.0
    %2394 = vmatprep.subr.mxu0 0.0
    %2395 = vmatpush1.msra.mxu0 0.0
    %2396 = vmatprep.subr.mxu0 0.0
    %2397 = vmatpush1.msra.mxu0 0.0
    %2398 = vmatprep.subr.mxu0 0.0
    %2399 = vmatpush1.msra.mxu0 0.0
    %2400 = vmatprep.subr.mxu0 0.0
    %2401 = vmatpush1.msra.mxu0 0.0
    %2402 = vmatprep.subr.mxu0 0.0
    %2403 = vmatpush1.msra.mxu0 0.0
    %2404 = vmatprep.subr.mxu0 0.0
    %2405 = vmatpush1.msra.mxu0 0.0
    %2406 = vmatprep.subr.mxu0 0.0
    %2407 = vmatpush1.msra.mxu0 0.0
    %2408 = vmatprep.subr.mxu0 0.0
    %2409 = vmatpush1.msra.mxu0 0.0
    %2410 = vmatprep.subr.mxu0 0.0
    %2411 = vmatpush1.msra.mxu0 0.0
    %2412 = vmatprep.subr.mxu0 0.0
    %2413 = vmatpush1.msra.mxu0 0.0
    %2414 = vmatprep.subr.mxu0 0.0
    %2415 = vmatpush1.msra.mxu0 0.0
    %2416 = vmatprep.subr.mxu0 0.0
    %2417 = vmatpush1.msra.mxu0 0.0
    %2418 = vmatprep.subr.mxu0 0.0
    %2419 = vmatpush1.msra.mxu0 0.0
    %2420 = vmatprep.subr.mxu0 0.0
    %2421 = vmatpush1.msra.mxu0 0.0
    %2422 = vmatprep.subr.mxu0 0.0
    %2423 = vmatpush1.msra.mxu0 0.0
    %2424 = vmatprep.subr.mxu0 0.0
    %2425 = vmatpush1.msra.mxu0 0.0
    %2426 = vmatprep.subr.mxu0 0.0
    %2427 = vmatpush1.msra.mxu0 0.0
    %2428 = vmatprep.subr.mxu0 0.0
    %2429 = vmatpush1.msra.mxu0 0.0
    %2430 = vmatprep.subr.mxu0 0.0
    %2431 = vmatpush1.msra.mxu0 0.0
    %2432 = vmatprep.subr.mxu0 0.0
    %2433 = vmatpush1.msra.mxu0 0.0
    %2434 = vmatprep.subr.mxu0 0.0
    %2435 = vmatpush1.msra.mxu0 0.0
    %2436 = vmatprep.subr.mxu0 0.0
    %2437 = vmatpush1.msra.mxu0 0.0
    %2438 = vmatprep.subr.mxu0 0.0
    %2439 = vmatpush1.msra.mxu0 0.0
    %2440 = vmatprep.subr.mxu0 0.0
    %2441 = vmatpush1.msra.mxu0 0.0
    %2442 = vmatprep.subr.mxu0 0.0
    %2443 = vmatpush1.msra.mxu0 0.0
    %2444 = vmatprep.subr.mxu0 0.0
    %2445 = vmatpush1.msra.mxu0 0.0
    %2446 = vmatprep.subr.mxu0 0.0
    %2447 = vmatpush1.msra.mxu0 0.0
    %2448 = vmatprep.mubr.f32.mxu0 0.0
    %2449 = vmatmul.mubr.f32.gmra.mrb[0].mxu0 %v2311
    %v2450 = vpop.f32.mrb[0].mxu0
    %v2451 = vadd.f32 %v2308, %v2450
    %v2452 = vpop.f32.mrb[0].mxu0
    %v2453 = vadd.f32 %v2308, %v2452
    %2454 = vdwg.mxu0
    %v2455 = vadd.f32 %v2380, %v64
    %v2456 = vadd.f32 %v2382, %v65
    %v2457 = vadd.f32 %v2451, %v66
    %v2458 = vadd.f32 %v2453, %v67
    %2459 = vst [vmem:[#allocation2] sm:$0xff] %v2455
    %2460 = vst [vmem:[#allocation2 + $0x8] sm:$0xff] %v2456
    %2461 = vst [vmem:[#allocation2 + $0x10] sm:$0xff] %v2457
    %2462 = vst [vmem:[#allocation2 + $0x18] sm:$0xff] %v2458
    // Predicated region
    $region78: #{tpu_custom_call.1} parent=1 // pred_check
      _
    $region79: #{tpu_custom_call.1} parent=1 // pred_check_branch
      %2464 = sbr.rel (0) target = $region81
    $region80: #{tpu_custom_call.1} parent=1 // pred_region
      %s2466 = ssub.s32 512, 512
      %2467 = vsyncadd [#allocation3], %s2466
      %s2469 = sshll.u32 [#allocation2], 4
      %s2470 = int_to_ptr.vmem [resolvable:$true] %s2469
      %2472 = dma.vmem_to_hbm [thread:$0]  %s2470, 512, %s19, [#allocation3]
    $region81: #{tpu_custom_call.1} parent=1 // pred_fallthru
      _
    // Predicated region
    $region82: #{tpu_custom_call.1} parent=1 // pred_check
      _
    $region83: #{tpu_custom_call.1} parent=1 // pred_check_branch
      %2474 = sbr.rel (0) target = $region85
    $region84: #{tpu_custom_call.1} parent=1 // pred_region
      %2475 = dma.done [#allocation3], 512
    $region85: #{tpu_custom_call.1} parent=1 // pred_fallthru
      _
    %2476 = vsyncpa [#allocation3], 1

// kernel: tpu_custom_call.1
$region0: #{tpu_custom_call.1}
  #allocation0 [shape = 'u32[]', space=smem, size = 0x4, offset = 0x4, fixed_abs, tag = 'smem constant byte address 0x4 - core index']
  #allocation1 [shape = 'u32[144,128]{1,0:T(1,128)}', space=vmem, size = 0x12000, scoped, tag = 'internal scratch']
  %s0 = inlined_call_operand.vmem [shape: f32[1,8,512], index: 0, kind: input, shape index: {}]
  %s1 = inlined_call_operand.vmem [shape: f32[5,512], index: 1, kind: input, shape index: {}]
  %s2 = inlined_call_operand.vmem [shape: f32[5,512], index: 2, kind: input, shape index: {}]
  %s3 = inlined_call_operand.vmem [shape: f32[5,512], index: 3, kind: input, shape index: {}]
  %s4 = inlined_call_operand.vmem [shape: f32[5,512], index: 4, kind: input, shape index: {}]
  %s5 = inlined_call_operand.vmem [shape: f32[512,2], index: 5, kind: input, shape index: {}]
  %s6 = inlined_call_operand.vmem [shape: f32[2,512], index: 6, kind: input, shape index: {}]
  %s7 = inlined_call_operand.vmem [shape: f32[8,8], index: 7, kind: input, shape index: {}]
  %s8 = inlined_call_operand.vmem [shape: f32[8,1], index: 8, kind: input, shape index: {}]
  %s9 = inlined_call_operand.vmem [shape: f32[8,25], index: 9, kind: input, shape index: {}]
  %s10 = inlined_call_operand.vmem [shape: f32[8,1], index: 10, kind: input, shape index: {}]
  %s11 = inlined_call_operand.vmem [shape: f32[8,25], index: 11, kind: input, shape index: {}]
  %s12 = inlined_call_operand.vmem [shape: f32[8,1], index: 12, kind: input, shape index: {}]
  %s13 = inlined_call_operand.vmem [shape: f32[8,8], index: 13, kind: input, shape index: {}]
  %s14 = inlined_call_operand.vmem [shape: f32[8,1], index: 14, kind: input, shape index: {}]
  %s15 = inlined_call_operand.vmem [shape: f32[2,8], index: 15, kind: input, shape index: {}]
  %s16 = inlined_call_operand.vmem [shape: f32[8,2], index: 16, kind: input, shape index: {}]
  %s17 = inlined_call_operand.vmem [shape: f32[8,8], index: 17, kind: input, shape index: {}]
  %s18 = inlined_call_operand.vmem [shape: f32[8,1], index: 18, kind: input, shape index: {}]
  %s19 = inlined_call_operand.hbm [shape: f32[1,8,512], index: 19, kind: output, shape index: {}]
  %s20 = sld [smem:[#allocation0]]
  $region86: #{tpu_custom_call.1} parent=0
    _
  %s22 = ssub.s32 1, %s20
  %s23 = scalar_select 0, %s22, %s20
  $region1: #{tpu_custom_call.1} parent=0
    #allocation2 [shape = 'u8[16384]{0}', space=vmem, size = 0x4000, scoped, tag = 'output window, operand 0, single buffered']
    #allocation3 [shape = 's32[1]{0}', space=sflag, size = 0x4, scoped, tag = 'scoped memory for tpu_custom_call.1']
    %24 = vsyncpa [#allocation3], 0
    // Predicated region
    $region2: #{tpu_custom_call.1} parent=1 // pred_check
      _
    $region3: #{tpu_custom_call.1} parent=1 // pred_check_branch
      %26 = sbr.rel (0) target = $region5
    $region4: #{tpu_custom_call.1} parent=1 // pred_region
      _
    $region5: #{tpu_custom_call.1} parent=1 // pred_fallthru
      _
    // Predicated region
    $region6: #{tpu_custom_call.1} parent=1 // pred_check
      _
    $region7: #{tpu_custom_call.1} parent=1 // pred_check_branch
      %28 = sbr.rel (0) target = $region9
    $region8: #{tpu_custom_call.1} parent=1 // pred_region
      _
    $region9: #{tpu_custom_call.1} parent=1 // pred_fallthru
      _
    // Predicated region
    $region10: #{tpu_custom_call.1} parent=1 // pred_check
      _
    $region11: #{tpu_custom_call.1} parent=1 // pred_check_branch
      %30 = sbr.rel (0) target = $region13
    $region12: #{tpu_custom_call.1} parent=1 // pred_region
      _
    $region13: #{tpu_custom_call.1} parent=1 // pred_fallthru
      _
    // Predicated region
    $region14: #{tpu_custom_call.1} parent=1 // pred_check
      _
    $region15: #{tpu_custom_call.1} parent=1 // pred_check_branch
      %32 = sbr.rel (0) target = $region17
    $region16: #{tpu_custom_call.1} parent=1 // pred_region
      _
    $region17: #{tpu_custom_call.1} parent=1 // pred_fallthru
      _
    // Predicated region
    $region18: #{tpu_custom_call.1} parent=1 // pred_check
      _
    $region19: #{tpu_custom_call.1} parent=1 // pred_check_branch
      %34 = sbr.rel (0) target = $region21
    $region20: #{tpu_custom_call.1} parent=1 // pred_region
      _
    $region21: #{tpu_custom_call.1} parent=1 // pred_fallthru
      _
    // Predicated region
    $region22: #{tpu_custom_call.1} parent=1 // pred_check
      _
    $region23: #{tpu_custom_call.1} parent=1 // pred_check_branch
      %36 = sbr.rel (0) target = $region25
    $region24: #{tpu_custom_call.1} parent=1 // pred_region
      _
    $region25: #{tpu_custom_call.1} parent=1 // pred_fallthru
      _
    // Predicated region
    $region26: #{tpu_custom_call.1} parent=1 // pred_check
      _
    $region27: #{tpu_custom_call.1} parent=1 // pred_check_branch
      %38 = sbr.rel (0) target = $region29
    $region28: #{tpu_custom_call.1} parent=1 // pred_region
      _
    $region29: #{tpu_custom_call.1} parent=1 // pred_fallthru
      _
    // Predicated region
    $region30: #{tpu_custom_call.1} parent=1 // pred_check
      _
    $region31: #{tpu_custom_call.1} parent=1 // pred_check_branch
      %40 = sbr.rel (0) target = $region33
    $region32: #{tpu_custom_call.1} parent=1 // pred_region
      _
    $region33: #{tpu_custom_call.1} parent=1 // pred_fallthru
      _
    // Predicated region
    $region34: #{tpu_custom_call.1} parent=1 // pred_check
      _
    $region35: #{tpu_custom_call.1} parent=1 // pred_check_branch
      %42 = sbr.rel (0) target = $region37
    $region36: #{tpu_custom_call.1} parent=1 // pred_region
      _
    $region37: #{tpu_custom_call.1} parent=1 // pred_fallthru
      _
    // Predicated region
    $region38: #{tpu_custom_call.1} parent=1 // pred_check
      _
    $region39: #{tpu_custom_call.1} parent=1 // pred_check_branch
      %44 = sbr.rel (0) target = $region41
    $region40: #{tpu_custom_call.1} parent=1 // pred_region
      _
    $region41: #{tpu_custom_call.1} parent=1 // pred_fallthru
      _
    // Predicated region
    $region42: #{tpu_custom_call.1} parent=1 // pred_check
      _
    $region43: #{tpu_custom_call.1} parent=1 // pred_check_branch
      %46 = sbr.rel (0) target = $region45
    $region44: #{tpu_custom_call.1} parent=1 // pred_region
      _
    $region45: #{tpu_custom_call.1} parent=1 // pred_fallthru
      _
    // Predicated region
    $region46: #{tpu_custom_call.1} parent=1 // pred_check
      _
    $region47: #{tpu_custom_call.1} parent=1 // pred_check_branch
      %48 = sbr.rel (0) target = $region49
    $region48: #{tpu_custom_call.1} parent=1 // pred_region
      _
    $region49: #{tpu_custom_call.1} parent=1 // pred_fallthru
      _
    // Predicated region
    $region50: #{tpu_custom_call.1} parent=1 // pred_check
      _
    $region51: #{tpu_custom_call.1} parent=1 // pred_check_branch
      %50 = sbr.rel (0) target = $region53
    $region52: #{tpu_custom_call.1} parent=1 // pred_region
      _
    $region53: #{tpu_custom_call.1} parent=1 // pred_fallthru
      _
    // Predicated region
    $region54: #{tpu_custom_call.1} parent=1 // pred_check
      _
    $region55: #{tpu_custom_call.1} parent=1 // pred_check_branch
      %52 = sbr.rel (0) target = $region57
    $region56: #{tpu_custom_call.1} parent=1 // pred_region
      _
    $region57: #{tpu_custom_call.1} parent=1 // pred_fallthru
      _
    // Predicated region
    $region58: #{tpu_custom_call.1} parent=1 // pred_check
      _
    $region59: #{tpu_custom_call.1} parent=1 // pred_check_branch
      %54 = sbr.rel (0) target = $region61
    $region60: #{tpu_custom_call.1} parent=1 // pred_region
      _
    $region61: #{tpu_custom_call.1} parent=1 // pred_fallthru
      _
    // Predicated region
    $region62: #{tpu_custom_call.1} parent=1 // pred_check
      _
    $region63: #{tpu_custom_call.1} parent=1 // pred_check_branch
      %56 = sbr.rel (0) target = $region65
    $region64: #{tpu_custom_call.1} parent=1 // pred_region
      _
    $region65: #{tpu_custom_call.1} parent=1 // pred_fallthru
      _
    // Predicated region
    $region66: #{tpu_custom_call.1} parent=1 // pred_check
      _
    $region67: #{tpu_custom_call.1} parent=1 // pred_check_branch
      %58 = sbr.rel (0) target = $region69
    $region68: #{tpu_custom_call.1} parent=1 // pred_region
      _
    $region69: #{tpu_custom_call.1} parent=1 // pred_fallthru
      _
    // Predicated region
    $region70: #{tpu_custom_call.1} parent=1 // pred_check
      _
    $region71: #{tpu_custom_call.1} parent=1 // pred_check_branch
      %60 = sbr.rel (0) target = $region73
    $region72: #{tpu_custom_call.1} parent=1 // pred_region
      _
    $region73: #{tpu_custom_call.1} parent=1 // pred_fallthru
      _
    // Predicated region
    $region74: #{tpu_custom_call.1} parent=1 // pred_check
      _
    $region75: #{tpu_custom_call.1} parent=1 // pred_check_branch
      %62 = sbr.rel (0) target = $region77
    $region76: #{tpu_custom_call.1} parent=1 // pred_region
      _
    $region77: #{tpu_custom_call.1} parent=1 // pred_fallthru
      _
    %v63 = vld [vmem:[%s7] sm:$0xff]
    %v64 = vld [vmem:[%s0] sm:$0xff]
    %v65 = vld [vmem:[%s0 + $0x8] sm:$0xff]
    %v66 = vld [vmem:[%s0 + $0x10] sm:$0xff]
    %v67 = vld [vmem:[%s0 + $0x18] sm:$0xff]
    %v68 = vld [vmem:[%s8] sm:$0xff]
    %70 = vset.pattern.permute.xlu0 0
    %71 = vperm.xlu0 %70, %v68
    %v72 = vpop.permute.xlu0 %71
    %vm74 = vcmask 64512
    %v76 = vsel %vm74, %v63, 0
    %78 = vmatprep.subr.mxu0 %v65
    %79 = vmatpush1.msra.mxu0 %v64
    %80 = vmatprep.subr.mxu0 0.0
    %81 = vmatpush1.msra.mxu0 0.0
    %82 = vmatprep.subr.mxu0 0.0
    %83 = vmatpush1.msra.mxu0 0.0
    %84 = vmatprep.subr.mxu0 0.0
    %85 = vmatpush1.msra.mxu0 0.0
    %86 = vmatprep.subr.mxu0 0.0
    %87 = vmatpush1.msra.mxu0 0.0
    %88 = vmatprep.subr.mxu0 0.0
    %89 = vmatpush1.msra.mxu0 0.0
    %90 = vmatprep.subr.mxu0 0.0
    %91 = vmatpush1.msra.mxu0 0.0
    %92 = vmatprep.subr.mxu0 0.0
    %93 = vmatpush1.msra.mxu0 0.0
    %94 = vmatprep.subr.mxu0 0.0
    %95 = vmatpush1.msra.mxu0 0.0
    %96 = vmatprep.subr.mxu0 0.0
    %97 = vmatpush1.msra.mxu0 0.0
    %98 = vmatprep.subr.mxu0 0.0
    %99 = vmatpush1.msra.mxu0 0.0
    %100 = vmatprep.subr.mxu0 0.0
    %101 = vmatpush1.msra.mxu0 0.0
    %102 = vmatprep.subr.mxu0 0.0
    %103 = vmatpush1.msra.mxu0 0.0
    %104 = vmatprep.subr.mxu0 0.0
    %105 = vmatpush1.msra.mxu0 0.0
    %106 = vmatprep.subr.mxu0 0.0
    %107 = vmatpush1.msra.mxu0 0.0
    %108 = vmatprep.subr.mxu0 0.0
    %109 = vmatpush1.msra.mxu0 0.0
    %110 = vmatprep.subr.mxu0 0.0
    %111 = vmatpush1.msra.mxu0 0.0
    %112 = vmatprep.subr.mxu0 0.0
    %113 = vmatpush1.msra.mxu0 0.0
    %114 = vmatprep.subr.mxu0 0.0
    %115 = vmatpush1.msra.mxu0 0.0
    %116 = vmatprep.subr.mxu0 0.0
    %117 = vmatpush1.msra.mxu0 0.0
    %118 = vmatprep.subr.mxu0 0.0
    %119 = vmatpush1.msra.mxu0 0.0
    %120 = vmatprep.subr.mxu0 0.0
    %121 = vmatpush1.msra.mxu0 0.0
    %122 = vmatprep.subr.mxu0 0.0
    %123 = vmatpush1.msra.mxu0 0.0
    %124 = vmatprep.subr.mxu0 0.0
    %125 = vmatpush1.msra.mxu0 0.0
    %126 = vmatprep.subr.mxu0 0.0
    %127 = vmatpush1.msra.mxu0 0.0
    %128 = vmatprep.subr.mxu0 0.0
    %129 = vmatpush1.msra.mxu0 0.0
    %130 = vmatprep.subr.mxu0 0.0
    %131 = vmatpush1.msra.mxu0 0.0
    %132 = vmatprep.subr.mxu0 0.0
    %133 = vmatpush1.msra.mxu0 0.0
    %134 = vmatprep.subr.mxu0 0.0
    %135 = vmatpush1.msra.mxu0 0.0
    %136 = vmatprep.subr.mxu0 0.0
    %137 = vmatpush1.msra.mxu0 0.0
    %138 = vmatprep.subr.mxu0 0.0
    %139 = vmatpush1.msra.mxu0 0.0
    %140 = vmatprep.subr.mxu0 0.0
    %141 = vmatpush1.msra.mxu0 0.0
    %142 = vmatprep.mubr.f32.mxu0 0.0
    %143 = vmatmul.mubr.f32.gmra.mrb[0].mxu0 %v76
    %v144 = vpop.f32.mrb[0].mxu0
    %v145 = vadd.f32 %v72, %v144
    %v146 = vpop.f32.mrb[0].mxu0
    %v147 = vadd.f32 %v72, %v146
    %148 = vdwg.mxu0
    %149 = vmatprep.subr.mxu0 %v67
    %150 = vmatpush1.msra.mxu0 %v66
    %151 = vmatprep.subr.mxu0 0.0
    %152 = vmatpush1.msra.mxu0 0.0
    %153 = vmatprep.subr.mxu0 0.0
    %154 = vmatpush1.msra.mxu0 0.0
    %155 = vmatprep.subr.mxu0 0.0
    %156 = vmatpush1.msra.mxu0 0.0
    %157 = vmatprep.subr.mxu0 0.0
    %158 = vmatpush1.msra.mxu0 0.0
    %159 = vmatprep.subr.mxu0 0.0
    %160 = vmatpush1.msra.mxu0 0.0
    %161 = vmatprep.subr.mxu0 0.0
    %162 = vmatpush1.msra.mxu0 0.0
    %163 = vmatprep.subr.mxu0 0.0
    %164 = vmatpush1.msra.mxu0 0.0
    %165 = vmatprep.subr.mxu0 0.0
    %166 = vmatpush1.msra.mxu0 0.0
    %167 = vmatprep.subr.mxu0 0.0
    %168 = vmatpush1.msra.mxu0 0.0
    %169 = vmatprep.subr.mxu0 0.0
    %170 = vmatpush1.msra.mxu0 0.0
    %171 = vmatprep.subr.mxu0 0.0
    %172 = vmatpush1.msra.mxu0 0.0
    %173 = vmatprep.subr.mxu0 0.0
    %174 = vmatpush1.msra.mxu0 0.0
    %175 = vmatprep.subr.mxu0 0.0
    %176 = vmatpush1.msra.mxu0 0.0
    %177 = vmatprep.subr.mxu0 0.0
    %178 = vmatpush1.msra.mxu0 0.0
    %179 = vmatprep.subr.mxu0 0.0
    %180 = vmatpush1.msra.mxu0 0.0
    %181 = vmatprep.subr.mxu0 0.0
    %182 = vmatpush1.msra.mxu0 0.0
    %183 = vmatprep.subr.mxu0 0.0
    %184 = vmatpush1.msra.mxu0 0.0
    %185 = vmatprep.subr.mxu0 0.0
    %186 = vmatpush1.msra.mxu0 0.0
    %187 = vmatprep.subr.mxu0 0.0
    %188 = vmatpush1.msra.mxu0 0.0
    %189 = vmatprep.subr.mxu0 0.0
    %190 = vmatpush1.msra.mxu0 0.0
    %191 = vmatprep.subr.mxu0 0.0
    %192 = vmatpush1.msra.mxu0 0.0
    %193 = vmatprep.subr.mxu0 0.0
    %194 = vmatpush1.msra.mxu0 0.0
    %195 = vmatprep.subr.mxu0 0.0
    %196 = vmatpush1.msra.mxu0 0.0
    %197 = vmatprep.subr.mxu0 0.0
    %198 = vmatpush1.msra.mxu0 0.0
    %199 = vmatprep.subr.mxu0 0.0
    %200 = vmatpush1.msra.mxu0 0.0
    %201 = vmatprep.subr.mxu0 0.0
    %202 = vmatpush1.msra.mxu0 0.0
    %203 = vmatprep.subr.mxu0 0.0
    %204 = vmatpush1.msra.mxu0 0.0
    %205 = vmatprep.subr.mxu0 0.0
    %206 = vmatpush1.msra.mxu0 0.0
    %207 = vmatprep.subr.mxu0 0.0
    %208 = vmatpush1.msra.mxu0 0.0
    %209 = vmatprep.subr.mxu0 0.0
    %210 = vmatpush1.msra.mxu0 0.0
    %211 = vmatprep.subr.mxu0 0.0
    %212 = vmatpush1.msra.mxu0 0.0
    %213 = vmatprep.mubr.f32.mxu0 0.0
    %214 = vmatmul.mubr.f32.gmra.mrb[0].mxu0 %v76
    %v215 = vpop.f32.mrb[0].mxu0
    %v216 = vadd.f32 %v72, %v215
    %v217 = vpop.f32.mrb[0].mxu0
    %v218 = vadd.f32 %v72, %v217
    %219 = vdwg.mxu0
    %v220 = vmul.f32 %v145, 0.5
    %v221 = vmul.f32 %v147, 0.5
    %v222 = vmul.f32 %v216, 0.5
    %v223 = vmul.f32 %v218, 0.5
    %v224 = vmul.f32 %v145, 0.70710677
    %v225 = vmul.f32 %v147, 0.70710677
    %v226 = vmul.f32 %v216, 0.70710677
    %v227 = vmul.f32 %v218, 0.70710677
    %v228 = vmax.f32 %v224, -3.832507
    %v229 = vmax.f32 %v225, -3.832507
    %v230 = vmax.f32 %v226, -3.832507
    %v231 = vmax.f32 %v227, -3.832507
    %v232 = vmin.f32 %v228, 3.832507
    %v233 = vmin.f32 %v229, 3.832507
    %v234 = vmin.f32 %v230, 3.832507
    %v235 = vmin.f32 %v231, 3.832507
    %v236 = vmul.f32 %v232, %v232
    %v237 = vmul.f32 %v233, %v233
    %v238 = vmul.f32 %v234, %v234
    %v239 = vmul.f32 %v235, %v235
    %v240 = vmul.f32 %v236, -2.7261424e-10
    %v241 = vmul.f32 %v237, -2.7261424e-10
    %v242 = vmul.f32 %v238, -2.7261424e-10
    %v243 = vmul.f32 %v239, -2.7261424e-10
    %v244 = vadd.f32 %v240, 2.7706815e-08
    %v245 = vadd.f32 %v241, 2.7706815e-08
    %v246 = vadd.f32 %v242, 2.7706815e-08
    %v247 = vadd.f32 %v243, 2.7706815e-08
    %v248 = vmul.f32 %v244, %v236
    %v249 = vmul.f32 %v245, %v237
    %v250 = vmul.f32 %v246, %v238
    %v251 = vmul.f32 %v247, %v239
    %v252 = vadd.f32 %v248, -2.101024e-06
    %v253 = vadd.f32 %v249, -2.101024e-06
    %v254 = vadd.f32 %v250, -2.101024e-06
    %v255 = vadd.f32 %v251, -2.101024e-06
    %v256 = vmul.f32 %v252, %v236
    %v257 = vmul.f32 %v253, %v237
    %v258 = vmul.f32 %v254, %v238
    %v259 = vmul.f32 %v255, %v239
    %v260 = vadd.f32 %v256, -5.6925062e-05
    %v261 = vadd.f32 %v257, -5.6925062e-05
    %v262 = vadd.f32 %v258, -5.6925062e-05
    %v263 = vadd.f32 %v259, -5.6925062e-05
    %v264 = vmul.f32 %v260, %v236
    %v265 = vmul.f32 %v261, %v237
    %v266 = vmul.f32 %v262, %v238
    %v267 = vmul.f32 %v263, %v239
    %v268 = vadd.f32 %v264, -0.00073499064
    %v269 = vadd.f32 %v265, -0.00073499064
    %v270 = vadd.f32 %v266, -0.00073499064
    %v271 = vadd.f32 %v267, -0.00073499064
    %v272 = vmul.f32 %v268, %v236
    %v273 = vmul.f32 %v269, %v237
    %v274 = vmul.f32 %v270, %v238
    %v275 = vmul.f32 %v271, %v239
    %v276 = vadd.f32 %v272, -0.0029546
    %v277 = vadd.f32 %v273, -0.0029546
    %v278 = vadd.f32 %v274, -0.0029546
    %v279 = vadd.f32 %v275, -0.0029546
    %v280 = vmul.f32 %v276, %v236
    %v281 = vmul.f32 %v277, %v237
    %v282 = vmul.f32 %v278, %v238
    %v283 = vmul.f32 %v279, %v239
    %v284 = vadd.f32 %v280, -0.016096033
    %v285 = vadd.f32 %v281, -0.016096033
    %v286 = vadd.f32 %v282, -0.016096033
    %v287 = vadd.f32 %v283, -0.016096033
    %v288 = vmul.f32 %v284, %v232
    %v289 = vmul.f32 %v285, %v233
    %v290 = vmul.f32 %v286, %v234
    %v291 = vmul.f32 %v287, %v235
    %v292 = vmul.f32 %v236, -1.45660715e-05
    %v293 = vmul.f32 %v237, -1.45660715e-05
    %v294 = vmul.f32 %v238, -1.45660715e-05
    %v295 = vmul.f32 %v239, -1.45660715e-05
    %v296 = vadd.f32 %v292, -0.00021337405
    %v297 = vadd.f32 %v293, -0.00021337405
    %v298 = vadd.f32 %v294, -0.00021337405
    %v299 = vadd.f32 %v295, -0.00021337405
    %v300 = vmul.f32 %v296, %v236
    %v301 = vmul.f32 %v297, %v237
    %v302 = vmul.f32 %v298, %v238
    %v303 = vmul.f32 %v299, %v239
    %v304 = vadd.f32 %v300, -0.001682827
    %v305 = vadd.f32 %v301, -0.001682827
    %v306 = vadd.f32 %v302, -0.001682827
    %v307 = vadd.f32 %v303, -0.001682827
    %v308 = vmul.f32 %v304, %v236
    %v309 = vmul.f32 %v305, %v237
    %v310 = vmul.f32 %v306, %v238
    %v311 = vmul.f32 %v307, %v239
    %v312 = vadd.f32 %v308, -0.0073733293
    %v313 = vadd.f32 %v309, -0.0073733293
    %v314 = vadd.f32 %v310, -0.0073733293
    %v315 = vadd.f32 %v311, -0.0073733293
    %v316 = vmul.f32 %v312, %v236
    %v317 = vmul.f32 %v313, %v237
    %v318 = vmul.f32 %v314, %v238
    %v319 = vmul.f32 %v315, %v239
    %v320 = vadd.f32 %v316, -0.014264739
    %v321 = vadd.f32 %v317, -0.014264739
    %v322 = vadd.f32 %v318, -0.014264739
    %v323 = vadd.f32 %v319, -0.014264739
    %v324 = vrcp.pop %v320
    %v325 = vrcp.pop %v321
    %v326 = vrcp.pop %v322
    %v327 = vrcp.pop %v323
    %v328 = vmul.f32 %v320, %v324
    %v329 = vmul.f32 %v321, %v325
    %v330 = vmul.f32 %v322, %v326
    %v331 = vmul.f32 %v323, %v327
    %v332 = vsub.f32 2.0, %v328
    %v333 = vsub.f32 2.0, %v329
    %v334 = vsub.f32 2.0, %v330
    %v335 = vsub.f32 2.0, %v331
    %v336 = vmul.f32 %v324, %v332
    %v337 = vmul.f32 %v325, %v333
    %v338 = vmul.f32 %v326, %v334
    %v339 = vmul.f32 %v327, %v335
    %v340 = vmul.f32 %v288, %v336
    %v341 = vmul.f32 %v289, %v337
    %v342 = vmul.f32 %v290, %v338
    %v343 = vmul.f32 %v291, %v339
    %v344 = vadd.f32 %v340, 1.0
    %v345 = vadd.f32 %v341, 1.0
    %v346 = vadd.f32 %v342, 1.0
    %v347 = vadd.f32 %v343, 1.0
    %v348 = vmul.f32 %v220, %v344
    %v349 = vmul.f32 %v221, %v345
    %v350 = vmul.f32 %v222, %v346
    %v351 = vmul.f32 %v223, %v347
    %v352 = vld [vmem:[%s9] sm:$0xff]
    %353 = vrot.lane.b32.xlu0 %v348, 2
    %v354 = vpop.permute.xlu0 %353
    %355 = vrot.lane.b32.xlu0 %v349, 2
    %v356 = vpop.permute.xlu0 %355
    %357 = vrot.lane.b32.xlu0 %v350, 2
    %v358 = vpop.permute.xlu0 %357
    %359 = vrot.lane.b32.xlu0 %v351, 2
    %v360 = vpop.permute.xlu0 %359
    %v361 = vlaneseq
    %v362 = vand.u32 %v361, 127
    %vm363 = vcmp.lt.s32.totalorder %v362, 2
    %v364 = vsel %vm363, %v358, %v360
    %v365 = vsel %vm363, %v356, %v358
    %v366 = vsel %vm363, %v354, %v356
    %v367 = vsel %vm363, %v360, %v354
    %v368 = vld [vmem:[%s1] ss:$8 sm:$0xf]
    %v370 = vlaneseq
    %v371 = vshrl.u32 %v370, 7
    %v372 = vsub.s32 0, %v371
    %v373 = vrot.slane %v368, %v372
    %v374 = vlaneseq
    %v375 = vshrl.u32 %v374, 7
    %v376 = vsub.s32 1, %v375
    %v377 = vrot.slane %v368, %v376
    %v378 = vlaneseq
    %v379 = vshrl.u32 %v378, 7
    %v380 = vsub.s32 2, %v379
    %v381 = vrot.slane %v368, %v380
    %v382 = vlaneseq
    %v383 = vshrl.u32 %v382, 7
    %v384 = vsub.s32 3, %v383
    %v385 = vrot.slane %v368, %v384
    %v390 = vmul.f32 %v367, %v373
    %v391 = vmul.f32 %v366, %v377
    %v392 = vmul.f32 %v365, %v381
    %v393 = vmul.f32 %v364, %v385
    %394 = vrot.lane.b32.xlu0 %v348, 1
    %v395 = vpop.permute.xlu0 %394
    %396 = vrot.lane.b32.xlu0 %v349, 1
    %v397 = vpop.permute.xlu0 %396
    %398 = vrot.lane.b32.xlu0 %v350, 1
    %v399 = vpop.permute.xlu0 %398
    %400 = vrot.lane.b32.xlu0 %v351, 1
    %v401 = vpop.permute.xlu0 %400
    %vm402 = vcmp.lt.s32.totalorder %v362, 1
    %v403 = vsel %vm402, %v399, %v401
    %v404 = vsel %vm402, %v397, %v399
    %v405 = vsel %vm402, %v395, %v397
    %v406 = vsel %vm402, %v401, %v395
    %s407 = scalar_lea.vmem %s1, 1
    %v408 = vld [vmem:[%s407] ss:$8 sm:$0xf]
    %v410 = vlaneseq
    %v411 = vshrl.u32 %v410, 7
    %v412 = vsub.s32 0, %v411
    %v413 = vrot.slane %v408, %v412
    %v414 = vlaneseq
    %v415 = vshrl.u32 %v414, 7
    %v416 = vsub.s32 1, %v415
    %v417 = vrot.slane %v408, %v416
    %v418 = vlaneseq
    %v419 = vshrl.u32 %v418, 7
    %v420 = vsub.s32 2, %v419
    %v421 = vrot.slane %v408, %v420
    %v422 = vlaneseq
    %v423 = vshrl.u32 %v422, 7
    %v424 = vsub.s32 3, %v423
    %v425 = vrot.slane %v408, %v424
    %v430 = vmul.f32 %v406, %v413
    %v431 = vmul.f32 %v405, %v417
    %v432 = vmul.f32 %v404, %v421
    %v433 = vmul.f32 %v403, %v425
    %434 = vrot.lane.b32.xlu0 %v348, 127
    %v435 = vpop.permute.xlu0 %434
    %436 = vrot.lane.b32.xlu0 %v349, 127
    %v437 = vpop.permute.xlu0 %436
    %438 = vrot.lane.b32.xlu0 %v350, 127
    %v439 = vpop.permute.xlu0 %438
    %440 = vrot.lane.b32.xlu0 %v351, 127
    %v441 = vpop.permute.xlu0 %440
    %vm442 = vcmp.lt.s32.totalorder %v362, 127
    %v443 = vsel %vm442, %v439, %v441
    %v444 = vsel %vm442, %v437, %v439
    %v445 = vsel %vm442, %v435, %v437
    %v446 = vsel %vm442, %v441, %v435
    %s447 = scalar_lea.vmem %s1, 3
    %v448 = vld [vmem:[%s447] ss:$8 sm:$0xf]
    %v450 = vlaneseq
    %v451 = vshrl.u32 %v450, 7
    %v452 = vsub.s32 0, %v451
    %v453 = vrot.slane %v448, %v452
    %v454 = vlaneseq
    %v455 = vshrl.u32 %v454, 7
    %v456 = vsub.s32 1, %v455
    %v457 = vrot.slane %v448, %v456
    %v458 = vlaneseq
    %v459 = vshrl.u32 %v458, 7
    %v460 = vsub.s32 2, %v459
    %v461 = vrot.slane %v448, %v460
    %v462 = vlaneseq
    %v463 = vshrl.u32 %v462, 7
    %v464 = vsub.s32 3, %v463
    %v465 = vrot.slane %v448, %v464
    %v470 = vmul.f32 %v445, %v453
    %v471 = vmul.f32 %v444, %v457
    %v472 = vmul.f32 %v443, %v461
    %v473 = vmul.f32 %v446, %v465
    %474 = vrot.lane.b32.xlu0 %v348, 126
    %v475 = vpop.permute.xlu0 %474
    %476 = vrot.lane.b32.xlu0 %v349, 126
    %v477 = vpop.permute.xlu0 %476
    %478 = vrot.lane.b32.xlu0 %v350, 126
    %v479 = vpop.permute.xlu0 %478
    %480 = vrot.lane.b32.xlu0 %v351, 126
    %v481 = vpop.permute.xlu0 %480
    %vm482 = vcmp.lt.s32.totalorder %v362, 126
    %v483 = vsel %vm482, %v479, %v481
    %v484 = vsel %vm482, %v477, %v479
    %v485 = vsel %vm482, %v475, %v477
    %v486 = vsel %vm482, %v481, %v475
    %s487 = scalar_lea.vmem %s1, 4
    %v488 = vld [vmem:[%s487] ss:$8 sm:$0xf]
    %v490 = vlaneseq
    %v491 = vshrl.u32 %v490, 7
    %v492 = vsub.s32 0, %v491
    %v493 = vrot.slane %v488, %v492
    %v494 = vlaneseq
    %v495 = vshrl.u32 %v494, 7
    %v496 = vsub.s32 1, %v495
    %v497 = vrot.slane %v488, %v496
    %v498 = vlaneseq
    %v499 = vshrl.u32 %v498, 7
    %v500 = vsub.s32 2, %v499
    %v501 = vrot.slane %v488, %v500
    %v502 = vlaneseq
    %v503 = vshrl.u32 %v502, 7
    %v504 = vsub.s32 3, %v503
    %v505 = vrot.slane %v488, %v504
    %v510 = vmul.f32 %v485, %v493
    %v511 = vmul.f32 %v484, %v497
    %v512 = vmul.f32 %v483, %v501
    %v513 = vmul.f32 %v486, %v505
    %515 = vset.pattern.permute.xlu0 0
    %516 = vperm.xlu0 %515, %v352
    %v517 = vpop.permute.xlu0 %516
    %v519 = vmul.f32 %v517, %v390
    %v520 = vmul.f32 %v517, %v391
    %v521 = vmul.f32 %v517, %v392
    %v522 = vmul.f32 %v517, %v393
    %523 = vset.pattern.permute.xlu0 1
    %524 = vperm.xlu0 %523, %v352
    %v525 = vpop.permute.xlu0 %524
    %v527 = vmul.f32 %v525, %v430
    %v528 = vmul.f32 %v525, %v431
    %v529 = vmul.f32 %v525, %v432
    %v530 = vmul.f32 %v525, %v433
    %v531 = vadd.f32 %v519, %v527
    %v532 = vadd.f32 %v520, %v528
    %v533 = vadd.f32 %v521, %v529
    %v534 = vadd.f32 %v522, %v530
    %535 = vset.pattern.permute.xlu0 2
    %536 = vperm.xlu0 %535, %v352
    %v537 = vpop.permute.xlu0 %536
    %v539 = vmul.f32 %v537, %v348
    %v540 = vmul.f32 %v537, %v349
    %v541 = vmul.f32 %v537, %v350
    %v542 = vmul.f32 %v537, %v351
    %v543 = vadd.f32 %v531, %v539
    %v544 = vadd.f32 %v532, %v540
    %v545 = vadd.f32 %v533, %v541
    %v546 = vadd.f32 %v534, %v542
    %547 = vset.pattern.permute.xlu0 3
    %548 = vperm.xlu0 %547, %v352
    %v549 = vpop.permute.xlu0 %548
    %v551 = vmul.f32 %v549, %v470
    %v552 = vmul.f32 %v549, %v471
    %v553 = vmul.f32 %v549, %v472
    %v554 = vmul.f32 %v549, %v473
    %v555 = vadd.f32 %v543, %v551
    %v556 = vadd.f32 %v544, %v552
    %v557 = vadd.f32 %v545, %v553
    %v558 = vadd.f32 %v546, %v554
    %559 = vset.pattern.permute.xlu0 4
    %560 = vperm.xlu0 %559, %v352
    %v561 = vpop.permute.xlu0 %560
    %v563 = vmul.f32 %v561, %v510
    %v564 = vmul.f32 %v561, %v511
    %v565 = vmul.f32 %v561, %v512
    %v566 = vmul.f32 %v561, %v513
    %v567 = vadd.f32 %v555, %v563
    %v568 = vadd.f32 %v556, %v564
    %v569 = vadd.f32 %v557, %v565
    %v570 = vadd.f32 %v558, %v566
    %571 = vrot.lane.b32.xlu0 %v567, 32
    %v572 = vpop.permute.xlu0 %571
    %573 = vrot.lane.b32.xlu0 %v568, 32
    %v574 = vpop.permute.xlu0 %573
    %575 = vrot.lane.b32.xlu0 %v569, 32
    %v576 = vpop.permute.xlu0 %575
    %577 = vrot.lane.b32.xlu0 %v570, 32
    %v578 = vpop.permute.xlu0 %577
    %vm579 = vcmp.lt.s32.totalorder %v362, 32
    %v580 = vsel %vm579, %v576, %v578
    %v581 = vsel %vm579, %v574, %v576
    %v582 = vsel %vm579, %v572, %v574
    %v583 = vsel %vm579, %v578, %v572
    %v584 = vld [vmem:[%s2] ss:$8 sm:$0xf]
    %v586 = vlaneseq
    %v587 = vshrl.u32 %v586, 7
    %v588 = vsub.s32 0, %v587
    %v589 = vrot.slane %v584, %v588
    %v590 = vlaneseq
    %v591 = vshrl.u32 %v590, 7
    %v592 = vsub.s32 1, %v591
    %v593 = vrot.slane %v584, %v592
    %v594 = vlaneseq
    %v595 = vshrl.u32 %v594, 7
    %v596 = vsub.s32 2, %v595
    %v597 = vrot.slane %v584, %v596
    %v598 = vlaneseq
    %v599 = vshrl.u32 %v598, 7
    %v600 = vsub.s32 3, %v599
    %v601 = vrot.slane %v584, %v600
    %v606 = vmul.f32 %v583, %v589
    %v607 = vmul.f32 %v582, %v593
    %v608 = vmul.f32 %v581, %v597
    %v609 = vmul.f32 %v580, %v601
    %610 = vset.pattern.permute.xlu0 5
    %611 = vperm.xlu0 %610, %v352
    %v612 = vpop.permute.xlu0 %611
    %v614 = vmul.f32 %v612, %v390
    %v615 = vmul.f32 %v612, %v391
    %v616 = vmul.f32 %v612, %v392
    %v617 = vmul.f32 %v612, %v393
    %618 = vset.pattern.permute.xlu0 6
    %619 = vperm.xlu0 %618, %v352
    %v620 = vpop.permute.xlu0 %619
    %v622 = vmul.f32 %v620, %v430
    %v623 = vmul.f32 %v620, %v431
    %v624 = vmul.f32 %v620, %v432
    %v625 = vmul.f32 %v620, %v433
    %v626 = vadd.f32 %v614, %v622
    %v627 = vadd.f32 %v615, %v623
    %v628 = vadd.f32 %v616, %v624
    %v629 = vadd.f32 %v617, %v625
    %630 = vset.pattern.permute.xlu0 7
    %631 = vperm.xlu0 %630, %v352
    %v632 = vpop.permute.xlu0 %631
    %v634 = vmul.f32 %v632, %v348
    %v635 = vmul.f32 %v632, %v349
    %v636 = vmul.f32 %v632, %v350
    %v637 = vmul.f32 %v632, %v351
    %v638 = vadd.f32 %v626, %v634
    %v639 = vadd.f32 %v627, %v635
    %v640 = vadd.f32 %v628, %v636
    %v641 = vadd.f32 %v629, %v637
    %642 = vset.pattern.permute.xlu0 8
    %643 = vperm.xlu0 %642, %v352
    %v644 = vpop.permute.xlu0 %643
    %v646 = vmul.f32 %v644, %v470
    %v647 = vmul.f32 %v644, %v471
    %v648 = vmul.f32 %v644, %v472
    %v649 = vmul.f32 %v644, %v473
    %v650 = vadd.f32 %v638, %v646
    %v651 = vadd.f32 %v639, %v647
    %v652 = vadd.f32 %v640, %v648
    %v653 = vadd.f32 %v641, %v649
    %654 = vset.pattern.permute.xlu0 9
    %655 = vperm.xlu0 %654, %v352
    %v656 = vpop.permute.xlu0 %655
    %v658 = vmul.f32 %v656, %v510
    %v659 = vmul.f32 %v656, %v511
    %v660 = vmul.f32 %v656, %v512
    %v661 = vmul.f32 %v656, %v513
    %v662 = vadd.f32 %v650, %v658
    %v663 = vadd.f32 %v651, %v659
    %v664 = vadd.f32 %v652, %v660
    %v665 = vadd.f32 %v653, %v661
    %666 = vrot.lane.b32.xlu0 %v662, 16
    %v667 = vpop.permute.xlu0 %666
    %668 = vrot.lane.b32.xlu0 %v663, 16
    %v669 = vpop.permute.xlu0 %668
    %670 = vrot.lane.b32.xlu0 %v664, 16
    %v671 = vpop.permute.xlu0 %670
    %672 = vrot.lane.b32.xlu0 %v665, 16
    %v673 = vpop.permute.xlu0 %672
    %vm674 = vcmp.lt.s32.totalorder %v362, 16
    %v675 = vsel %vm674, %v671, %v673
    %v676 = vsel %vm674, %v669, %v671
    %v677 = vsel %vm674, %v667, %v669
    %v678 = vsel %vm674, %v673, %v667
    %s679 = scalar_lea.vmem %s2, 1
    %v680 = vld [vmem:[%s679] ss:$8 sm:$0xf]
    %v682 = vlaneseq
    %v683 = vshrl.u32 %v682, 7
    %v684 = vsub.s32 0, %v683
    %v685 = vrot.slane %v680, %v684
    %v686 = vlaneseq
    %v687 = vshrl.u32 %v686, 7
    %v688 = vsub.s32 1, %v687
    %v689 = vrot.slane %v680, %v688
    %v690 = vlaneseq
    %v691 = vshrl.u32 %v690, 7
    %v692 = vsub.s32 2, %v691
    %v693 = vrot.slane %v680, %v692
    %v694 = vlaneseq
    %v695 = vshrl.u32 %v694, 7
    %v696 = vsub.s32 3, %v695
    %v697 = vrot.slane %v680, %v696
    %v702 = vmul.f32 %v678, %v685
    %v703 = vmul.f32 %v677, %v689
    %v704 = vmul.f32 %v676, %v693
    %v705 = vmul.f32 %v675, %v697
    %v706 = vadd.f32 %v606, %v702
    %v707 = vadd.f32 %v607, %v703
    %v708 = vadd.f32 %v608, %v704
    %v709 = vadd.f32 %v609, %v705
    %710 = vset.pattern.permute.xlu0 10
    %711 = vperm.xlu0 %710, %v352
    %v712 = vpop.permute.xlu0 %711
    %v714 = vmul.f32 %v712, %v390
    %v715 = vmul.f32 %v712, %v391
    %v716 = vmul.f32 %v712, %v392
    %v717 = vmul.f32 %v712, %v393
    %718 = vset.pattern.permute.xlu0 11
    %719 = vperm.xlu0 %718, %v352
    %v720 = vpop.permute.xlu0 %719
    %v722 = vmul.f32 %v720, %v430
    %v723 = vmul.f32 %v720, %v431
    %v724 = vmul.f32 %v720, %v432
    %v725 = vmul.f32 %v720, %v433
    %v726 = vadd.f32 %v714, %v722
    %v727 = vadd.f32 %v715, %v723
    %v728 = vadd.f32 %v716, %v724
    %v729 = vadd.f32 %v717, %v725
    %730 = vset.pattern.permute.xlu0 12
    %731 = vperm.xlu0 %730, %v352
    %v732 = vpop.permute.xlu0 %731
    %v734 = vmul.f32 %v732, %v348
    %v735 = vmul.f32 %v732, %v349
    %v736 = vmul.f32 %v732, %v350
    %v737 = vmul.f32 %v732, %v351
    %v738 = vadd.f32 %v726, %v734
    %v739 = vadd.f32 %v727, %v735
    %v740 = vadd.f32 %v728, %v736
    %v741 = vadd.f32 %v729, %v737
    %742 = vset.pattern.permute.xlu0 13
    %743 = vperm.xlu0 %742, %v352
    %v744 = vpop.permute.xlu0 %743
    %v746 = vmul.f32 %v744, %v470
    %v747 = vmul.f32 %v744, %v471
    %v748 = vmul.f32 %v744, %v472
    %v749 = vmul.f32 %v744, %v473
    %v750 = vadd.f32 %v738, %v746
    %v751 = vadd.f32 %v739, %v747
    %v752 = vadd.f32 %v740, %v748
    %v753 = vadd.f32 %v741, %v749
    %754 = vset.pattern.permute.xlu0 14
    %755 = vperm.xlu0 %754, %v352
    %v756 = vpop.permute.xlu0 %755
    %v758 = vmul.f32 %v756, %v510
    %v759 = vmul.f32 %v756, %v511
    %v760 = vmul.f32 %v756, %v512
    %v761 = vmul.f32 %v756, %v513
    %v762 = vadd.f32 %v750, %v758
    %v763 = vadd.f32 %v751, %v759
    %v764 = vadd.f32 %v752, %v760
    %v765 = vadd.f32 %v753, %v761
    %v766 = vadd.f32 %v706, %v762
    %v767 = vadd.f32 %v707, %v763
    %v768 = vadd.f32 %v708, %v764
    %v769 = vadd.f32 %v709, %v765
    %770 = vset.pattern.permute.xlu0 15
    %771 = vperm.xlu0 %770, %v352
    %v772 = vpop.permute.xlu0 %771
    %v774 = vmul.f32 %v772, %v390
    %v775 = vmul.f32 %v772, %v391
    %v776 = vmul.f32 %v772, %v392
    %v777 = vmul.f32 %v772, %v393
    %778 = vset.pattern.permute.xlu0 16
    %779 = vperm.xlu0 %778, %v352
    %v780 = vpop.permute.xlu0 %779
    %v782 = vmul.f32 %v780, %v430
    %v783 = vmul.f32 %v780, %v431
    %v784 = vmul.f32 %v780, %v432
    %v785 = vmul.f32 %v780, %v433
    %v786 = vadd.f32 %v774, %v782
    %v787 = vadd.f32 %v775, %v783
    %v788 = vadd.f32 %v776, %v784
    %v789 = vadd.f32 %v777, %v785
    %790 = vset.pattern.permute.xlu0 17
    %791 = vperm.xlu0 %790, %v352
    %v792 = vpop.permute.xlu0 %791
    %v794 = vmul.f32 %v792, %v348
    %v795 = vmul.f32 %v792, %v349
    %v796 = vmul.f32 %v792, %v350
    %v797 = vmul.f32 %v792, %v351
    %v798 = vadd.f32 %v786, %v794
    %v799 = vadd.f32 %v787, %v795
    %v800 = vadd.f32 %v788, %v796
    %v801 = vadd.f32 %v789, %v797
    %802 = vset.pattern.permute.xlu0 18
    %803 = vperm.xlu0 %802, %v352
    %v804 = vpop.permute.xlu0 %803
    %v806 = vmul.f32 %v804, %v470
    %v807 = vmul.f32 %v804, %v471
    %v808 = vmul.f32 %v804, %v472
    %v809 = vmul.f32 %v804, %v473
    %v810 = vadd.f32 %v798, %v806
    %v811 = vadd.f32 %v799, %v807
    %v812 = vadd.f32 %v800, %v808
    %v813 = vadd.f32 %v801, %v809
    %814 = vset.pattern.permute.xlu0 19
    %815 = vperm.xlu0 %814, %v352
    %v816 = vpop.permute.xlu0 %815
    %v818 = vmul.f32 %v816, %v510
    %v819 = vmul.f32 %v816, %v511
    %v820 = vmul.f32 %v816, %v512
    %v821 = vmul.f32 %v816, %v513
    %v822 = vadd.f32 %v810, %v818
    %v823 = vadd.f32 %v811, %v819
    %v824 = vadd.f32 %v812, %v820
    %v825 = vadd.f32 %v813, %v821
    %826 = vrot.lane.b32.xlu0 %v822, 112
    %v827 = vpop.permute.xlu0 %826
    %828 = vrot.lane.b32.xlu0 %v823, 112
    %v829 = vpop.permute.xlu0 %828
    %830 = vrot.lane.b32.xlu0 %v824, 112
    %v831 = vpop.permute.xlu0 %830
    %832 = vrot.lane.b32.xlu0 %v825, 112
    %v833 = vpop.permute.xlu0 %832
    %vm834 = vcmp.lt.s32.totalorder %v362, 112
    %v835 = vsel %vm834, %v831, %v833
    %v836 = vsel %vm834, %v829, %v831
    %v837 = vsel %vm834, %v827, %v829
    %v838 = vsel %vm834, %v833, %v827
    %s839 = scalar_lea.vmem %s2, 3
    %v840 = vld [vmem:[%s839] ss:$8 sm:$0xf]
    %v842 = vlaneseq
    %v843 = vshrl.u32 %v842, 7
    %v844 = vsub.s32 0, %v843
    %v845 = vrot.slane %v840, %v844
    %v846 = vlaneseq
    %v847 = vshrl.u32 %v846, 7
    %v848 = vsub.s32 1, %v847
    %v849 = vrot.slane %v840, %v848
    %v850 = vlaneseq
    %v851 = vshrl.u32 %v850, 7
    %v852 = vsub.s32 2, %v851
    %v853 = vrot.slane %v840, %v852
    %v854 = vlaneseq
    %v855 = vshrl.u32 %v854, 7
    %v856 = vsub.s32 3, %v855
    %v857 = vrot.slane %v840, %v856
    %v862 = vmul.f32 %v837, %v845
    %v863 = vmul.f32 %v836, %v849
    %v864 = vmul.f32 %v835, %v853
    %v865 = vmul.f32 %v838, %v857
    %v866 = vadd.f32 %v766, %v862
    %v867 = vadd.f32 %v767, %v863
    %v868 = vadd.f32 %v768, %v864
    %v869 = vadd.f32 %v769, %v865
    %870 = vset.pattern.permute.xlu0 20
    %871 = vperm.xlu0 %870, %v352
    %v872 = vpop.permute.xlu0 %871
    %v874 = vmul.f32 %v872, %v390
    %v875 = vmul.f32 %v872, %v391
    %v876 = vmul.f32 %v872, %v392
    %v877 = vmul.f32 %v872, %v393
    %878 = vset.pattern.permute.xlu0 21
    %879 = vperm.xlu0 %878, %v352
    %v880 = vpop.permute.xlu0 %879
    %v882 = vmul.f32 %v880, %v430
    %v883 = vmul.f32 %v880, %v431
    %v884 = vmul.f32 %v880, %v432
    %v885 = vmul.f32 %v880, %v433
    %v886 = vadd.f32 %v874, %v882
    %v887 = vadd.f32 %v875, %v883
    %v888 = vadd.f32 %v876, %v884
    %v889 = vadd.f32 %v877, %v885
    %890 = vset.pattern.permute.xlu0 22
    %891 = vperm.xlu0 %890, %v352
    %v892 = vpop.permute.xlu0 %891
    %v894 = vmul.f32 %v892, %v348
    %v895 = vmul.f32 %v892, %v349
    %v896 = vmul.f32 %v892, %v350
    %v897 = vmul.f32 %v892, %v351
    %v898 = vadd.f32 %v886, %v894
    %v899 = vadd.f32 %v887, %v895
    %v900 = vadd.f32 %v888, %v896
    %v901 = vadd.f32 %v889, %v897
    %902 = vset.pattern.permute.xlu0 23
    %903 = vperm.xlu0 %902, %v352
    %v904 = vpop.permute.xlu0 %903
    %v906 = vmul.f32 %v904, %v470
    %v907 = vmul.f32 %v904, %v471
    %v908 = vmul.f32 %v904, %v472
    %v909 = vmul.f32 %v904, %v473
    %v910 = vadd.f32 %v898, %v906
    %v911 = vadd.f32 %v899, %v907
    %v912 = vadd.f32 %v900, %v908
    %v913 = vadd.f32 %v901, %v909
    %914 = vset.pattern.permute.xlu0 24
    %915 = vperm.xlu0 %914, %v352
    %v916 = vpop.permute.xlu0 %915
    %v918 = vmul.f32 %v916, %v510
    %v919 = vmul.f32 %v916, %v511
    %v920 = vmul.f32 %v916, %v512
    %v921 = vmul.f32 %v916, %v513
    %v922 = vadd.f32 %v910, %v918
    %v923 = vadd.f32 %v911, %v919
    %v924 = vadd.f32 %v912, %v920
    %v925 = vadd.f32 %v913, %v921
    %926 = vrot.lane.b32.xlu0 %v922, 96
    %v927 = vpop.permute.xlu0 %926
    %928 = vrot.lane.b32.xlu0 %v923, 96
    %v929 = vpop.permute.xlu0 %928
    %930 = vrot.lane.b32.xlu0 %v924, 96
    %v931 = vpop.permute.xlu0 %930
    %932 = vrot.lane.b32.xlu0 %v925, 96
    %v933 = vpop.permute.xlu0 %932
    %vm934 = vcmp.lt.s32.totalorder %v362, 96
    %v935 = vsel %vm934, %v931, %v933
    %v936 = vsel %vm934, %v929, %v931
    %v937 = vsel %vm934, %v927, %v929
    %v938 = vsel %vm934, %v933, %v927
    %s939 = scalar_lea.vmem %s2, 4
    %v940 = vld [vmem:[%s939] ss:$8 sm:$0xf]
    %v942 = vlaneseq
    %v943 = vshrl.u32 %v942, 7
    %v944 = vsub.s32 0, %v943
    %v945 = vrot.slane %v940, %v944
    %v946 = vlaneseq
    %v947 = vshrl.u32 %v946, 7
    %v948 = vsub.s32 1, %v947
    %v949 = vrot.slane %v940, %v948
    %v950 = vlaneseq
    %v951 = vshrl.u32 %v950, 7
    %v952 = vsub.s32 2, %v951
    %v953 = vrot.slane %v940, %v952
    %v954 = vlaneseq
    %v955 = vshrl.u32 %v954, 7
    %v956 = vsub.s32 3, %v955
    %v957 = vrot.slane %v940, %v956
    %v962 = vmul.f32 %v937, %v945
    %v963 = vmul.f32 %v936, %v949
    %v964 = vmul.f32 %v935, %v953
    %v965 = vmul.f32 %v938, %v957
    %v966 = vadd.f32 %v866, %v962
    %v967 = vadd.f32 %v867, %v963
    %v968 = vadd.f32 %v868, %v964
    %v969 = vadd.f32 %v869, %v965
    %v970 = vld [vmem:[%s10] sm:$0xff]
    %972 = vset.pattern.permute.xlu0 0
    %973 = vperm.xlu0 %972, %v970
    %v974 = vpop.permute.xlu0 %973
    %v976 = vadd.f32 %v966, %v974
    %v977 = vadd.f32 %v967, %v974
    %v978 = vadd.f32 %v968, %v974
    %v979 = vadd.f32 %v969, %v974
    %v980 = vld [vmem:[%s11] sm:$0xff]
    %981 = vrot.lane.b32.xlu0 %v976, 6
    %v982 = vpop.permute.xlu0 %981
    %983 = vrot.lane.b32.xlu0 %v977, 6
    %v984 = vpop.permute.xlu0 %983
    %985 = vrot.lane.b32.xlu0 %v978, 6
    %v986 = vpop.permute.xlu0 %985
    %987 = vrot.lane.b32.xlu0 %v979, 6
    %v988 = vpop.permute.xlu0 %987
    %vm989 = vcmp.lt.s32.totalorder %v362, 6
    %v990 = vsel %vm989, %v986, %v988
    %v991 = vsel %vm989, %v984, %v986
    %v992 = vsel %vm989, %v982, %v984
    %v993 = vsel %vm989, %v988, %v982
    %v994 = vld [vmem:[%s3] ss:$8 sm:$0xf]
    %v996 = vlaneseq
    %v997 = vshrl.u32 %v996, 7
    %v998 = vsub.s32 0, %v997
    %v999 = vrot.slane %v994, %v998
    %v1000 = vlaneseq
    %v1001 = vshrl.u32 %v1000, 7
    %v1002 = vsub.s32 1, %v1001
    %v1003 = vrot.slane %v994, %v1002
    %v1004 = vlaneseq
    %v1005 = vshrl.u32 %v1004, 7
    %v1006 = vsub.s32 2, %v1005
    %v1007 = vrot.slane %v994, %v1006
    %v1008 = vlaneseq
    %v1009 = vshrl.u32 %v1008, 7
    %v1010 = vsub.s32 3, %v1009
    %v1011 = vrot.slane %v994, %v1010
    %v1016 = vmul.f32 %v993, %v999
    %v1017 = vmul.f32 %v992, %v1003
    %v1018 = vmul.f32 %v991, %v1007
    %v1019 = vmul.f32 %v990, %v1011
    %1020 = vrot.lane.b32.xlu0 %v976, 3
    %v1021 = vpop.permute.xlu0 %1020
    %1022 = vrot.lane.b32.xlu0 %v977, 3
    %v1023 = vpop.permute.xlu0 %1022
    %1024 = vrot.lane.b32.xlu0 %v978, 3
    %v1025 = vpop.permute.xlu0 %1024
    %1026 = vrot.lane.b32.xlu0 %v979, 3
    %v1027 = vpop.permute.xlu0 %1026
    %vm1028 = vcmp.lt.s32.totalorder %v362, 3
    %v1029 = vsel %vm1028, %v1025, %v1027
    %v1030 = vsel %vm1028, %v1023, %v1025
    %v1031 = vsel %vm1028, %v1021, %v1023
    %v1032 = vsel %vm1028, %v1027, %v1021
    %s1033 = scalar_lea.vmem %s3, 1
    %v1034 = vld [vmem:[%s1033] ss:$8 sm:$0xf]
    %v1036 = vlaneseq
    %v1037 = vshrl.u32 %v1036, 7
    %v1038 = vsub.s32 0, %v1037
    %v1039 = vrot.slane %v1034, %v1038
    %v1040 = vlaneseq
    %v1041 = vshrl.u32 %v1040, 7
    %v1042 = vsub.s32 1, %v1041
    %v1043 = vrot.slane %v1034, %v1042
    %v1044 = vlaneseq
    %v1045 = vshrl.u32 %v1044, 7
    %v1046 = vsub.s32 2, %v1045
    %v1047 = vrot.slane %v1034, %v1046
    %v1048 = vlaneseq
    %v1049 = vshrl.u32 %v1048, 7
    %v1050 = vsub.s32 3, %v1049
    %v1051 = vrot.slane %v1034, %v1050
    %v1056 = vmul.f32 %v1032, %v1039
    %v1057 = vmul.f32 %v1031, %v1043
    %v1058 = vmul.f32 %v1030, %v1047
    %v1059 = vmul.f32 %v1029, %v1051
    %1060 = vrot.lane.b32.xlu0 %v976, 125
    %v1061 = vpop.permute.xlu0 %1060
    %1062 = vrot.lane.b32.xlu0 %v977, 125
    %v1063 = vpop.permute.xlu0 %1062
    %1064 = vrot.lane.b32.xlu0 %v978, 125
    %v1065 = vpop.permute.xlu0 %1064
    %1066 = vrot.lane.b32.xlu0 %v979, 125
    %v1067 = vpop.permute.xlu0 %1066
    %vm1068 = vcmp.lt.s32.totalorder %v362, 125
    %v1069 = vsel %vm1068, %v1065, %v1067
    %v1070 = vsel %vm1068, %v1063, %v1065
    %v1071 = vsel %vm1068, %v1061, %v1063
    %v1072 = vsel %vm1068, %v1067, %v1061
    %s1073 = scalar_lea.vmem %s3, 3
    %v1074 = vld [vmem:[%s1073] ss:$8 sm:$0xf]
    %v1076 = vlaneseq
    %v1077 = vshrl.u32 %v1076, 7
    %v1078 = vsub.s32 0, %v1077
    %v1079 = vrot.slane %v1074, %v1078
    %v1080 = vlaneseq
    %v1081 = vshrl.u32 %v1080, 7
    %v1082 = vsub.s32 1, %v1081
    %v1083 = vrot.slane %v1074, %v1082
    %v1084 = vlaneseq
    %v1085 = vshrl.u32 %v1084, 7
    %v1086 = vsub.s32 2, %v1085
    %v1087 = vrot.slane %v1074, %v1086
    %v1088 = vlaneseq
    %v1089 = vshrl.u32 %v1088, 7
    %v1090 = vsub.s32 3, %v1089
    %v1091 = vrot.slane %v1074, %v1090
    %v1096 = vmul.f32 %v1071, %v1079
    %v1097 = vmul.f32 %v1070, %v1083
    %v1098 = vmul.f32 %v1069, %v1087
    %v1099 = vmul.f32 %v1072, %v1091
    %1100 = vrot.lane.b32.xlu0 %v976, 122
    %v1101 = vpop.permute.xlu0 %1100
    %1102 = vrot.lane.b32.xlu0 %v977, 122
    %v1103 = vpop.permute.xlu0 %1102
    %1104 = vrot.lane.b32.xlu0 %v978, 122
    %v1105 = vpop.permute.xlu0 %1104
    %1106 = vrot.lane.b32.xlu0 %v979, 122
    %v1107 = vpop.permute.xlu0 %1106
    %vm1108 = vcmp.lt.s32.totalorder %v362, 122
    %v1109 = vsel %vm1108, %v1105, %v1107
    %v1110 = vsel %vm1108, %v1103, %v1105
    %v1111 = vsel %vm1108, %v1101, %v1103
    %v1112 = vsel %vm1108, %v1107, %v1101
    %s1113 = scalar_lea.vmem %s3, 4
    %v1114 = vld [vmem:[%s1113] ss:$8 sm:$0xf]
    %v1116 = vlaneseq
    %v1117 = vshrl.u32 %v1116, 7
    %v1118 = vsub.s32 0, %v1117
    %v1119 = vrot.slane %v1114, %v1118
    %v1120 = vlaneseq
    %v1121 = vshrl.u32 %v1120, 7
    %v1122 = vsub.s32 1, %v1121
    %v1123 = vrot.slane %v1114, %v1122
    %v1124 = vlaneseq
    %v1125 = vshrl.u32 %v1124, 7
    %v1126 = vsub.s32 2, %v1125
    %v1127 = vrot.slane %v1114, %v1126
    %v1128 = vlaneseq
    %v1129 = vshrl.u32 %v1128, 7
    %v1130 = vsub.s32 3, %v1129
    %v1131 = vrot.slane %v1114, %v1130
    %v1136 = vmul.f32 %v1111, %v1119
    %v1137 = vmul.f32 %v1110, %v1123
    %v1138 = vmul.f32 %v1109, %v1127
    %v1139 = vmul.f32 %v1112, %v1131
    %1141 = vset.pattern.permute.xlu0 0
    %1142 = vperm.xlu0 %1141, %v980
    %v1143 = vpop.permute.xlu0 %1142
    %v1145 = vmul.f32 %v1143, %v1016
    %v1146 = vmul.f32 %v1143, %v1017
    %v1147 = vmul.f32 %v1143, %v1018
    %v1148 = vmul.f32 %v1143, %v1019
    %1149 = vset.pattern.permute.xlu0 1
    %1150 = vperm.xlu0 %1149, %v980
    %v1151 = vpop.permute.xlu0 %1150
    %v1153 = vmul.f32 %v1151, %v1056
    %v1154 = vmul.f32 %v1151, %v1057
    %v1155 = vmul.f32 %v1151, %v1058
    %v1156 = vmul.f32 %v1151, %v1059
    %v1157 = vadd.f32 %v1145, %v1153
    %v1158 = vadd.f32 %v1146, %v1154
    %v1159 = vadd.f32 %v1147, %v1155
    %v1160 = vadd.f32 %v1148, %v1156
    %1161 = vset.pattern.permute.xlu0 2
    %1162 = vperm.xlu0 %1161, %v980
    %v1163 = vpop.permute.xlu0 %1162
    %v1165 = vmul.f32 %v1163, %v976
    %v1166 = vmul.f32 %v1163, %v977
    %v1167 = vmul.f32 %v1163, %v978
    %v1168 = vmul.f32 %v1163, %v979
    %v1169 = vadd.f32 %v1157, %v1165
    %v1170 = vadd.f32 %v1158, %v1166
    %v1171 = vadd.f32 %v1159, %v1167
    %v1172 = vadd.f32 %v1160, %v1168
    %1173 = vset.pattern.permute.xlu0 3
    %1174 = vperm.xlu0 %1173, %v980
    %v1175 = vpop.permute.xlu0 %1174
    %v1177 = vmul.f32 %v1175, %v1096
    %v1178 = vmul.f32 %v1175, %v1097
    %v1179 = vmul.f32 %v1175, %v1098
    %v1180 = vmul.f32 %v1175, %v1099
    %v1181 = vadd.f32 %v1169, %v1177
    %v1182 = vadd.f32 %v1170, %v1178
    %v1183 = vadd.f32 %v1171, %v1179
    %v1184 = vadd.f32 %v1172, %v1180
    %1185 = vset.pattern.permute.xlu0 4
    %1186 = vperm.xlu0 %1185, %v980
    %v1187 = vpop.permute.xlu0 %1186
    %v1189 = vmul.f32 %v1187, %v1136
    %v1190 = vmul.f32 %v1187, %v1137
    %v1191 = vmul.f32 %v1187, %v1138
    %v1192 = vmul.f32 %v1187, %v1139
    %v1193 = vadd.f32 %v1181, %v1189
    %v1194 = vadd.f32 %v1182, %v1190
    %v1195 = vadd.f32 %v1183, %v1191
    %v1196 = vadd.f32 %v1184, %v1192
    %1197 = vrot.lane.b32.xlu0 %v1193, 96
    %v1198 = vpop.permute.xlu0 %1197
    %1199 = vrot.lane.b32.xlu0 %v1194, 96
    %v1200 = vpop.permute.xlu0 %1199
    %1201 = vrot.lane.b32.xlu0 %v1195, 96
    %v1202 = vpop.permute.xlu0 %1201
    %1203 = vrot.lane.b32.xlu0 %v1196, 96
    %v1204 = vpop.permute.xlu0 %1203
    %v1205 = vsel %vm934, %v1202, %v1204
    %v1206 = vsel %vm934, %v1200, %v1202
    %v1207 = vsel %vm934, %v1198, %v1200
    %v1208 = vsel %vm934, %v1204, %v1198
    %v1209 = vld [vmem:[%s4] ss:$8 sm:$0xf]
    %v1211 = vlaneseq
    %v1212 = vshrl.u32 %v1211, 7
    %v1213 = vsub.s32 0, %v1212
    %v1214 = vrot.slane %v1209, %v1213
    %v1215 = vlaneseq
    %v1216 = vshrl.u32 %v1215, 7
    %v1217 = vsub.s32 1, %v1216
    %v1218 = vrot.slane %v1209, %v1217
    %v1219 = vlaneseq
    %v1220 = vshrl.u32 %v1219, 7
    %v1221 = vsub.s32 2, %v1220
    %v1222 = vrot.slane %v1209, %v1221
    %v1223 = vlaneseq
    %v1224 = vshrl.u32 %v1223, 7
    %v1225 = vsub.s32 3, %v1224
    %v1226 = vrot.slane %v1209, %v1225
    %v1231 = vmul.f32 %v1208, %v1214
    %v1232 = vmul.f32 %v1207, %v1218
    %v1233 = vmul.f32 %v1206, %v1222
    %v1234 = vmul.f32 %v1205, %v1226
    %1235 = vset.pattern.permute.xlu0 5
    %1236 = vperm.xlu0 %1235, %v980
    %v1237 = vpop.permute.xlu0 %1236
    %v1239 = vmul.f32 %v1237, %v1016
    %v1240 = vmul.f32 %v1237, %v1017
    %v1241 = vmul.f32 %v1237, %v1018
    %v1242 = vmul.f32 %v1237, %v1019
    %1243 = vset.pattern.permute.xlu0 6
    %1244 = vperm.xlu0 %1243, %v980
    %v1245 = vpop.permute.xlu0 %1244
    %v1247 = vmul.f32 %v1245, %v1056
    %v1248 = vmul.f32 %v1245, %v1057
    %v1249 = vmul.f32 %v1245, %v1058
    %v1250 = vmul.f32 %v1245, %v1059
    %v1251 = vadd.f32 %v1239, %v1247
    %v1252 = vadd.f32 %v1240, %v1248
    %v1253 = vadd.f32 %v1241, %v1249
    %v1254 = vadd.f32 %v1242, %v1250
    %1255 = vset.pattern.permute.xlu0 7
    %1256 = vperm.xlu0 %1255, %v980
    %v1257 = vpop.permute.xlu0 %1256
    %v1259 = vmul.f32 %v1257, %v976
    %v1260 = vmul.f32 %v1257, %v977
    %v1261 = vmul.f32 %v1257, %v978
    %v1262 = vmul.f32 %v1257, %v979
    %v1263 = vadd.f32 %v1251, %v1259
    %v1264 = vadd.f32 %v1252, %v1260
    %v1265 = vadd.f32 %v1253, %v1261
    %v1266 = vadd.f32 %v1254, %v1262
    %1267 = vset.pattern.permute.xlu0 8
    %1268 = vperm.xlu0 %1267, %v980
    %v1269 = vpop.permute.xlu0 %1268
    %v1271 = vmul.f32 %v1269, %v1096
    %v1272 = vmul.f32 %v1269, %v1097
    %v1273 = vmul.f32 %v1269, %v1098
    %v1274 = vmul.f32 %v1269, %v1099
    %v1275 = vadd.f32 %v1263, %v1271
    %v1276 = vadd.f32 %v1264, %v1272
    %v1277 = vadd.f32 %v1265, %v1273
    %v1278 = vadd.f32 %v1266, %v1274
    %1279 = vset.pattern.permute.xlu0 9
    %1280 = vperm.xlu0 %1279, %v980
    %v1281 = vpop.permute.xlu0 %1280
    %v1283 = vmul.f32 %v1281, %v1136
    %v1284 = vmul.f32 %v1281, %v1137
    %v1285 = vmul.f32 %v1281, %v1138
    %v1286 = vmul.f32 %v1281, %v1139
    %v1287 = vadd.f32 %v1275, %v1283
    %v1288 = vadd.f32 %v1276, %v1284
    %v1289 = vadd.f32 %v1277, %v1285
    %v1290 = vadd.f32 %v1278, %v1286
    %1291 = vrot.lane.b32.xlu0 %v1287, 48
    %v1292 = vpop.permute.xlu0 %1291
    %1293 = vrot.lane.b32.xlu0 %v1288, 48
    %v1294 = vpop.permute.xlu0 %1293
    %1295 = vrot.lane.b32.xlu0 %v1289, 48
    %v1296 = vpop.permute.xlu0 %1295
    %1297 = vrot.lane.b32.xlu0 %v1290, 48
    %v1298 = vpop.permute.xlu0 %1297
    %vm1299 = vcmp.lt.s32.totalorder %v362, 48
    %v1300 = vsel %vm1299, %v1296, %v1298
    %v1301 = vsel %vm1299, %v1294, %v1296
    %v1302 = vsel %vm1299, %v1292, %v1294
    %v1303 = vsel %vm1299, %v1298, %v1292
    %s1304 = scalar_lea.vmem %s4, 1
    %v1305 = vld [vmem:[%s1304] ss:$8 sm:$0xf]
    %v1307 = vlaneseq
    %v1308 = vshrl.u32 %v1307, 7
    %v1309 = vsub.s32 0, %v1308
    %v1310 = vrot.slane %v1305, %v1309
    %v1311 = vlaneseq
    %v1312 = vshrl.u32 %v1311, 7
    %v1313 = vsub.s32 1, %v1312
    %v1314 = vrot.slane %v1305, %v1313
    %v1315 = vlaneseq
    %v1316 = vshrl.u32 %v1315, 7
    %v1317 = vsub.s32 2, %v1316
    %v1318 = vrot.slane %v1305, %v1317
    %v1319 = vlaneseq
    %v1320 = vshrl.u32 %v1319, 7
    %v1321 = vsub.s32 3, %v1320
    %v1322 = vrot.slane %v1305, %v1321
    %v1327 = vmul.f32 %v1303, %v1310
    %v1328 = vmul.f32 %v1302, %v1314
    %v1329 = vmul.f32 %v1301, %v1318
    %v1330 = vmul.f32 %v1300, %v1322
    %v1331 = vadd.f32 %v1231, %v1327
    %v1332 = vadd.f32 %v1232, %v1328
    %v1333 = vadd.f32 %v1233, %v1329
    %v1334 = vadd.f32 %v1234, %v1330
    %1335 = vset.pattern.permute.xlu0 10
    %1336 = vperm.xlu0 %1335, %v980
    %v1337 = vpop.permute.xlu0 %1336
    %v1339 = vmul.f32 %v1337, %v1016
    %v1340 = vmul.f32 %v1337, %v1017
    %v1341 = vmul.f32 %v1337, %v1018
    %v1342 = vmul.f32 %v1337, %v1019
    %1343 = vset.pattern.permute.xlu0 11
    %1344 = vperm.xlu0 %1343, %v980
    %v1345 = vpop.permute.xlu0 %1344
    %v1347 = vmul.f32 %v1345, %v1056
    %v1348 = vmul.f32 %v1345, %v1057
    %v1349 = vmul.f32 %v1345, %v1058
    %v1350 = vmul.f32 %v1345, %v1059
    %v1351 = vadd.f32 %v1339, %v1347
    %v1352 = vadd.f32 %v1340, %v1348
    %v1353 = vadd.f32 %v1341, %v1349
    %v1354 = vadd.f32 %v1342, %v1350
    %1355 = vset.pattern.permute.xlu0 12
    %1356 = vperm.xlu0 %1355, %v980
    %v1357 = vpop.permute.xlu0 %1356
    %v1359 = vmul.f32 %v1357, %v976
    %v1360 = vmul.f32 %v1357, %v977
    %v1361 = vmul.f32 %v1357, %v978
    %v1362 = vmul.f32 %v1357, %v979
    %v1363 = vadd.f32 %v1351, %v1359
    %v1364 = vadd.f32 %v1352, %v1360
    %v1365 = vadd.f32 %v1353, %v1361
    %v1366 = vadd.f32 %v1354, %v1362
    %1367 = vset.pattern.permute.xlu0 13
    %1368 = vperm.xlu0 %1367, %v980
    %v1369 = vpop.permute.xlu0 %1368
    %v1371 = vmul.f32 %v1369, %v1096
    %v1372 = vmul.f32 %v1369, %v1097
    %v1373 = vmul.f32 %v1369, %v1098
    %v1374 = vmul.f32 %v1369, %v1099
    %v1375 = vadd.f32 %v1363, %v1371
    %v1376 = vadd.f32 %v1364, %v1372
    %v1377 = vadd.f32 %v1365, %v1373
    %v1378 = vadd.f32 %v1366, %v1374
    %1379 = vset.pattern.permute.xlu0 14
    %1380 = vperm.xlu0 %1379, %v980
    %v1381 = vpop.permute.xlu0 %1380
    %v1383 = vmul.f32 %v1381, %v1136
    %v1384 = vmul.f32 %v1381, %v1137
    %v1385 = vmul.f32 %v1381, %v1138
    %v1386 = vmul.f32 %v1381, %v1139
    %v1387 = vadd.f32 %v1375, %v1383
    %v1388 = vadd.f32 %v1376, %v1384
    %v1389 = vadd.f32 %v1377, %v1385
    %v1390 = vadd.f32 %v1378, %v1386
    %v1391 = vadd.f32 %v1331, %v1387
    %v1392 = vadd.f32 %v1332, %v1388
    %v1393 = vadd.f32 %v1333, %v1389
    %v1394 = vadd.f32 %v1334, %v1390
    %1395 = vset.pattern.permute.xlu0 15
    %1396 = vperm.xlu0 %1395, %v980
    %v1397 = vpop.permute.xlu0 %1396
    %v1399 = vmul.f32 %v1397, %v1016
    %v1400 = vmul.f32 %v1397, %v1017
    %v1401 = vmul.f32 %v1397, %v1018
    %v1402 = vmul.f32 %v1397, %v1019
    %1403 = vset.pattern.permute.xlu0 16
    %1404 = vperm.xlu0 %1403, %v980
    %v1405 = vpop.permute.xlu0 %1404
    %v1407 = vmul.f32 %v1405, %v1056
    %v1408 = vmul.f32 %v1405, %v1057
    %v1409 = vmul.f32 %v1405, %v1058
    %v1410 = vmul.f32 %v1405, %v1059
    %v1411 = vadd.f32 %v1399, %v1407
    %v1412 = vadd.f32 %v1400, %v1408
    %v1413 = vadd.f32 %v1401, %v1409
    %v1414 = vadd.f32 %v1402, %v1410
    %1415 = vset.pattern.permute.xlu0 17
    %1416 = vperm.xlu0 %1415, %v980
    %v1417 = vpop.permute.xlu0 %1416
    %v1419 = vmul.f32 %v1417, %v976
    %v1420 = vmul.f32 %v1417, %v977
    %v1421 = vmul.f32 %v1417, %v978
    %v1422 = vmul.f32 %v1417, %v979
    %v1423 = vadd.f32 %v1411, %v1419
    %v1424 = vadd.f32 %v1412, %v1420
    %v1425 = vadd.f32 %v1413, %v1421
    %v1426 = vadd.f32 %v1414, %v1422
    %1427 = vset.pattern.permute.xlu0 18
    %1428 = vperm.xlu0 %1427, %v980
    %v1429 = vpop.permute.xlu0 %1428
    %v1431 = vmul.f32 %v1429, %v1096
    %v1432 = vmul.f32 %v1429, %v1097
    %v1433 = vmul.f32 %v1429, %v1098
    %v1434 = vmul.f32 %v1429, %v1099
    %v1435 = vadd.f32 %v1423, %v1431
    %v1436 = vadd.f32 %v1424, %v1432
    %v1437 = vadd.f32 %v1425, %v1433
    %v1438 = vadd.f32 %v1426, %v1434
    %1439 = vset.pattern.permute.xlu0 19
    %1440 = vperm.xlu0 %1439, %v980
    %v1441 = vpop.permute.xlu0 %1440
    %v1443 = vmul.f32 %v1441, %v1136
    %v1444 = vmul.f32 %v1441, %v1137
    %v1445 = vmul.f32 %v1441, %v1138
    %v1446 = vmul.f32 %v1441, %v1139
    %v1447 = vadd.f32 %v1435, %v1443
    %v1448 = vadd.f32 %v1436, %v1444
    %v1449 = vadd.f32 %v1437, %v1445
    %v1450 = vadd.f32 %v1438, %v1446
    %1451 = vrot.lane.b32.xlu0 %v1447, 80
    %v1452 = vpop.permute.xlu0 %1451
    %1453 = vrot.lane.b32.xlu0 %v1448, 80
    %v1454 = vpop.permute.xlu0 %1453
    %1455 = vrot.lane.b32.xlu0 %v1449, 80
    %v1456 = vpop.permute.xlu0 %1455
    %1457 = vrot.lane.b32.xlu0 %v1450, 80
    %v1458 = vpop.permute.xlu0 %1457
    %vm1459 = vcmp.lt.s32.totalorder %v362, 80
    %v1460 = vsel %vm1459, %v1456, %v1458
    %v1461 = vsel %vm1459, %v1454, %v1456
    %v1462 = vsel %vm1459, %v1452, %v1454
    %v1463 = vsel %vm1459, %v1458, %v1452
    %s1464 = scalar_lea.vmem %s4, 3
    %v1465 = vld [vmem:[%s1464] ss:$8 sm:$0xf]
    %v1467 = vlaneseq
    %v1468 = vshrl.u32 %v1467, 7
    %v1469 = vsub.s32 0, %v1468
    %v1470 = vrot.slane %v1465, %v1469
    %v1471 = vlaneseq
    %v1472 = vshrl.u32 %v1471, 7
    %v1473 = vsub.s32 1, %v1472
    %v1474 = vrot.slane %v1465, %v1473
    %v1475 = vlaneseq
    %v1476 = vshrl.u32 %v1475, 7
    %v1477 = vsub.s32 2, %v1476
    %v1478 = vrot.slane %v1465, %v1477
    %v1479 = vlaneseq
    %v1480 = vshrl.u32 %v1479, 7
    %v1481 = vsub.s32 3, %v1480
    %v1482 = vrot.slane %v1465, %v1481
    %v1487 = vmul.f32 %v1462, %v1470
    %v1488 = vmul.f32 %v1461, %v1474
    %v1489 = vmul.f32 %v1460, %v1478
    %v1490 = vmul.f32 %v1463, %v1482
    %v1491 = vadd.f32 %v1391, %v1487
    %v1492 = vadd.f32 %v1392, %v1488
    %v1493 = vadd.f32 %v1393, %v1489
    %v1494 = vadd.f32 %v1394, %v1490
    %1495 = vset.pattern.permute.xlu0 20
    %1496 = vperm.xlu0 %1495, %v980
    %v1497 = vpop.permute.xlu0 %1496
    %v1499 = vmul.f32 %v1497, %v1016
    %v1500 = vmul.f32 %v1497, %v1017
    %v1501 = vmul.f32 %v1497, %v1018
    %v1502 = vmul.f32 %v1497, %v1019
    %1503 = vset.pattern.permute.xlu0 21
    %1504 = vperm.xlu0 %1503, %v980
    %v1505 = vpop.permute.xlu0 %1504
    %v1507 = vmul.f32 %v1505, %v1056
    %v1508 = vmul.f32 %v1505, %v1057
    %v1509 = vmul.f32 %v1505, %v1058
    %v1510 = vmul.f32 %v1505, %v1059
    %v1511 = vadd.f32 %v1499, %v1507
    %v1512 = vadd.f32 %v1500, %v1508
    %v1513 = vadd.f32 %v1501, %v1509
    %v1514 = vadd.f32 %v1502, %v1510
    %1515 = vset.pattern.permute.xlu0 22
    %1516 = vperm.xlu0 %1515, %v980
    %v1517 = vpop.permute.xlu0 %1516
    %v1519 = vmul.f32 %v1517, %v976
    %v1520 = vmul.f32 %v1517, %v977
    %v1521 = vmul.f32 %v1517, %v978
    %v1522 = vmul.f32 %v1517, %v979
    %v1523 = vadd.f32 %v1511, %v1519
    %v1524 = vadd.f32 %v1512, %v1520
    %v1525 = vadd.f32 %v1513, %v1521
    %v1526 = vadd.f32 %v1514, %v1522
    %1527 = vset.pattern.permute.xlu0 23
    %1528 = vperm.xlu0 %1527, %v980
    %v1529 = vpop.permute.xlu0 %1528
    %v1531 = vmul.f32 %v1529, %v1096
    %v1532 = vmul.f32 %v1529, %v1097
    %v1533 = vmul.f32 %v1529, %v1098
    %v1534 = vmul.f32 %v1529, %v1099
    %v1535 = vadd.f32 %v1523, %v1531
    %v1536 = vadd.f32 %v1524, %v1532
    %v1537 = vadd.f32 %v1525, %v1533
    %v1538 = vadd.f32 %v1526, %v1534
    %1539 = vset.pattern.permute.xlu0 24
    %1540 = vperm.xlu0 %1539, %v980
    %v1541 = vpop.permute.xlu0 %1540
    %v1543 = vmul.f32 %v1541, %v1136
    %v1544 = vmul.f32 %v1541, %v1137
    %v1545 = vmul.f32 %v1541, %v1138
    %v1546 = vmul.f32 %v1541, %v1139
    %v1547 = vadd.f32 %v1535, %v1543
    %v1548 = vadd.f32 %v1536, %v1544
    %v1549 = vadd.f32 %v1537, %v1545
    %v1550 = vadd.f32 %v1538, %v1546
    %1551 = vrot.lane.b32.xlu0 %v1547, 32
    %v1552 = vpop.permute.xlu0 %1551
    %1553 = vrot.lane.b32.xlu0 %v1548, 32
    %v1554 = vpop.permute.xlu0 %1553
    %1555 = vrot.lane.b32.xlu0 %v1549, 32
    %v1556 = vpop.permute.xlu0 %1555
    %1557 = vrot.lane.b32.xlu0 %v1550, 32
    %v1558 = vpop.permute.xlu0 %1557
    %v1559 = vsel %vm579, %v1556, %v1558
    %v1560 = vsel %vm579, %v1554, %v1556
    %v1561 = vsel %vm579, %v1552, %v1554
    %v1562 = vsel %vm579, %v1558, %v1552
    %s1563 = scalar_lea.vmem %s4, 4
    %v1564 = vld [vmem:[%s1563] ss:$8 sm:$0xf]
    %v1566 = vlaneseq
    %v1567 = vshrl.u32 %v1566, 7
    %v1568 = vsub.s32 0, %v1567
    %v1569 = vrot.slane %v1564, %v1568
    %v1570 = vlaneseq
    %v1571 = vshrl.u32 %v1570, 7
    %v1572 = vsub.s32 1, %v1571
    %v1573 = vrot.slane %v1564, %v1572
    %v1574 = vlaneseq
    %v1575 = vshrl.u32 %v1574, 7
    %v1576 = vsub.s32 2, %v1575
    %v1577 = vrot.slane %v1564, %v1576
    %v1578 = vlaneseq
    %v1579 = vshrl.u32 %v1578, 7
    %v1580 = vsub.s32 3, %v1579
    %v1581 = vrot.slane %v1564, %v1580
    %v1586 = vmul.f32 %v1561, %v1569
    %v1587 = vmul.f32 %v1560, %v1573
    %v1588 = vmul.f32 %v1559, %v1577
    %v1589 = vmul.f32 %v1562, %v1581
    %v1590 = vadd.f32 %v1491, %v1586
    %v1591 = vadd.f32 %v1492, %v1587
    %v1592 = vadd.f32 %v1493, %v1588
    %v1593 = vadd.f32 %v1494, %v1589
    %v1594 = vld [vmem:[%s12] sm:$0xff]
    %1596 = vset.pattern.permute.xlu0 0
    %1597 = vperm.xlu0 %1596, %v1594
    %v1598 = vpop.permute.xlu0 %1597
    %v1600 = vadd.f32 %v1590, %v1598
    %v1601 = vadd.f32 %v1591, %v1598
    %v1602 = vadd.f32 %v1592, %v1598
    %v1603 = vadd.f32 %v1593, %v1598
    %v1604 = vld [vmem:[%s13] sm:$0xff]
    %v1605 = vld [vmem:[%s14] sm:$0xff]
    %1607 = vset.pattern.permute.xlu0 0
    %1608 = vperm.xlu0 %1607, %v1605
    %v1609 = vpop.permute.xlu0 %1608
    %v1612 = vsel %vm74, %v1604, 0
    %1614 = vmatprep.subr.mxu0 %v1601
    %1615 = vmatpush1.msra.mxu0 %v1600
    %1616 = vmatprep.subr.mxu0 0.0
    %1617 = vmatpush1.msra.mxu0 0.0
    %1618 = vmatprep.subr.mxu0 0.0
    %1619 = vmatpush1.msra.mxu0 0.0
    %1620 = vmatprep.subr.mxu0 0.0
    %1621 = vmatpush1.msra.mxu0 0.0
    %1622 = vmatprep.subr.mxu0 0.0
    %1623 = vmatpush1.msra.mxu0 0.0
    %1624 = vmatprep.subr.mxu0 0.0
    %1625 = vmatpush1.msra.mxu0 0.0
    %1626 = vmatprep.subr.mxu0 0.0
    %1627 = vmatpush1.msra.mxu0 0.0
    %1628 = vmatprep.subr.mxu0 0.0
    %1629 = vmatpush1.msra.mxu0 0.0
    %1630 = vmatprep.subr.mxu0 0.0
    %1631 = vmatpush1.msra.mxu0 0.0
    %1632 = vmatprep.subr.mxu0 0.0
    %1633 = vmatpush1.msra.mxu0 0.0
    %1634 = vmatprep.subr.mxu0 0.0
    %1635 = vmatpush1.msra.mxu0 0.0
    %1636 = vmatprep.subr.mxu0 0.0
    %1637 = vmatpush1.msra.mxu0 0.0
    %1638 = vmatprep.subr.mxu0 0.0
    %1639 = vmatpush1.msra.mxu0 0.0
    %1640 = vmatprep.subr.mxu0 0.0
    %1641 = vmatpush1.msra.mxu0 0.0
    %1642 = vmatprep.subr.mxu0 0.0
    %1643 = vmatpush1.msra.mxu0 0.0
    %1644 = vmatprep.subr.mxu0 0.0
    %1645 = vmatpush1.msra.mxu0 0.0
    %1646 = vmatprep.subr.mxu0 0.0
    %1647 = vmatpush1.msra.mxu0 0.0
    %1648 = vmatprep.subr.mxu0 0.0
    %1649 = vmatpush1.msra.mxu0 0.0
    %1650 = vmatprep.subr.mxu0 0.0
    %1651 = vmatpush1.msra.mxu0 0.0
    %1652 = vmatprep.subr.mxu0 0.0
    %1653 = vmatpush1.msra.mxu0 0.0
    %1654 = vmatprep.subr.mxu0 0.0
    %1655 = vmatpush1.msra.mxu0 0.0
    %1656 = vmatprep.subr.mxu0 0.0
    %1657 = vmatpush1.msra.mxu0 0.0
    %1658 = vmatprep.subr.mxu0 0.0
    %1659 = vmatpush1.msra.mxu0 0.0
    %1660 = vmatprep.subr.mxu0 0.0
    %1661 = vmatpush1.msra.mxu0 0.0
    %1662 = vmatprep.subr.mxu0 0.0
    %1663 = vmatpush1.msra.mxu0 0.0
    %1664 = vmatprep.subr.mxu0 0.0
    %1665 = vmatpush1.msra.mxu0 0.0
    %1666 = vmatprep.subr.mxu0 0.0
    %1667 = vmatpush1.msra.mxu0 0.0
    %1668 = vmatprep.subr.mxu0 0.0
    %1669 = vmatpush1.msra.mxu0 0.0
    %1670 = vmatprep.subr.mxu0 0.0
    %1671 = vmatpush1.msra.mxu0 0.0
    %1672 = vmatprep.subr.mxu0 0.0
    %1673 = vmatpush1.msra.mxu0 0.0
    %1674 = vmatprep.subr.mxu0 0.0
    %1675 = vmatpush1.msra.mxu0 0.0
    %1676 = vmatprep.subr.mxu0 0.0
    %1677 = vmatpush1.msra.mxu0 0.0
    %1678 = vmatprep.mubr.f32.mxu0 0.0
    %1679 = vmatmul.mubr.f32.gmra.mrb[0].mxu0 %v1612
    %v1680 = vpop.f32.mrb[0].mxu0
    %v1681 = vadd.f32 %v1609, %v1680
    %v1682 = vpop.f32.mrb[0].mxu0
    %v1683 = vadd.f32 %v1609, %v1682
    %1684 = vdwg.mxu0
    %1685 = vmatprep.subr.mxu0 %v1603
    %1686 = vmatpush1.msra.mxu0 %v1602
    %1687 = vmatprep.subr.mxu0 0.0
    %1688 = vmatpush1.msra.mxu0 0.0
    %1689 = vmatprep.subr.mxu0 0.0
    %1690 = vmatpush1.msra.mxu0 0.0
    %1691 = vmatprep.subr.mxu0 0.0
    %1692 = vmatpush1.msra.mxu0 0.0
    %1693 = vmatprep.subr.mxu0 0.0
    %1694 = vmatpush1.msra.mxu0 0.0
    %1695 = vmatprep.subr.mxu0 0.0
    %1696 = vmatpush1.msra.mxu0 0.0
    %1697 = vmatprep.subr.mxu0 0.0
    %1698 = vmatpush1.msra.mxu0 0.0
    %1699 = vmatprep.subr.mxu0 0.0
    %1700 = vmatpush1.msra.mxu0 0.0
    %1701 = vmatprep.subr.mxu0 0.0
    %1702 = vmatpush1.msra.mxu0 0.0
    %1703 = vmatprep.subr.mxu0 0.0
    %1704 = vmatpush1.msra.mxu0 0.0
    %1705 = vmatprep.subr.mxu0 0.0
    %1706 = vmatpush1.msra.mxu0 0.0
    %1707 = vmatprep.subr.mxu0 0.0
    %1708 = vmatpush1.msra.mxu0 0.0
    %1709 = vmatprep.subr.mxu0 0.0
    %1710 = vmatpush1.msra.mxu0 0.0
    %1711 = vmatprep.subr.mxu0 0.0
    %1712 = vmatpush1.msra.mxu0 0.0
    %1713 = vmatprep.subr.mxu0 0.0
    %1714 = vmatpush1.msra.mxu0 0.0
    %1715 = vmatprep.subr.mxu0 0.0
    %1716 = vmatpush1.msra.mxu0 0.0
    %1717 = vmatprep.subr.mxu0 0.0
    %1718 = vmatpush1.msra.mxu0 0.0
    %1719 = vmatprep.subr.mxu0 0.0
    %1720 = vmatpush1.msra.mxu0 0.0
    %1721 = vmatprep.subr.mxu0 0.0
    %1722 = vmatpush1.msra.mxu0 0.0
    %1723 = vmatprep.subr.mxu0 0.0
    %1724 = vmatpush1.msra.mxu0 0.0
    %1725 = vmatprep.subr.mxu0 0.0
    %1726 = vmatpush1.msra.mxu0 0.0
    %1727 = vmatprep.subr.mxu0 0.0
    %1728 = vmatpush1.msra.mxu0 0.0
    %1729 = vmatprep.subr.mxu0 0.0
    %1730 = vmatpush1.msra.mxu0 0.0
    %1731 = vmatprep.subr.mxu0 0.0
    %1732 = vmatpush1.msra.mxu0 0.0
    %1733 = vmatprep.subr.mxu0 0.0
    %1734 = vmatpush1.msra.mxu0 0.0
    %1735 = vmatprep.subr.mxu0 0.0
    %1736 = vmatpush1.msra.mxu0 0.0
    %1737 = vmatprep.subr.mxu0 0.0
    %1738 = vmatpush1.msra.mxu0 0.0
    %1739 = vmatprep.subr.mxu0 0.0
    %1740 = vmatpush1.msra.mxu0 0.0
    %1741 = vmatprep.subr.mxu0 0.0
    %1742 = vmatpush1.msra.mxu0 0.0
    %1743 = vmatprep.subr.mxu0 0.0
    %1744 = vmatpush1.msra.mxu0 0.0
    %1745 = vmatprep.subr.mxu0 0.0
    %1746 = vmatpush1.msra.mxu0 0.0
    %1747 = vmatprep.subr.mxu0 0.0
    %1748 = vmatpush1.msra.mxu0 0.0
    %1749 = vmatprep.mubr.f32.mxu0 0.0
    %1750 = vmatmul.mubr.f32.gmra.mrb[0].mxu0 %v1612
    %v1751 = vpop.f32.mrb[0].mxu0
    %v1752 = vadd.f32 %v1609, %v1751
    %v1753 = vpop.f32.mrb[0].mxu0
    %v1754 = vadd.f32 %v1609, %v1753
    %1755 = vdwg.mxu0
    %v1756 = vld [vmem:[%s5] sm:$0xff]
    %v1757 = vld [vmem:[%s5 + $0x8] sm:$0xff]
    %v1758 = vld [vmem:[%s5 + $0x10] sm:$0xff]
    %v1759 = vld [vmem:[%s5 + $0x18] sm:$0xff]
    %v1760 = vld [vmem:[%s5 + $0x20] sm:$0xff]
    %v1761 = vld [vmem:[%s5 + $0x28] sm:$0xff]
    %v1762 = vld [vmem:[%s5 + $0x30] sm:$0xff]
    %v1763 = vld [vmem:[%s5 + $0x38] sm:$0xff]
    %v1764 = vld [vmem:[%s5 + $0x40] sm:$0xff]
    %v1765 = vld [vmem:[%s5 + $0x48] sm:$0xff]
    %v1766 = vld [vmem:[%s5 + $0x50] sm:$0xff]
    %v1767 = vld [vmem:[%s5 + $0x58] sm:$0xff]
    %v1768 = vld [vmem:[%s5 + $0x60] sm:$0xff]
    %v1769 = vld [vmem:[%s5 + $0x68] sm:$0xff]
    %v1770 = vld [vmem:[%s5 + $0x70] sm:$0xff]
    %v1771 = vld [vmem:[%s5 + $0x78] sm:$0xff]
    %v1772 = vld [vmem:[%s5 + $0x80] sm:$0xff]
    %v1773 = vld [vmem:[%s5 + $0x88] sm:$0xff]
    %v1774 = vld [vmem:[%s5 + $0x90] sm:$0xff]
    %v1775 = vld [vmem:[%s5 + $0x98] sm:$0xff]
    %v1776 = vld [vmem:[%s5 + $0xa0] sm:$0xff]
    %v1777 = vld [vmem:[%s5 + $0xa8] sm:$0xff]
    %v1778 = vld [vmem:[%s5 + $0xb0] sm:$0xff]
    %v1779 = vld [vmem:[%s5 + $0xb8] sm:$0xff]
    %v1780 = vld [vmem:[%s5 + $0xc0] sm:$0xff]
    %v1781 = vld [vmem:[%s5 + $0xc8] sm:$0xff]
    %v1782 = vld [vmem:[%s5 + $0xd0] sm:$0xff]
    %v1783 = vld [vmem:[%s5 + $0xd8] sm:$0xff]
    %v1784 = vld [vmem:[%s5 + $0xe0] sm:$0xff]
    %v1785 = vld [vmem:[%s5 + $0xe8] sm:$0xff]
    %v1786 = vld [vmem:[%s5 + $0xf0] sm:$0xff]
    %v1787 = vld [vmem:[%s5 + $0xf8] sm:$0xff]
    %v1788 = vld [vmem:[%s5 + $0x100] sm:$0xff]
    %v1789 = vld [vmem:[%s5 + $0x108] sm:$0xff]
    %v1790 = vld [vmem:[%s5 + $0x110] sm:$0xff]
    %v1791 = vld [vmem:[%s5 + $0x118] sm:$0xff]
    %v1792 = vld [vmem:[%s5 + $0x120] sm:$0xff]
    %v1793 = vld [vmem:[%s5 + $0x128] sm:$0xff]
    %v1794 = vld [vmem:[%s5 + $0x130] sm:$0xff]
    %v1795 = vld [vmem:[%s5 + $0x138] sm:$0xff]
    %v1796 = vld [vmem:[%s5 + $0x140] sm:$0xff]
    %v1797 = vld [vmem:[%s5 + $0x148] sm:$0xff]
    %v1798 = vld [vmem:[%s5 + $0x150] sm:$0xff]
    %v1799 = vld [vmem:[%s5 + $0x158] sm:$0xff]
    %v1800 = vld [vmem:[%s5 + $0x160] sm:$0xff]
    %v1801 = vld [vmem:[%s5 + $0x168] sm:$0xff]
    %v1802 = vld [vmem:[%s5 + $0x170] sm:$0xff]
    %v1803 = vld [vmem:[%s5 + $0x178] sm:$0xff]
    %v1804 = vld [vmem:[%s5 + $0x180] sm:$0xff]
    %v1805 = vld [vmem:[%s5 + $0x188] sm:$0xff]
    %v1806 = vld [vmem:[%s5 + $0x190] sm:$0xff]
    %v1807 = vld [vmem:[%s5 + $0x198] sm:$0xff]
    %v1808 = vld [vmem:[%s5 + $0x1a0] sm:$0xff]
    %v1809 = vld [vmem:[%s5 + $0x1a8] sm:$0xff]
    %v1810 = vld [vmem:[%s5 + $0x1b0] sm:$0xff]
    %v1811 = vld [vmem:[%s5 + $0x1b8] sm:$0xff]
    %v1812 = vld [vmem:[%s5 + $0x1c0] sm:$0xff]
    %v1813 = vld [vmem:[%s5 + $0x1c8] sm:$0xff]
    %v1814 = vld [vmem:[%s5 + $0x1d0] sm:$0xff]
    %v1815 = vld [vmem:[%s5 + $0x1d8] sm:$0xff]
    %v1816 = vld [vmem:[%s5 + $0x1e0] sm:$0xff]
    %v1817 = vld [vmem:[%s5 + $0x1e8] sm:$0xff]
    %v1818 = vld [vmem:[%s5 + $0x1f0] sm:$0xff]
    %v1819 = vld [vmem:[%s5 + $0x1f8] sm:$0xff]
    %1820 = vmatprep.subr.mxu0 0.0
    %1821 = vmatpush1.msra.mxu0 %v1756
    %1822 = vmatprep.subr.mxu0 0.0
    %1823 = vmatpush1.msra.mxu0 %v1757
    %1824 = vmatprep.subr.mxu0 0.0
    %1825 = vmatpush1.msra.mxu0 %v1758
    %1826 = vmatprep.subr.mxu0 0.0
    %1827 = vmatpush1.msra.mxu0 %v1759
    %1828 = vmatprep.subr.mxu0 0.0
    %1829 = vmatpush1.msra.mxu0 %v1760
    %1830 = vmatprep.subr.mxu0 0.0
    %1831 = vmatpush1.msra.mxu0 %v1761
    %1832 = vmatprep.subr.mxu0 0.0
    %1833 = vmatpush1.msra.mxu0 %v1762
    %1834 = vmatprep.subr.mxu0 0.0
    %1835 = vmatpush1.msra.mxu0 %v1763
    %1836 = vmatprep.subr.mxu0 0.0
    %1837 = vmatpush1.msra.mxu0 %v1764
    %1838 = vmatprep.subr.mxu0 0.0
    %1839 = vmatpush1.msra.mxu0 %v1765
    %1840 = vmatprep.subr.mxu0 0.0
    %1841 = vmatpush1.msra.mxu0 %v1766
    %1842 = vmatprep.subr.mxu0 0.0
    %1843 = vmatpush1.msra.mxu0 %v1767
    %1844 = vmatprep.subr.mxu0 0.0
    %1845 = vmatpush1.msra.mxu0 %v1768
    %1846 = vmatprep.subr.mxu0 0.0
    %1847 = vmatpush1.msra.mxu0 %v1769
    %1848 = vmatprep.subr.mxu0 0.0
    %1849 = vmatpush1.msra.mxu0 %v1770
    %1850 = vmatprep.subr.mxu0 0.0
    %1851 = vmatpush1.msra.mxu0 %v1771
    %1852 = vmatprep.subr.mxu0 0.0
    %1853 = vmatpush1.msra.mxu0 %v1772
    %1854 = vmatprep.subr.mxu0 0.0
    %1855 = vmatpush1.msra.mxu0 %v1773
    %1856 = vmatprep.subr.mxu0 0.0
    %1857 = vmatpush1.msra.mxu0 %v1774
    %1858 = vmatprep.subr.mxu0 0.0
    %1859 = vmatpush1.msra.mxu0 %v1775
    %1860 = vmatprep.subr.mxu0 0.0
    %1861 = vmatpush1.msra.mxu0 %v1776
    %1862 = vmatprep.subr.mxu0 0.0
    %1863 = vmatpush1.msra.mxu0 %v1777
    %1864 = vmatprep.subr.mxu0 0.0
    %1865 = vmatpush1.msra.mxu0 %v1778
    %1866 = vmatprep.subr.mxu0 0.0
    %1867 = vmatpush1.msra.mxu0 %v1779
    %1868 = vmatprep.subr.mxu0 0.0
    %1869 = vmatpush1.msra.mxu0 %v1780
    %1870 = vmatprep.subr.mxu0 0.0
    %1871 = vmatpush1.msra.mxu0 %v1781
    %1872 = vmatprep.subr.mxu0 0.0
    %1873 = vmatpush1.msra.mxu0 %v1782
    %1874 = vmatprep.subr.mxu0 0.0
    %1875 = vmatpush1.msra.mxu0 %v1783
    %1876 = vmatprep.subr.mxu0 0.0
    %1877 = vmatpush1.msra.mxu0 %v1784
    %1878 = vmatprep.subr.mxu0 0.0
    %1879 = vmatpush1.msra.mxu0 %v1785
    %1880 = vmatprep.subr.mxu0 0.0
    %1881 = vmatpush1.msra.mxu0 %v1786
    %1882 = vmatprep.subr.mxu0 0.0
    %1883 = vmatpush1.msra.mxu0 %v1787
    %1884 = vmatprep.mubr.f32.mxu0 %v349
    %1885 = vmatmul.mubr.f32.gmra.mrb[0].mxu0 %v348
    %v1886 = vpop.f32.mrb[0].mxu0
    %v1887 = vadd.f32 0.0, %v1886
    %v1888 = vpop.f32.mrb[0].mxu0
    %1889 = vdwg.mxu0
    %1890 = vmatprep.subr.mxu0 0.0
    %1891 = vmatpush1.msra.mxu0 %v1788
    %1892 = vmatprep.subr.mxu0 0.0
    %1893 = vmatpush1.msra.mxu0 %v1789
    %1894 = vmatprep.subr.mxu0 0.0
    %1895 = vmatpush1.msra.mxu0 %v1790
    %1896 = vmatprep.subr.mxu0 0.0
    %1897 = vmatpush1.msra.mxu0 %v1791
    %1898 = vmatprep.subr.mxu0 0.0
    %1899 = vmatpush1.msra.mxu0 %v1792
    %1900 = vmatprep.subr.mxu0 0.0
    %1901 = vmatpush1.msra.mxu0 %v1793
    %1902 = vmatprep.subr.mxu0 0.0
    %1903 = vmatpush1.msra.mxu0 %v1794
    %1904 = vmatprep.subr.mxu0 0.0
    %1905 = vmatpush1.msra.mxu0 %v1795
    %1906 = vmatprep.subr.mxu0 0.0
    %1907 = vmatpush1.msra.mxu0 %v1796
    %1908 = vmatprep.subr.mxu0 0.0
    %1909 = vmatpush1.msra.mxu0 %v1797
    %1910 = vmatprep.subr.mxu0 0.0
    %1911 = vmatpush1.msra.mxu0 %v1798
    %1912 = vmatprep.subr.mxu0 0.0
    %1913 = vmatpush1.msra.mxu0 %v1799
    %1914 = vmatprep.subr.mxu0 0.0
    %1915 = vmatpush1.msra.mxu0 %v1800
    %1916 = vmatprep.subr.mxu0 0.0
    %1917 = vmatpush1.msra.mxu0 %v1801
    %1918 = vmatprep.subr.mxu0 0.0
    %1919 = vmatpush1.msra.mxu0 %v1802
    %1920 = vmatprep.subr.mxu0 0.0
    %1921 = vmatpush1.msra.mxu0 %v1803
    %1922 = vmatprep.subr.mxu0 0.0
    %1923 = vmatpush1.msra.mxu0 %v1804
    %1924 = vmatprep.subr.mxu0 0.0
    %1925 = vmatpush1.msra.mxu0 %v1805
    %1926 = vmatprep.subr.mxu0 0.0
    %1927 = vmatpush1.msra.mxu0 %v1806
    %1928 = vmatprep.subr.mxu0 0.0
    %1929 = vmatpush1.msra.mxu0 %v1807
    %1930 = vmatprep.subr.mxu0 0.0
    %1931 = vmatpush1.msra.mxu0 %v1808
    %1932 = vmatprep.subr.mxu0 0.0
    %1933 = vmatpush1.msra.mxu0 %v1809
    %1934 = vmatprep.subr.mxu0 0.0
    %1935 = vmatpush1.msra.mxu0 %v1810
    %1936 = vmatprep.subr.mxu0 0.0
    %1937 = vmatpush1.msra.mxu0 %v1811
    %1938 = vmatprep.subr.mxu0 0.0
    %1939 = vmatpush1.msra.mxu0 %v1812
    %1940 = vmatprep.subr.mxu0 0.0
    %1941 = vmatpush1.msra.mxu0 %v1813
    %1942 = vmatprep.subr.mxu0 0.0
    %1943 = vmatpush1.msra.mxu0 %v1814
    %1944 = vmatprep.subr.mxu0 0.0
    %1945 = vmatpush1.msra.mxu0 %v1815
    %1946 = vmatprep.subr.mxu0 0.0
    %1947 = vmatpush1.msra.mxu0 %v1816
    %1948 = vmatprep.subr.mxu0 0.0
    %1949 = vmatpush1.msra.mxu0 %v1817
    %1950 = vmatprep.subr.mxu0 0.0
    %1951 = vmatpush1.msra.mxu0 %v1818
    %1952 = vmatprep.subr.mxu0 0.0
    %1953 = vmatpush1.msra.mxu0 %v1819
    %1954 = vmatprep.mubr.f32.mxu0 %v351
    %1955 = vmatmul.mubr.f32.gmra.mrb[0].mxu0 %v350
    %v1956 = vpop.f32.mrb[0].mxu0
    %v1957 = vadd.f32 %v1887, %v1956
    %v1958 = vpop.f32.mrb[0].mxu0
    %1959 = vdwg.mxu0
    %v1960 = vmul.f32 %v1957, 0.00390625
    %v1961 = vld [vmem:[%s15] sm:$0x3]
    %v1963 = vsel %vm74, %v1961, 0
    %1965 = vmatprep.subr.mxu0 0.0
    %1966 = vmatpush1.msra.mxu0 %v1960
    %1967 = vmatprep.subr.mxu0 0.0
    %1968 = vmatpush1.msra.mxu0 0.0
    %1969 = vmatprep.subr.mxu0 0.0
    %1970 = vmatpush1.msra.mxu0 0.0
    %1971 = vmatprep.subr.mxu0 0.0
    %1972 = vmatpush1.msra.mxu0 0.0
    %1973 = vmatprep.subr.mxu0 0.0
    %1974 = vmatpush1.msra.mxu0 0.0
    %1975 = vmatprep.subr.mxu0 0.0
    %1976 = vmatpush1.msra.mxu0 0.0
    %1977 = vmatprep.subr.mxu0 0.0
    %1978 = vmatpush1.msra.mxu0 0.0
    %1979 = vmatprep.subr.mxu0 0.0
    %1980 = vmatpush1.msra.mxu0 0.0
    %1981 = vmatprep.subr.mxu0 0.0
    %1982 = vmatpush1.msra.mxu0 0.0
    %1983 = vmatprep.subr.mxu0 0.0
    %1984 = vmatpush1.msra.mxu0 0.0
    %1985 = vmatprep.subr.mxu0 0.0
    %1986 = vmatpush1.msra.mxu0 0.0
    %1987 = vmatprep.subr.mxu0 0.0
    %1988 = vmatpush1.msra.mxu0 0.0
    %1989 = vmatprep.subr.mxu0 0.0
    %1990 = vmatpush1.msra.mxu0 0.0
    %1991 = vmatprep.subr.mxu0 0.0
    %1992 = vmatpush1.msra.mxu0 0.0
    %1993 = vmatprep.subr.mxu0 0.0
    %1994 = vmatpush1.msra.mxu0 0.0
    %1995 = vmatprep.subr.mxu0 0.0
    %1996 = vmatpush1.msra.mxu0 0.0
    %1997 = vmatprep.subr.mxu0 0.0
    %1998 = vmatpush1.msra.mxu0 0.0
    %1999 = vmatprep.subr.mxu0 0.0
    %2000 = vmatpush1.msra.mxu0 0.0
    %2001 = vmatprep.subr.mxu0 0.0
    %2002 = vmatpush1.msra.mxu0 0.0
    %2003 = vmatprep.subr.mxu0 0.0
    %2004 = vmatpush1.msra.mxu0 0.0
    %2005 = vmatprep.subr.mxu0 0.0
    %2006 = vmatpush1.msra.mxu0 0.0
    %2007 = vmatprep.subr.mxu0 0.0
    %2008 = vmatpush1.msra.mxu0 0.0
    %2009 = vmatprep.subr.mxu0 0.0
    %2010 = vmatpush1.msra.mxu0 0.0
    %2011 = vmatprep.subr.mxu0 0.0
    %2012 = vmatpush1.msra.mxu0 0.0
    %2013 = vmatprep.subr.mxu0 0.0
    %2014 = vmatpush1.msra.mxu0 0.0
    %2015 = vmatprep.subr.mxu0 0.0
    %2016 = vmatpush1.msra.mxu0 0.0
    %2017 = vmatprep.subr.mxu0 0.0
    %2018 = vmatpush1.msra.mxu0 0.0
    %2019 = vmatprep.subr.mxu0 0.0
    %2020 = vmatpush1.msra.mxu0 0.0
    %2021 = vmatprep.subr.mxu0 0.0
    %2022 = vmatpush1.msra.mxu0 0.0
    %2023 = vmatprep.subr.mxu0 0.0
    %2024 = vmatpush1.msra.mxu0 0.0
    %2025 = vmatprep.subr.mxu0 0.0
    %2026 = vmatpush1.msra.mxu0 0.0
    %2027 = vmatprep.subr.mxu0 0.0
    %2028 = vmatpush1.msra.mxu0 0.0
    %2029 = vmatprep.mubr.f32.mxu0 0.0
    %2030 = vmatmul.mubr.f32.gmra.mrb[0].mxu0 %v1963
    %v2031 = vpop.f32.mrb[0].mxu0
    %v2032 = vadd.f32 0.0, %v2031
    %v2033 = vpop.f32.mrb[0].mxu0
    %2034 = vdwg.mxu0
    %v2035 = vmax.f32 %v2032, 0.0
    %v2036 = vld [vmem:[%s16] sm:$0xff]
    %vm2037 = vcmask 15360
    %v2039 = vsel %vm2037, %v2036, 0
    %vm2041 = vcmask 1041408
    %v2043 = vsel %vm2041, %v2035, 0
    %2045 = vmatprep.subr.mxu0 0.0
    %2046 = vmatpush1.msra.mxu0 %v2043
    %2047 = vmatprep.subr.mxu0 0.0
    %2048 = vmatpush1.msra.mxu0 0.0
    %2049 = vmatprep.subr.mxu0 0.0
    %2050 = vmatpush1.msra.mxu0 0.0
    %2051 = vmatprep.subr.mxu0 0.0
    %2052 = vmatpush1.msra.mxu0 0.0
    %2053 = vmatprep.subr.mxu0 0.0
    %2054 = vmatpush1.msra.mxu0 0.0
    %2055 = vmatprep.subr.mxu0 0.0
    %2056 = vmatpush1.msra.mxu0 0.0
    %2057 = vmatprep.subr.mxu0 0.0
    %2058 = vmatpush1.msra.mxu0 0.0
    %2059 = vmatprep.subr.mxu0 0.0
    %2060 = vmatpush1.msra.mxu0 0.0
    %2061 = vmatprep.subr.mxu0 0.0
    %2062 = vmatpush1.msra.mxu0 0.0
    %2063 = vmatprep.subr.mxu0 0.0
    %2064 = vmatpush1.msra.mxu0 0.0
    %2065 = vmatprep.subr.mxu0 0.0
    %2066 = vmatpush1.msra.mxu0 0.0
    %2067 = vmatprep.subr.mxu0 0.0
    %2068 = vmatpush1.msra.mxu0 0.0
    %2069 = vmatprep.subr.mxu0 0.0
    %2070 = vmatpush1.msra.mxu0 0.0
    %2071 = vmatprep.subr.mxu0 0.0
    %2072 = vmatpush1.msra.mxu0 0.0
    %2073 = vmatprep.subr.mxu0 0.0
    %2074 = vmatpush1.msra.mxu0 0.0
    %2075 = vmatprep.subr.mxu0 0.0
    %2076 = vmatpush1.msra.mxu0 0.0
    %2077 = vmatprep.subr.mxu0 0.0
    %2078 = vmatpush1.msra.mxu0 0.0
    %2079 = vmatprep.subr.mxu0 0.0
    %2080 = vmatpush1.msra.mxu0 0.0
    %2081 = vmatprep.subr.mxu0 0.0
    %2082 = vmatpush1.msra.mxu0 0.0
    %2083 = vmatprep.subr.mxu0 0.0
    %2084 = vmatpush1.msra.mxu0 0.0
    %2085 = vmatprep.subr.mxu0 0.0
    %2086 = vmatpush1.msra.mxu0 0.0
    %2087 = vmatprep.subr.mxu0 0.0
    %2088 = vmatpush1.msra.mxu0 0.0
    %2089 = vmatprep.subr.mxu0 0.0
    %2090 = vmatpush1.msra.mxu0 0.0
    %2091 = vmatprep.subr.mxu0 0.0
    %2092 = vmatpush1.msra.mxu0 0.0
    %2093 = vmatprep.subr.mxu0 0.0
    %2094 = vmatpush1.msra.mxu0 0.0
    %2095 = vmatprep.subr.mxu0 0.0
    %2096 = vmatpush1.msra.mxu0 0.0
    %2097 = vmatprep.subr.mxu0 0.0
    %2098 = vmatpush1.msra.mxu0 0.0
    %2099 = vmatprep.subr.mxu0 0.0
    %2100 = vmatpush1.msra.mxu0 0.0
    %2101 = vmatprep.subr.mxu0 0.0
    %2102 = vmatpush1.msra.mxu0 0.0
    %2103 = vmatprep.subr.mxu0 0.0
    %2104 = vmatpush1.msra.mxu0 0.0
    %2105 = vmatprep.subr.mxu0 0.0
    %2106 = vmatpush1.msra.mxu0 0.0
    %2107 = vmatprep.subr.mxu0 0.0
    %2108 = vmatpush1.msra.mxu0 0.0
    %2109 = vmatprep.mubr.f32.mxu0 0.0
    %2110 = vmatmul.mubr.f32.gmra.mrb[0].mxu0 %v2039
    %v2111 = vpop.f32.mrb[0].mxu0
    %v2112 = vadd.f32 0.0, %v2111
    %v2113 = vpop.f32.mrb[0].mxu0
    %2114 = vdwg.mxu0
    %v2115 = vsub.f32 0.0, %v2112
    %v2116 = vmul.f32 %v2115, 1.442695
    %v2117 = vpow.pop %v2116
    %v2118 = vadd.f32 %v2117, 1.0
    %v2119 = vrcp.pop %v2118
    %v2120 = vmul.f32 %v2118, %v2119
    %v2121 = vsub.f32 2.0, %v2120
    %v2122 = vmul.f32 %v2119, %v2121
    %v2123 = vld [vmem:[%s6] sm:$0xff]
    %v2125 = vcombine.high %v2123, %v2123
    %v2127 = vunpack.c.l.s4 1983009808
    %v2128 = vunpack.c.0.s8 %v2127
    %v2129 = vlaneseq
    %v2130 = vshrl.u32 %v2129, 7
    %v2131 = vsub.s32 %v2128, %v2130
    %v2132 = vrot.slane %v2123, %v2131
    %v2134 = vunpack.c.l.s4 1983009808
    %v2135 = vunpack.c.0.s8 %v2134
    %v2136 = vlaneseq
    %v2137 = vshrl.u32 %v2136, 7
    %v2138 = vsub.s32 %v2135, %v2137
    %v2139 = vrot.slane %v2125, %v2138
    %v2140 = vcombine.high %v2132, %v2132
    %v2141 = vcombine.high %v2139, %v2139
    %v2143 = vsel %vm2037, %v2122, 0
    %v2145 = vsel %vm2041, %v2132, 0
    %v2147 = vsel %vm2041, %v2140, 0
    %v2149 = vsel %vm2041, %v2139, 0
    %v2151 = vsel %vm2041, %v2141, 0
    %2153 = vmatprep.subr.mxu0 %v2147
    %2154 = vmatpush1.msra.mxu0 %v2145
    %2155 = vmatprep.subr.mxu0 0.0
    %2156 = vmatpush1.msra.mxu0 0.0
    %2157 = vmatprep.subr.mxu0 0.0
    %2158 = vmatpush1.msra.mxu0 0.0
    %2159 = vmatprep.subr.mxu0 0.0
    %2160 = vmatpush1.msra.mxu0 0.0
    %2161 = vmatprep.subr.mxu0 0.0
    %2162 = vmatpush1.msra.mxu0 0.0
    %2163 = vmatprep.subr.mxu0 0.0
    %2164 = vmatpush1.msra.mxu0 0.0
    %2165 = vmatprep.subr.mxu0 0.0
    %2166 = vmatpush1.msra.mxu0 0.0
    %2167 = vmatprep.subr.mxu0 0.0
    %2168 = vmatpush1.msra.mxu0 0.0
    %2169 = vmatprep.subr.mxu0 0.0
    %2170 = vmatpush1.msra.mxu0 0.0
    %2171 = vmatprep.subr.mxu0 0.0
    %2172 = vmatpush1.msra.mxu0 0.0
    %2173 = vmatprep.subr.mxu0 0.0
    %2174 = vmatpush1.msra.mxu0 0.0
    %2175 = vmatprep.subr.mxu0 0.0
    %2176 = vmatpush1.msra.mxu0 0.0
    %2177 = vmatprep.subr.mxu0 0.0
    %2178 = vmatpush1.msra.mxu0 0.0
    %2179 = vmatprep.subr.mxu0 0.0
    %2180 = vmatpush1.msra.mxu0 0.0
    %2181 = vmatprep.subr.mxu0 0.0
    %2182 = vmatpush1.msra.mxu0 0.0
    %2183 = vmatprep.subr.mxu0 0.0
    %2184 = vmatpush1.msra.mxu0 0.0
    %2185 = vmatprep.subr.mxu0 0.0
    %2186 = vmatpush1.msra.mxu0 0.0
    %2187 = vmatprep.subr.mxu0 0.0
    %2188 = vmatpush1.msra.mxu0 0.0
    %2189 = vmatprep.subr.mxu0 0.0
    %2190 = vmatpush1.msra.mxu0 0.0
    %2191 = vmatprep.subr.mxu0 0.0
    %2192 = vmatpush1.msra.mxu0 0.0
    %2193 = vmatprep.subr.mxu0 0.0
    %2194 = vmatpush1.msra.mxu0 0.0
    %2195 = vmatprep.subr.mxu0 0.0
    %2196 = vmatpush1.msra.mxu0 0.0
    %2197 = vmatprep.subr.mxu0 0.0
    %2198 = vmatpush1.msra.mxu0 0.0
    %2199 = vmatprep.subr.mxu0 0.0
    %2200 = vmatpush1.msra.mxu0 0.0
    %2201 = vmatprep.subr.mxu0 0.0
    %2202 = vmatpush1.msra.mxu0 0.0
    %2203 = vmatprep.subr.mxu0 0.0
    %2204 = vmatpush1.msra.mxu0 0.0
    %2205 = vmatprep.subr.mxu0 0.0
    %2206 = vmatpush1.msra.mxu0 0.0
    %2207 = vmatprep.subr.mxu0 0.0
    %2208 = vmatpush1.msra.mxu0 0.0
    %2209 = vmatprep.subr.mxu0 0.0
    %2210 = vmatpush1.msra.mxu0 0.0
    %2211 = vmatprep.subr.mxu0 0.0
    %2212 = vmatpush1.msra.mxu0 0.0
    %2213 = vmatprep.subr.mxu0 0.0
    %2214 = vmatpush1.msra.mxu0 0.0
    %2215 = vmatprep.subr.mxu0 0.0
    %2216 = vmatpush1.msra.mxu0 0.0
    %2217 = vmatprep.mubr.f32.mxu0 0.0
    %2218 = vmatmul.mubr.f32.gmra.mrb[0].mxu0 %v2143
    %v2219 = vpop.f32.mrb[0].mxu0
    %v2220 = vadd.f32 0.0, %v2219
    %v2221 = vpop.f32.mrb[0].mxu0
    %v2222 = vadd.f32 0.0, %v2221
    %2223 = vdwg.mxu0
    %2224 = vmatprep.subr.mxu0 %v2151
    %2225 = vmatpush1.msra.mxu0 %v2149
    %2226 = vmatprep.subr.mxu0 0.0
    %2227 = vmatpush1.msra.mxu0 0.0
    %2228 = vmatprep.subr.mxu0 0.0
    %2229 = vmatpush1.msra.mxu0 0.0
    %2230 = vmatprep.subr.mxu0 0.0
    %2231 = vmatpush1.msra.mxu0 0.0
    %2232 = vmatprep.subr.mxu0 0.0
    %2233 = vmatpush1.msra.mxu0 0.0
    %2234 = vmatprep.subr.mxu0 0.0
    %2235 = vmatpush1.msra.mxu0 0.0
    %2236 = vmatprep.subr.mxu0 0.0
    %2237 = vmatpush1.msra.mxu0 0.0
    %2238 = vmatprep.subr.mxu0 0.0
    %2239 = vmatpush1.msra.mxu0 0.0
    %2240 = vmatprep.subr.mxu0 0.0
    %2241 = vmatpush1.msra.mxu0 0.0
    %2242 = vmatprep.subr.mxu0 0.0
    %2243 = vmatpush1.msra.mxu0 0.0
    %2244 = vmatprep.subr.mxu0 0.0
    %2245 = vmatpush1.msra.mxu0 0.0
    %2246 = vmatprep.subr.mxu0 0.0
    %2247 = vmatpush1.msra.mxu0 0.0
    %2248 = vmatprep.subr.mxu0 0.0
    %2249 = vmatpush1.msra.mxu0 0.0
    %2250 = vmatprep.subr.mxu0 0.0
    %2251 = vmatpush1.msra.mxu0 0.0
    %2252 = vmatprep.subr.mxu0 0.0
    %2253 = vmatpush1.msra.mxu0 0.0
    %2254 = vmatprep.subr.mxu0 0.0
    %2255 = vmatpush1.msra.mxu0 0.0
    %2256 = vmatprep.subr.mxu0 0.0
    %2257 = vmatpush1.msra.mxu0 0.0
    %2258 = vmatprep.subr.mxu0 0.0
    %2259 = vmatpush1.msra.mxu0 0.0
    %2260 = vmatprep.subr.mxu0 0.0
    %2261 = vmatpush1.msra.mxu0 0.0
    %2262 = vmatprep.subr.mxu0 0.0
    %2263 = vmatpush1.msra.mxu0 0.0
    %2264 = vmatprep.subr.mxu0 0.0
    %2265 = vmatpush1.msra.mxu0 0.0
    %2266 = vmatprep.subr.mxu0 0.0
    %2267 = vmatpush1.msra.mxu0 0.0
    %2268 = vmatprep.subr.mxu0 0.0
    %2269 = vmatpush1.msra.mxu0 0.0
    %2270 = vmatprep.subr.mxu0 0.0
    %2271 = vmatpush1.msra.mxu0 0.0
    %2272 = vmatprep.subr.mxu0 0.0
    %2273 = vmatpush1.msra.mxu0 0.0
    %2274 = vmatprep.subr.mxu0 0.0
    %2275 = vmatpush1.msra.mxu0 0.0
    %2276 = vmatprep.subr.mxu0 0.0
    %2277 = vmatpush1.msra.mxu0 0.0
    %2278 = vmatprep.subr.mxu0 0.0
    %2279 = vmatpush1.msra.mxu0 0.0
    %2280 = vmatprep.subr.mxu0 0.0
    %2281 = vmatpush1.msra.mxu0 0.0
    %2282 = vmatprep.subr.mxu0 0.0
    %2283 = vmatpush1.msra.mxu0 0.0
    %2284 = vmatprep.subr.mxu0 0.0
    %2285 = vmatpush1.msra.mxu0 0.0
    %2286 = vmatprep.subr.mxu0 0.0
    %2287 = vmatpush1.msra.mxu0 0.0
    %2288 = vmatprep.mubr.f32.mxu0 0.0
    %2289 = vmatmul.mubr.f32.gmra.mrb[0].mxu0 %v2143
    %v2290 = vpop.f32.mrb[0].mxu0
    %v2291 = vadd.f32 0.0, %v2290
    %v2292 = vpop.f32.mrb[0].mxu0
    %v2293 = vadd.f32 0.0, %v2292
    %2294 = vdwg.mxu0
    %v2295 = vmul.f32 %v2220, %v1681
    %v2296 = vmul.f32 %v2222, %v1683
    %v2297 = vmul.f32 %v2291, %v1752
    %v2298 = vmul.f32 %v2293, %v1754
    %v2299 = vmul.f32 %v2295, %v348
    %v2300 = vmul.f32 %v2296, %v349
    %v2301 = vmul.f32 %v2297, %v350
    %v2302 = vmul.f32 %v2298, %v351
    %v2303 = vld [vmem:[%s17] sm:$0xff]
    %v2304 = vld [vmem:[%s18] sm:$0xff]
    %2306 = vset.pattern.permute.xlu0 0
    %2307 = vperm.xlu0 %2306, %v2304
    %v2308 = vpop.permute.xlu0 %2307
    %v2311 = vsel %vm74, %v2303, 0
    %2313 = vmatprep.subr.mxu0 %v2300
    %2314 = vmatpush1.msra.mxu0 %v2299
    %2315 = vmatprep.subr.mxu0 0.0
    %2316 = vmatpush1.msra.mxu0 0.0
    %2317 = vmatprep.subr.mxu0 0.0
    %2318 = vmatpush1.msra.mxu0 0.0
    %2319 = vmatprep.subr.mxu0 0.0
    %2320 = vmatpush1.msra.mxu0 0.0
    %2321 = vmatprep.subr.mxu0 0.0
    %2322 = vmatpush1.msra.mxu0 0.0
    %2323 = vmatprep.subr.mxu0 0.0
    %2324 = vmatpush1.msra.mxu0 0.0
    %2325 = vmatprep.subr.mxu0 0.0
    %2326 = vmatpush1.msra.mxu0 0.0
    %2327 = vmatprep.subr.mxu0 0.0
    %2328 = vmatpush1.msra.mxu0 0.0
    %2329 = vmatprep.subr.mxu0 0.0
    %2330 = vmatpush1.msra.mxu0 0.0
    %2331 = vmatprep.subr.mxu0 0.0
    %2332 = vmatpush1.msra.mxu0 0.0
    %2333 = vmatprep.subr.mxu0 0.0
    %2334 = vmatpush1.msra.mxu0 0.0
    %2335 = vmatprep.subr.mxu0 0.0
    %2336 = vmatpush1.msra.mxu0 0.0
    %2337 = vmatprep.subr.mxu0 0.0
    %2338 = vmatpush1.msra.mxu0 0.0
    %2339 = vmatprep.subr.mxu0 0.0
    %2340 = vmatpush1.msra.mxu0 0.0
    %2341 = vmatprep.subr.mxu0 0.0
    %2342 = vmatpush1.msra.mxu0 0.0
    %2343 = vmatprep.subr.mxu0 0.0
    %2344 = vmatpush1.msra.mxu0 0.0
    %2345 = vmatprep.subr.mxu0 0.0
    %2346 = vmatpush1.msra.mxu0 0.0
    %2347 = vmatprep.subr.mxu0 0.0
    %2348 = vmatpush1.msra.mxu0 0.0
    %2349 = vmatprep.subr.mxu0 0.0
    %2350 = vmatpush1.msra.mxu0 0.0
    %2351 = vmatprep.subr.mxu0 0.0
    %2352 = vmatpush1.msra.mxu0 0.0
    %2353 = vmatprep.subr.mxu0 0.0
    %2354 = vmatpush1.msra.mxu0 0.0
    %2355 = vmatprep.subr.mxu0 0.0
    %2356 = vmatpush1.msra.mxu0 0.0
    %2357 = vmatprep.subr.mxu0 0.0
    %2358 = vmatpush1.msra.mxu0 0.0
    %2359 = vmatprep.subr.mxu0 0.0
    %2360 = vmatpush1.msra.mxu0 0.0
    %2361 = vmatprep.subr.mxu0 0.0
    %2362 = vmatpush1.msra.mxu0 0.0
    %2363 = vmatprep.subr.mxu0 0.0
    %2364 = vmatpush1.msra.mxu0 0.0
    %2365 = vmatprep.subr.mxu0 0.0
    %2366 = vmatpush1.msra.mxu0 0.0
    %2367 = vmatprep.subr.mxu0 0.0
    %2368 = vmatpush1.msra.mxu0 0.0
    %2369 = vmatprep.subr.mxu0 0.0
    %2370 = vmatpush1.msra.mxu0 0.0
    %2371 = vmatprep.subr.mxu0 0.0
    %2372 = vmatpush1.msra.mxu0 0.0
    %2373 = vmatprep.subr.mxu0 0.0
    %2374 = vmatpush1.msra.mxu0 0.0
    %2375 = vmatprep.subr.mxu0 0.0
    %2376 = vmatpush1.msra.mxu0 0.0
    %2377 = vmatprep.mubr.f32.mxu0 0.0
    %2378 = vmatmul.mubr.f32.gmra.mrb[0].mxu0 %v2311
    %v2379 = vpop.f32.mrb[0].mxu0
    %v2380 = vadd.f32 %v2308, %v2379
    %v2381 = vpop.f32.mrb[0].mxu0
    %v2382 = vadd.f32 %v2308, %v2381
    %2383 = vdwg.mxu0
    %2384 = vmatprep.subr.mxu0 %v2302
    %2385 = vmatpush1.msra.mxu0 %v2301
    %2386 = vmatprep.subr.mxu0 0.0
    %2387 = vmatpush1.msra.mxu0 0.0
    %2388 = vmatprep.subr.mxu0 0.0
    %2389 = vmatpush1.msra.mxu0 0.0
    %2390 = vmatprep.subr.mxu0 0.0
    %2391 = vmatpush1.msra.mxu0 0.0
    %2392 = vmatprep.subr.mxu0 0.0
    %2393 = vmatpush1.msra.mxu0 0.0
    %2394 = vmatprep.subr.mxu0 0.0
    %2395 = vmatpush1.msra.mxu0 0.0
    %2396 = vmatprep.subr.mxu0 0.0
    %2397 = vmatpush1.msra.mxu0 0.0
    %2398 = vmatprep.subr.mxu0 0.0
    %2399 = vmatpush1.msra.mxu0 0.0
    %2400 = vmatprep.subr.mxu0 0.0
    %2401 = vmatpush1.msra.mxu0 0.0
    %2402 = vmatprep.subr.mxu0 0.0
    %2403 = vmatpush1.msra.mxu0 0.0
    %2404 = vmatprep.subr.mxu0 0.0
    %2405 = vmatpush1.msra.mxu0 0.0
    %2406 = vmatprep.subr.mxu0 0.0
    %2407 = vmatpush1.msra.mxu0 0.0
    %2408 = vmatprep.subr.mxu0 0.0
    %2409 = vmatpush1.msra.mxu0 0.0
    %2410 = vmatprep.subr.mxu0 0.0
    %2411 = vmatpush1.msra.mxu0 0.0
    %2412 = vmatprep.subr.mxu0 0.0
    %2413 = vmatpush1.msra.mxu0 0.0
    %2414 = vmatprep.subr.mxu0 0.0
    %2415 = vmatpush1.msra.mxu0 0.0
    %2416 = vmatprep.subr.mxu0 0.0
    %2417 = vmatpush1.msra.mxu0 0.0
    %2418 = vmatprep.subr.mxu0 0.0
    %2419 = vmatpush1.msra.mxu0 0.0
    %2420 = vmatprep.subr.mxu0 0.0
    %2421 = vmatpush1.msra.mxu0 0.0
    %2422 = vmatprep.subr.mxu0 0.0
    %2423 = vmatpush1.msra.mxu0 0.0
    %2424 = vmatprep.subr.mxu0 0.0
    %2425 = vmatpush1.msra.mxu0 0.0
    %2426 = vmatprep.subr.mxu0 0.0
    %2427 = vmatpush1.msra.mxu0 0.0
    %2428 = vmatprep.subr.mxu0 0.0
    %2429 = vmatpush1.msra.mxu0 0.0
    %2430 = vmatprep.subr.mxu0 0.0
    %2431 = vmatpush1.msra.mxu0 0.0
    %2432 = vmatprep.subr.mxu0 0.0
    %2433 = vmatpush1.msra.mxu0 0.0
    %2434 = vmatprep.subr.mxu0 0.0
    %2435 = vmatpush1.msra.mxu0 0.0
    %2436 = vmatprep.subr.mxu0 0.0
    %2437 = vmatpush1.msra.mxu0 0.0
    %2438 = vmatprep.subr.mxu0 0.0
    %2439 = vmatpush1.msra.mxu0 0.0
    %2440 = vmatprep.subr.mxu0 0.0
    %2441 = vmatpush1.msra.mxu0 0.0
    %2442 = vmatprep.subr.mxu0 0.0
    %2443 = vmatpush1.msra.mxu0 0.0
    %2444 = vmatprep.subr.mxu0 0.0
    %2445 = vmatpush1.msra.mxu0 0.0
    %2446 = vmatprep.subr.mxu0 0.0
    %2447 = vmatpush1.msra.mxu0 0.0
    %2448 = vmatprep.mubr.f32.mxu0 0.0
    %2449 = vmatmul.mubr.f32.gmra.mrb[0].mxu0 %v2311
    %v2450 = vpop.f32.mrb[0].mxu0
    %v2451 = vadd.f32 %v2308, %v2450
    %v2452 = vpop.f32.mrb[0].mxu0
    %v2453 = vadd.f32 %v2308, %v2452
    %2454 = vdwg.mxu0
    %v2455 = vadd.f32 %v2380, %v64
    %v2456 = vadd.f32 %v2382, %v65
    %v2457 = vadd.f32 %v2451, %v66
    %v2458 = vadd.f32 %v2453, %v67
    %2459 = vst [vmem:[#allocation2] sm:$0xff] %v2455
    %2460 = vst [vmem:[#allocation2 + $0x8] sm:$0xff] %v2456
    %2461 = vst [vmem:[#allocation2 + $0x10] sm:$0xff] %v2457
    %2462 = vst [vmem:[#allocation2 + $0x18] sm:$0xff] %v2458
    // Predicated region
    $region78: #{tpu_custom_call.1} parent=1 // pred_check
      _
    $region79: #{tpu_custom_call.1} parent=1 // pred_check_branch
      %2464 = sbr.rel (0) target = $region81
    $region80: #{tpu_custom_call.1} parent=1 // pred_region
      %s2466 = ssub.s32 512, 512
      %2467 = vsyncadd [#allocation3], %s2466
      %s2469 = sshll.u32 [#allocation2], 4
      %s2470 = int_to_ptr.vmem [resolvable:$true] %s2469
      %2472 = dma.vmem_to_hbm [thread:$0]  %s2470, 512, %s19, [#allocation3]
    $region81: #{tpu_custom_call.1} parent=1 // pred_fallthru
      _
    // Predicated region
    $region82: #{tpu_custom_call.1} parent=1 // pred_check
      _
    $region83: #{tpu_custom_call.1} parent=1 // pred_check_branch
      %2474 = sbr.rel (0) target = $region85
    $region84: #{tpu_custom_call.1} parent=1 // pred_region
      %2475 = dma.done [#allocation3], 512
    $region85: #{tpu_custom_call.1} parent=1 // pred_fallthru
      _
    %2476 = vsyncpa [#allocation3], 1

</llo_original>
